<compile_context>
chip_gen: v7x
topology: tpu7x:2x2x1
jax: 0.10.0
libtpu: 0.0.40
codegen_flags: <defaults>
</compile_context>

<pallas_src>
import numpy as np
import jax
import jax.numpy as jnp
from jax import lax
from jax.experimental import pallas as pl
from jax.experimental.pallas import tpu as pltpu


_BN_EPS = 1e-5

# Layer configs mirror the PyTorch nn.Sequential.
_LAYERS = (
    dict(cin=1,   cout=64,  k=2, s=2, p=2, bn=False, act="leaky"),
    dict(cin=64,  cout=128, k=2, s=2, p=2, bn=True,  act="leaky"),
    dict(cin=128, cout=128, k=2, s=2, p=1, bn=True,  act="leaky"),
    dict(cin=128, cout=128, k=4, s=2, p=1, bn=True,  act="leaky"),
    dict(cin=128, cout=1,   k=3, s=1, p=0, bn=False, act="sigmoid"),
)

# Static spatial plan for 28x28 input:
#   L1: 28 -(k2,s2,p2)-> 16, L2: 16 -> 10, L3: 10 -> 6, L4: 6 -> 3, L5: 3 -> 1.
# _M* = padded row count (flattened Ho*Wo) of each layer's output; padded rows are
# garbage-but-never-read because the next layer's gather matrix only selects valid rows.
_M1, _M2, _M3, _M4 = 256, 128, 128, 16


def _gather_stack(Ho, Wo, Hi, Wi, k, s, p, m_out, m_in):
    """Stacked 0/1 gather matrix (k*k*m_out, m_in).

    Row t*m_out + (ho*Wo+wo) selects previous-layer row (s*ho+ki-p)*Wi + (s*wo+kj-p)
    when that position is inside the image; rows that fall in the zero-padding halo
    (and rows beyond the valid Ho*Wo outputs) are all-zero, which reproduces the
    conv zero-padding exactly.
    """
    g = np.zeros((k * k * m_out, m_in), np.float32)
    for ki in range(k):
        for kj in range(k):
            t = ki * k + kj
            for ho in range(Ho):
                for wo in range(Wo):
                    hi, wi = s * ho + ki - p, s * wo + kj - p
                    if 0 <= hi < Hi and 0 <= wi < Wi:
                        g[t * m_out + ho * Wo + wo, hi * Wi + wi] = 1.0
    return g


_G2 = _gather_stack(10, 10, 16, 16, 2, 2, 2, _M2, _M1)   # (512, 256)
_G3 = _gather_stack(6,  6,  10, 10, 2, 2, 1, _M3, _M2)   # (512, 128)
_G4 = _gather_stack(3,  3,  6,  6,  4, 2, 1, _M4, _M3)   # (256, 128)


# ----------------------------------------------------------------------------
# The fused kernel: one grid step == one batch element.
# ----------------------------------------------------------------------------
def _discriminator_kernel(p1_ref, w1_ref,
                          g2_ref, w2_ref, b2_ref,
                          g3_ref, w3_ref, b3_ref,
                          g4_ref, w4_ref, b4_ref,
                          w5_ref, o_ref):
    f32 = jnp.float32

    def leaky(v):                                   # LeakyReLU(0.2)
        return jnp.maximum(v, 0.2 * v)

    def conv(y_prev, g_ref, w_ref, b_ref, taps, m_out):
        """leaky( sum_t (G_stack @ y_prev)[t-th block] @ W_t + bias )."""
        s = jnp.dot(g_ref[...], y_prev, preferred_element_type=f32)   # (taps*m_out, Cin)
        acc = b_ref[...]                                              # (1, Cout) bias
        for t in range(taps):                                         # unrolled, tiny
            acc = acc + jnp.dot(s[t * m_out:(t + 1) * m_out, :], w_ref[t],
                                preferred_element_type=f32)
        return leaky(acc)                                             # (m_out, Cout)

    # layer 1: Conv(1->64, k2 s2 p2) + LeakyReLU (patches im2col'd in the wrapper)
    y1 = leaky(jnp.dot(p1_ref[...], w1_ref[...], preferred_element_type=f32))  # (256, 64)
    # layer 2: Conv(64->128, k2 s2 p2) + BN + LeakyReLU
    y2 = conv(y1, g2_ref, w2_ref, b2_ref, 4, _M2)                              # (128, 128)
    # layer 3: Conv(128->128, k2 s2 p1) + BN + LeakyReLU
    y3 = conv(y2, g3_ref, w3_ref, b3_ref, 4, _M3)                              # (128, 128)
    # layer 4: Conv(128->128, k4 s2 p1) + BN + LeakyReLU
    y4 = conv(y3, g4_ref, w4_ref, b4_ref, 16, _M4)                             # (16, 128)

    # layer 5: Conv(128->1, k3 s1 p0) + Sigmoid.  w5 rows >= 9 are zero, so the
    # garbage padding rows of y4 contribute nothing.
    v = jnp.sum(y4 * w5_ref[...], axis=1, keepdims=True)   # (16, 1)  lane reduce
    v = jnp.sum(v, axis=0, keepdims=True)                  # (1, 1)   sublane reduce
    v = 1.0 / (1.0 + jnp.exp(-v))                          # sigmoid
    o_ref[...] = jnp.broadcast_to(v, o_ref.shape)


def _full_spec(arr):
    """BlockSpec covering the whole (grid-invariant) array: fetched once, reused."""
    nd = arr.ndim
    return pl.BlockSpec(arr.shape, lambda b, nd=nd: (0,) * nd)


# ----------------------------------------------------------------------------
# One-time parameter fold (BN folded into weights; per-tap (Cin, Cout) layout).
# ----------------------------------------------------------------------------
def fold_params(params):
    f = {}
    # layer 1: OIHW (64,1,2,2) -> rows ordered (ki*2+kj), cols = cout; pad rows to 128.
    w1 = params[0]["w"].transpose(2, 3, 1, 0).reshape(4, 64)
    f["w1"] = jnp.pad(w1, ((0, 124), (0, 0)))                       # (128, 64)
    for idx, name in ((1, "2"), (2, "3"), (3, "4")):
        cfg, p = _LAYERS[idx], params[idx]
        k, cin, cout = cfg["k"], cfg["cin"], cfg["cout"]
        scale = p["gamma"] / jnp.sqrt(p["var"] + _BN_EPS)
        shift = p["beta"] - p["mean"] * scale
        taps = p["w"].transpose(2, 3, 1, 0).reshape(k * k, cin, cout)  # (tap, cin, cout)
        f["w" + name] = taps * scale[None, None, :]
        f["b" + name] = shift.reshape(1, cout)
    # layer 5: (1,128,3,3) -> (tap = ki*3+kj, cin), zero-padded to 16 rows.
    w5 = params[4]["w"][0].transpose(1, 2, 0).reshape(9, 128)
    f["w5"] = jnp.pad(w5, ((0, _M4 - 9), (0, 0)))                   # (16, 128)
    # composed gather/pad matrices (constants of the net, not of the data)
    f["g2"] = jnp.asarray(_G2)
    f["g3"] = jnp.asarray(_G3)
    f["g4"] = jnp.asarray(_G4)
    return f


# ----------------------------------------------------------------------------
# Forward pass (public interface NCHW, like PyTorch).
# ----------------------------------------------------------------------------
@jax.jit
def discriminator_forward(x_nchw, folded):
    x = x_nchw.astype(jnp.float32)
    B, C, H, W = x.shape
    assert (C, H, W) == (1, 28, 28), "this Discriminator expects 1x28x28 inputs"

    # Layer-1 im2col at the boundary: k=2,s=2,p=2 -> non-overlapping 2x2 blocks of the
    # zero-padded 32x32 image.  Rows ordered (b, ho, wo), cols (ki, kj); pad K to 128.
    xp = jnp.pad(x[:, 0], ((0, 0), (2, 2), (2, 2)))                          # (B,32,32)
    p1 = xp.reshape(B, 16, 2, 16, 2).transpose(0, 1, 3, 2, 4).reshape(B * 256, 4)
    p1 = jnp.pad(p1, ((0, 0), (0, 124)))                                     # (B*256,128)

    out = pl.pallas_call(
        _discriminator_kernel,
        out_shape=jax.ShapeDtypeStruct((B * 8, 128), jnp.float32),
        grid=(B,),
        in_specs=[
            pl.BlockSpec((256, 128), lambda b: (b, 0)),   # per-image layer-1 patches
            _full_spec(folded["w1"]),
            _full_spec(folded["g2"]), _full_spec(folded["w2"]), _full_spec(folded["b2"]),
            _full_spec(folded["g3"]), _full_spec(folded["w3"]), _full_spec(folded["b3"]),
            _full_spec(folded["g4"]), _full_spec(folded["w4"]), _full_spec(folded["b4"]),
            _full_spec(folded["w5"]),
        ],
        out_specs=pl.BlockSpec((8, 128), lambda b: (b, 0)),
        compiler_params=pltpu.CompilerParams(dimension_semantics=("parallel",)),
    )(p1, folded["w1"],
      folded["g2"], folded["w2"], folded["b2"],
      folded["g3"], folded["w3"], folded["b3"],
      folded["g4"], folded["w4"], folded["b4"],
      folded["w5"])

    return out[::8, 0].reshape(B, 1, 1, 1)


# ----------------------------------------------------------------------------
# Parameter init + pure-JAX reference (for correctness check).
# ----------------------------------------------------------------------------
def init_params(key):
    params = []
    for cfg in _LAYERS:
        key, kw_, kg, kb, km, kv = jax.random.split(key, 6)
        w = 0.02 * jax.random.normal(
            kw_, (cfg["cout"], cfg["cin"], cfg["k"], cfg["k"]), jnp.float32)
        p = {"w": w}
        if cfg["bn"]:
            p["gamma"] = 1.0 + 0.02 * jax.random.normal(kg, (cfg["cout"],), jnp.float32)
            p["beta"] = 0.02 * jax.random.normal(kb, (cfg["cout"],), jnp.float32)
            p["mean"] = 0.1 * jax.random.normal(km, (cfg["cout"],), jnp.float32)
            p["var"] = 1.0 + 0.5 * jax.random.uniform(kv, (cfg["cout"],), jnp.float32)
        params.append(p)
    return params


def reference_forward(x, params):
    x = x.astype(jnp.float32)
    for cfg, p in zip(_LAYERS, params):
        x = lax.conv_general_dilated(
            x, p["w"], (cfg["s"], cfg["s"]),
            [(cfg["p"], cfg["p"]), (cfg["p"], cfg["p"])],
            dimension_numbers=("NCHW", "OIHW", "NCHW"))
        if cfg["bn"]:
            x = ((x - p["mean"][None, :, None, None])
                 / jnp.sqrt(p["var"][None, :, None, None] + _BN_EPS)
                 * p["gamma"][None, :, None, None]
                 + p["beta"][None, :, None, None])
        if cfg["act"] == "leaky":
            x = jnp.where(x >= 0.0, x, 0.2 * x)
        else:
            x = jax.nn.sigmoid(x)
    return x


if __name__ == "__main__":
    key = jax.random.PRNGKey(0)
    kp, kx = jax.random.split(key)
    params = init_params(kp)
    folded = fold_params(params)          # one-time BN/weight fold + gather constants
    # MNIST-like input: batch=2, 1 channel, 28x28 (NCHW, like PyTorch)
    x = jax.random.normal(kx, (2, 1, 28, 28), jnp.float32)

    out = jax.block_until_ready(discriminator_forward(x, folded))
    ref = jax.block_until_ready(reference_forward(x, params))

    assert out.shape == (2, 1, 1, 1), out.shape
    err = float(jnp.max(jnp.abs(out - ref)))
    assert err < 1e-3, err
    print("KERNEL_OK")
</pallas_src>

<mosaic_0001>
module attributes {stable_mosaic.version = 11 : i64} {
  func.func @_discriminator_kernel(%arg0: i32, %arg1: memref<256x128xf32, #tpu.memory_space<vmem>>, %arg2: memref<128x64xf32, #tpu.memory_space<vmem>>, %arg3: memref<512x256xf32, #tpu.memory_space<vmem>>, %arg4: memref<4x64x128xf32, #tpu.memory_space<vmem>>, %arg5: memref<1x128xf32, #tpu.memory_space<vmem>>, %arg6: memref<512x128xf32, #tpu.memory_space<vmem>>, %arg7: memref<4x128x128xf32, #tpu.memory_space<vmem>>, %arg8: memref<1x128xf32, #tpu.memory_space<vmem>>, %arg9: memref<256x128xf32, #tpu.memory_space<vmem>>, %arg10: memref<16x128x128xf32, #tpu.memory_space<vmem>>, %arg11: memref<1x128xf32, #tpu.memory_space<vmem>>, %arg12: memref<16x128xf32, #tpu.memory_space<vmem>>, %arg13: memref<8x128xf32, #tpu.memory_space<vmem>>) attributes {dimension_semantics = [#tpu.dimension_semantics<parallel>], iteration_bounds = array<i64: 2>, scalar_prefetch = 0 : i64, scratch_operands = 0 : i64, tpu.core_type = #tpu.core_type<tc>, window_params = [{transform_indices = @transform_0, window_bounds = array<i64: 256, 128>}, {pipeline_mode = #tpu.pipeline_mode<synchronous>, transform_indices = @transform_1, window_bounds = array<i64: 128, 64>}, {pipeline_mode = #tpu.pipeline_mode<synchronous>, transform_indices = @transform_2, window_bounds = array<i64: 512, 256>}, {pipeline_mode = #tpu.pipeline_mode<synchronous>, transform_indices = @transform_3, window_bounds = array<i64: 4, 64, 128>}, {pipeline_mode = #tpu.pipeline_mode<synchronous>, transform_indices = @transform_4, window_bounds = array<i64: 1, 128>}, {pipeline_mode = #tpu.pipeline_mode<synchronous>, transform_indices = @transform_5, window_bounds = array<i64: 512, 128>}, {pipeline_mode = #tpu.pipeline_mode<synchronous>, transform_indices = @transform_6, window_bounds = array<i64: 4, 128, 128>}, {pipeline_mode = #tpu.pipeline_mode<synchronous>, transform_indices = @transform_7, window_bounds = array<i64: 1, 128>}, {pipeline_mode = #tpu.pipeline_mode<synchronous>, transform_indices = @transform_8, window_bounds = array<i64: 256, 128>}, {pipeline_mode = #tpu.pipeline_mode<synchronous>, transform_indices = @transform_9, window_bounds = array<i64: 16, 128, 128>}, {pipeline_mode = #tpu.pipeline_mode<synchronous>, transform_indices = @transform_10, window_bounds = array<i64: 1, 128>}, {pipeline_mode = #tpu.pipeline_mode<synchronous>, transform_indices = @transform_11, window_bounds = array<i64: 16, 128>}, {transform_indices = @transform_12, window_bounds = array<i64: 8, 128>}]} {
    %c0 = arith.constant 0 : index
    %c0_0 = arith.constant 0 : index
    %0 = vector.load %arg1[%c0, %c0_0] : memref<256x128xf32, #tpu.memory_space<vmem>>, vector<256x128xf32>
    %c0_1 = arith.constant 0 : index
    %c0_2 = arith.constant 0 : index
    %1 = vector.load %arg2[%c0_1, %c0_2] : memref<128x64xf32, #tpu.memory_space<vmem>>, vector<128x64xf32>
    %cst = arith.constant dense<0.000000e+00> : vector<256x64xf32>
    %2 = tpu.matmul %0, %1, %cst {dimension_numbers = #tpu.dot_dimension_numbers<[1], [0], [0], [1], [0, 0, 1, 1], [], []>} : vector<256x128xf32>, vector<128x64xf32>, vector<256x64xf32> -> vector<256x64xf32>
    %cst_3 = arith.constant 2.000000e-01 : f32
    %3 = vector.broadcast %cst_3 : f32 to vector<256x64xf32>
    %4 = arith.mulf %3, %2 : vector<256x64xf32>
    %5 = arith.maximumf %2, %4 : vector<256x64xf32>
    %c0_4 = arith.constant 0 : index
    %c0_5 = arith.constant 0 : index
    %6 = vector.load %arg3[%c0_4, %c0_5] : memref<512x256xf32, #tpu.memory_space<vmem>>, vector<512x256xf32>
    %cst_6 = arith.constant dense<0.000000e+00> : vector<512x64xf32>
    %7 = tpu.matmul %6, %5, %cst_6 {dimension_numbers = #tpu.dot_dimension_numbers<[1], [0], [0], [1], [0, 0, 1, 1], [], []>} : vector<512x256xf32>, vector<256x64xf32>, vector<512x64xf32> -> vector<512x64xf32>
    %c0_7 = arith.constant 0 : index
    %c0_8 = arith.constant 0 : index
    %8 = vector.load %arg5[%c0_7, %c0_8] : memref<1x128xf32, #tpu.memory_space<vmem>>, vector<1x128xf32>
    %9 = vector.extract_strided_slice %7 {offsets = [0, 0], sizes = [128, 64], strides = [1, 1]} : vector<512x64xf32> to vector<128x64xf32>
    %c0_9 = arith.constant 0 : index
    %c0_10 = arith.constant 0 : index
    %c0_11 = arith.constant 0 : index
    %10 = vector.load %arg4[%c0_9, %c0_10, %c0_11] : memref<4x64x128xf32, #tpu.memory_space<vmem>>, vector<1x64x128xf32>
    %11 = vector.shape_cast %10 : vector<1x64x128xf32> to vector<64x128xf32>
    %cst_12 = arith.constant dense<0.000000e+00> : vector<128x128xf32>
    %12 = tpu.matmul %9, %11, %cst_12 {dimension_numbers = #tpu.dot_dimension_numbers<[1], [0], [0], [1], [0, 0, 1, 1], [], []>} : vector<128x64xf32>, vector<64x128xf32>, vector<128x128xf32> -> vector<128x128xf32>
    %13 = vector.broadcast %8 : vector<1x128xf32> to vector<128x128xf32>
    %14 = arith.addf %13, %12 : vector<128x128xf32>
    %15 = vector.extract_strided_slice %7 {offsets = [128, 0], sizes = [128, 64], strides = [1, 1]} : vector<512x64xf32> to vector<128x64xf32>
    %c1 = arith.constant 1 : index
    %c0_13 = arith.constant 0 : index
    %c0_14 = arith.constant 0 : index
    %16 = vector.load %arg4[%c1, %c0_13, %c0_14] : memref<4x64x128xf32, #tpu.memory_space<vmem>>, vector<1x64x128xf32>
    %17 = vector.shape_cast %16 : vector<1x64x128xf32> to vector<64x128xf32>
    %cst_15 = arith.constant dense<0.000000e+00> : vector<128x128xf32>
    %18 = tpu.matmul %15, %17, %cst_15 {dimension_numbers = #tpu.dot_dimension_numbers<[1], [0], [0], [1], [0, 0, 1, 1], [], []>} : vector<128x64xf32>, vector<64x128xf32>, vector<128x128xf32> -> vector<128x128xf32>
    %19 = arith.addf %14, %18 : vector<128x128xf32>
    %20 = vector.extract_strided_slice %7 {offsets = [256, 0], sizes = [128, 64], strides = [1, 1]} : vector<512x64xf32> to vector<128x64xf32>
    %c2 = arith.constant 2 : index
    %c0_16 = arith.constant 0 : index
    %c0_17 = arith.constant 0 : index
    %21 = vector.load %arg4[%c2, %c0_16, %c0_17] : memref<4x64x128xf32, #tpu.memory_space<vmem>>, vector<1x64x128xf32>
    %22 = vector.shape_cast %21 : vector<1x64x128xf32> to vector<64x128xf32>
    %cst_18 = arith.constant dense<0.000000e+00> : vector<128x128xf32>
    %23 = tpu.matmul %20, %22, %cst_18 {dimension_numbers = #tpu.dot_dimension_numbers<[1], [0], [0], [1], [0, 0, 1, 1], [], []>} : vector<128x64xf32>, vector<64x128xf32>, vector<128x128xf32> -> vector<128x128xf32>
    %24 = arith.addf %19, %23 : vector<128x128xf32>
    %25 = vector.extract_strided_slice %7 {offsets = [384, 0], sizes = [128, 64], strides = [1, 1]} : vector<512x64xf32> to vector<128x64xf32>
    %c3 = arith.constant 3 : index
    %c0_19 = arith.constant 0 : index
    %c0_20 = arith.constant 0 : index
    %26 = vector.load %arg4[%c3, %c0_19, %c0_20] : memref<4x64x128xf32, #tpu.memory_space<vmem>>, vector<1x64x128xf32>
    %27 = vector.shape_cast %26 : vector<1x64x128xf32> to vector<64x128xf32>
    %cst_21 = arith.constant dense<0.000000e+00> : vector<128x128xf32>
    %28 = tpu.matmul %25, %27, %cst_21 {dimension_numbers = #tpu.dot_dimension_numbers<[1], [0], [0], [1], [0, 0, 1, 1], [], []>} : vector<128x64xf32>, vector<64x128xf32>, vector<128x128xf32> -> vector<128x128xf32>
    %29 = arith.addf %24, %28 : vector<128x128xf32>
    %cst_22 = arith.constant 2.000000e-01 : f32
    %30 = vector.broadcast %cst_22 : f32 to vector<128x128xf32>
    %31 = arith.mulf %30, %29 : vector<128x128xf32>
    %32 = arith.maximumf %29, %31 : vector<128x128xf32>
    %c0_23 = arith.constant 0 : index
    %c0_24 = arith.constant 0 : index
    %33 = vector.load %arg6[%c0_23, %c0_24] : memref<512x128xf32, #tpu.memory_space<vmem>>, vector<512x128xf32>
    %cst_25 = arith.constant dense<0.000000e+00> : vector<512x128xf32>
    %34 = tpu.matmul %33, %32, %cst_25 {dimension_numbers = #tpu.dot_dimension_numbers<[1], [0], [0], [1], [0, 0, 1, 1], [], []>} : vector<512x128xf32>, vector<128x128xf32>, vector<512x128xf32> -> vector<512x128xf32>
    %c0_26 = arith.constant 0 : index
    %c0_27 = arith.constant 0 : index
    %35 = vector.load %arg8[%c0_26, %c0_27] : memref<1x128xf32, #tpu.memory_space<vmem>>, vector<1x128xf32>
    %36 = vector.extract_strided_slice %34 {offsets = [0, 0], sizes = [128, 128], strides = [1, 1]} : vector<512x128xf32> to vector<128x128xf32>
    %c0_28 = arith.constant 0 : index
    %c0_29 = arith.constant 0 : index
    %c0_30 = arith.constant 0 : index
    %37 = vector.load %arg7[%c0_28, %c0_29, %c0_30] : memref<4x128x128xf32, #tpu.memory_space<vmem>>, vector<1x128x128xf32>
    %38 = vector.shape_cast %37 : vector<1x128x128xf32> to vector<128x128xf32>
    %cst_31 = arith.constant dense<0.000000e+00> : vector<128x128xf32>
    %39 = tpu.matmul %36, %38, %cst_31 {dimension_numbers = #tpu.dot_dimension_numbers<[1], [0], [0], [1], [0, 0, 1, 1], [], []>} : vector<128x128xf32>, vector<128x128xf32>, vector<128x128xf32> -> vector<128x128xf32>
    %40 = vector.broadcast %35 : vector<1x128xf32> to vector<128x128xf32>
    %41 = arith.addf %40, %39 : vector<128x128xf32>
    %42 = vector.extract_strided_slice %34 {offsets = [128, 0], sizes = [128, 128], strides = [1, 1]} : vector<512x128xf32> to vector<128x128xf32>
    %c1_32 = arith.constant 1 : index
    %c0_33 = arith.constant 0 : index
    %c0_34 = arith.constant 0 : index
    %43 = vector.load %arg7[%c1_32, %c0_33, %c0_34] : memref<4x128x128xf32, #tpu.memory_space<vmem>>, vector<1x128x128xf32>
    %44 = vector.shape_cast %43 : vector<1x128x128xf32> to vector<128x128xf32>
    %cst_35 = arith.constant dense<0.000000e+00> : vector<128x128xf32>
    %45 = tpu.matmul %42, %44, %cst_35 {dimension_numbers = #tpu.dot_dimension_numbers<[1], [0], [0], [1], [0, 0, 1, 1], [], []>} : vector<128x128xf32>, vector<128x128xf32>, vector<128x128xf32> -> vector<128x128xf32>
    %46 = arith.addf %41, %45 : vector<128x128xf32>
    %47 = vector.extract_strided_slice %34 {offsets = [256, 0], sizes = [128, 128], strides = [1, 1]} : vector<512x128xf32> to vector<128x128xf32>
    %c2_36 = arith.constant 2 : index
    %c0_37 = arith.constant 0 : index
    %c0_38 = arith.constant 0 : index
    %48 = vector.load %arg7[%c2_36, %c0_37, %c0_38] : memref<4x128x128xf32, #tpu.memory_space<vmem>>, vector<1x128x128xf32>
    %49 = vector.shape_cast %48 : vector<1x128x128xf32> to vector<128x128xf32>
    %cst_39 = arith.constant dense<0.000000e+00> : vector<128x128xf32>
    %50 = tpu.matmul %47, %49, %cst_39 {dimension_numbers = #tpu.dot_dimension_numbers<[1], [0], [0], [1], [0, 0, 1, 1], [], []>} : vector<128x128xf32>, vector<128x128xf32>, vector<128x128xf32> -> vector<128x128xf32>
    %51 = arith.addf %46, %50 : vector<128x128xf32>
    %52 = vector.extract_strided_slice %34 {offsets = [384, 0], sizes = [128, 128], strides = [1, 1]} : vector<512x128xf32> to vector<128x128xf32>
    %c3_40 = arith.constant 3 : index
    %c0_41 = arith.constant 0 : index
    %c0_42 = arith.constant 0 : index
    %53 = vector.load %arg7[%c3_40, %c0_41, %c0_42] : memref<4x128x128xf32, #tpu.memory_space<vmem>>, vector<1x128x128xf32>
    %54 = vector.shape_cast %53 : vector<1x128x128xf32> to vector<128x128xf32>
    %cst_43 = arith.constant dense<0.000000e+00> : vector<128x128xf32>
    %55 = tpu.matmul %52, %54, %cst_43 {dimension_numbers = #tpu.dot_dimension_numbers<[1], [0], [0], [1], [0, 0, 1, 1], [], []>} : vector<128x128xf32>, vector<128x128xf32>, vector<128x128xf32> -> vector<128x128xf32>
    %56 = arith.addf %51, %55 : vector<128x128xf32>
    %cst_44 = arith.constant 2.000000e-01 : f32
    %57 = vector.broadcast %cst_44 : f32 to vector<128x128xf32>
    %58 = arith.mulf %57, %56 : vector<128x128xf32>
    %59 = arith.maximumf %56, %58 : vector<128x128xf32>
    %c0_45 = arith.constant 0 : index
    %c0_46 = arith.constant 0 : index
    %60 = vector.load %arg9[%c0_45, %c0_46] : memref<256x128xf32, #tpu.memory_space<vmem>>, vector<256x128xf32>
    %cst_47 = arith.constant dense<0.000000e+00> : vector<256x128xf32>
    %61 = tpu.matmul %60, %59, %cst_47 {dimension_numbers = #tpu.dot_dimension_numbers<[1], [0], [0], [1], [0, 0, 1, 1], [], []>} : vector<256x128xf32>, vector<128x128xf32>, vector<256x128xf32> -> vector<256x128xf32>
    %c0_48 = arith.constant 0 : index
    %c0_49 = arith.constant 0 : index
    %62 = vector.load %arg11[%c0_48, %c0_49] : memref<1x128xf32, #tpu.memory_space<vmem>>, vector<1x128xf32>
    %63 = vector.extract_strided_slice %61 {offsets = [0, 0], sizes = [16, 128], strides = [1, 1]} : vector<256x128xf32> to vector<16x128xf32>
    %c0_50 = arith.constant 0 : index
    %c0_51 = arith.constant 0 : index
    %c0_52 = arith.constant 0 : index
    %64 = vector.load %arg10[%c0_50, %c0_51, %c0_52] : memref<16x128x128xf32, #tpu.memory_space<vmem>>, vector<1x128x128xf32>
    %65 = vector.shape_cast %64 : vector<1x128x128xf32> to vector<128x128xf32>
    %cst_53 = arith.constant dense<0.000000e+00> : vector<16x128xf32>
    %66 = tpu.matmul %63, %65, %cst_53 {dimension_numbers = #tpu.dot_dimension_numbers<[1], [0], [0], [1], [0, 0, 1, 1], [], []>} : vector<16x128xf32>, vector<128x128xf32>, vector<16x128xf32> -> vector<16x128xf32>
    %67 = vector.broadcast %62 : vector<1x128xf32> to vector<16x128xf32>
    %68 = arith.addf %67, %66 : vector<16x128xf32>
    %69 = vector.extract_strided_slice %61 {offsets = [16, 0], sizes = [16, 128], strides = [1, 1]} : vector<256x128xf32> to vector<16x128xf32>
    %c1_54 = arith.constant 1 : index
    %c0_55 = arith.constant 0 : index
    %c0_56 = arith.constant 0 : index
    %70 = vector.load %arg10[%c1_54, %c0_55, %c0_56] : memref<16x128x128xf32, #tpu.memory_space<vmem>>, vector<1x128x128xf32>
    %71 = vector.shape_cast %70 : vector<1x128x128xf32> to vector<128x128xf32>
    %cst_57 = arith.constant dense<0.000000e+00> : vector<16x128xf32>
    %72 = tpu.matmul %69, %71, %cst_57 {dimension_numbers = #tpu.dot_dimension_numbers<[1], [0], [0], [1], [0, 0, 1, 1], [], []>} : vector<16x128xf32>, vector<128x128xf32>, vector<16x128xf32> -> vector<16x128xf32>
    %73 = arith.addf %68, %72 : vector<16x128xf32>
    %74 = vector.extract_strided_slice %61 {offsets = [32, 0], sizes = [16, 128], strides = [1, 1]} : vector<256x128xf32> to vector<16x128xf32>
    %c2_58 = arith.constant 2 : index
    %c0_59 = arith.constant 0 : index
    %c0_60 = arith.constant 0 : index
    %75 = vector.load %arg10[%c2_58, %c0_59, %c0_60] : memref<16x128x128xf32, #tpu.memory_space<vmem>>, vector<1x128x128xf32>
    %76 = vector.shape_cast %75 : vector<1x128x128xf32> to vector<128x128xf32>
    %cst_61 = arith.constant dense<0.000000e+00> : vector<16x128xf32>
    %77 = tpu.matmul %74, %76, %cst_61 {dimension_numbers = #tpu.dot_dimension_numbers<[1], [0], [0], [1], [0, 0, 1, 1], [], []>} : vector<16x128xf32>, vector<128x128xf32>, vector<16x128xf32> -> vector<16x128xf32>
    %78 = arith.addf %73, %77 : vector<16x128xf32>
    %79 = vector.extract_strided_slice %61 {offsets = [48, 0], sizes = [16, 128], strides = [1, 1]} : vector<256x128xf32> to vector<16x128xf32>
    %c3_62 = arith.constant 3 : index
    %c0_63 = arith.constant 0 : index
    %c0_64 = arith.constant 0 : index
    %80 = vector.load %arg10[%c3_62, %c0_63, %c0_64] : memref<16x128x128xf32, #tpu.memory_space<vmem>>, vector<1x128x128xf32>
    %81 = vector.shape_cast %80 : vector<1x128x128xf32> to vector<128x128xf32>
    %cst_65 = arith.constant dense<0.000000e+00> : vector<16x128xf32>
    %82 = tpu.matmul %79, %81, %cst_65 {dimension_numbers = #tpu.dot_dimension_numbers<[1], [0], [0], [1], [0, 0, 1, 1], [], []>} : vector<16x128xf32>, vector<128x128xf32>, vector<16x128xf32> -> vector<16x128xf32>
    %83 = arith.addf %78, %82 : vector<16x128xf32>
    %84 = vector.extract_strided_slice %61 {offsets = [64, 0], sizes = [16, 128], strides = [1, 1]} : vector<256x128xf32> to vector<16x128xf32>
    %c4 = arith.constant 4 : index
    %c0_66 = arith.constant 0 : index
    %c0_67 = arith.constant 0 : index
    %85 = vector.load %arg10[%c4, %c0_66, %c0_67] : memref<16x128x128xf32, #tpu.memory_space<vmem>>, vector<1x128x128xf32>
    %86 = vector.shape_cast %85 : vector<1x128x128xf32> to vector<128x128xf32>
    %cst_68 = arith.constant dense<0.000000e+00> : vector<16x128xf32>
    %87 = tpu.matmul %84, %86, %cst_68 {dimension_numbers = #tpu.dot_dimension_numbers<[1], [0], [0], [1], [0, 0, 1, 1], [], []>} : vector<16x128xf32>, vector<128x128xf32>, vector<16x128xf32> -> vector<16x128xf32>
    %88 = arith.addf %83, %87 : vector<16x128xf32>
    %89 = vector.extract_strided_slice %61 {offsets = [80, 0], sizes = [16, 128], strides = [1, 1]} : vector<256x128xf32> to vector<16x128xf32>
    %c5 = arith.constant 5 : index
    %c0_69 = arith.constant 0 : index
    %c0_70 = arith.constant 0 : index
    %90 = vector.load %arg10[%c5, %c0_69, %c0_70] : memref<16x128x128xf32, #tpu.memory_space<vmem>>, vector<1x128x128xf32>
    %91 = vector.shape_cast %90 : vector<1x128x128xf32> to vector<128x128xf32>
    %cst_71 = arith.constant dense<0.000000e+00> : vector<16x128xf32>
    %92 = tpu.matmul %89, %91, %cst_71 {dimension_numbers = #tpu.dot_dimension_numbers<[1], [0], [0], [1], [0, 0, 1, 1], [], []>} : vector<16x128xf32>, vector<128x128xf32>, vector<16x128xf32> -> vector<16x128xf32>
    %93 = arith.addf %88, %92 : vector<16x128xf32>
    %94 = vector.extract_strided_slice %61 {offsets = [96, 0], sizes = [16, 128], strides = [1, 1]} : vector<256x128xf32> to vector<16x128xf32>
    %c6 = arith.constant 6 : index
    %c0_72 = arith.constant 0 : index
    %c0_73 = arith.constant 0 : index
    %95 = vector.load %arg10[%c6, %c0_72, %c0_73] : memref<16x128x128xf32, #tpu.memory_space<vmem>>, vector<1x128x128xf32>
    %96 = vector.shape_cast %95 : vector<1x128x128xf32> to vector<128x128xf32>
    %cst_74 = arith.constant dense<0.000000e+00> : vector<16x128xf32>
    %97 = tpu.matmul %94, %96, %cst_74 {dimension_numbers = #tpu.dot_dimension_numbers<[1], [0], [0], [1], [0, 0, 1, 1], [], []>} : vector<16x128xf32>, vector<128x128xf32>, vector<16x128xf32> -> vector<16x128xf32>
    %98 = arith.addf %93, %97 : vector<16x128xf32>
    %99 = vector.extract_strided_slice %61 {offsets = [112, 0], sizes = [16, 128], strides = [1, 1]} : vector<256x128xf32> to vector<16x128xf32>
    %c7 = arith.constant 7 : index
    %c0_75 = arith.constant 0 : index
    %c0_76 = arith.constant 0 : index
    %100 = vector.load %arg10[%c7, %c0_75, %c0_76] : memref<16x128x128xf32, #tpu.memory_space<vmem>>, vector<1x128x128xf32>
    %101 = vector.shape_cast %100 : vector<1x128x128xf32> to vector<128x128xf32>
    %cst_77 = arith.constant dense<0.000000e+00> : vector<16x128xf32>
    %102 = tpu.matmul %99, %101, %cst_77 {dimension_numbers = #tpu.dot_dimension_numbers<[1], [0], [0], [1], [0, 0, 1, 1], [], []>} : vector<16x128xf32>, vector<128x128xf32>, vector<16x128xf32> -> vector<16x128xf32>
    %103 = arith.addf %98, %102 : vector<16x128xf32>
    %104 = vector.extract_strided_slice %61 {offsets = [128, 0], sizes = [16, 128], strides = [1, 1]} : vector<256x128xf32> to vector<16x128xf32>
    %c8 = arith.constant 8 : index
    %c0_78 = arith.constant 0 : index
    %c0_79 = arith.constant 0 : index
    %105 = vector.load %arg10[%c8, %c0_78, %c0_79] : memref<16x128x128xf32, #tpu.memory_space<vmem>>, vector<1x128x128xf32>
    %106 = vector.shape_cast %105 : vector<1x128x128xf32> to vector<128x128xf32>
    %cst_80 = arith.constant dense<0.000000e+00> : vector<16x128xf32>
    %107 = tpu.matmul %104, %106, %cst_80 {dimension_numbers = #tpu.dot_dimension_numbers<[1], [0], [0], [1], [0, 0, 1, 1], [], []>} : vector<16x128xf32>, vector<128x128xf32>, vector<16x128xf32> -> vector<16x128xf32>
    %108 = arith.addf %103, %107 : vector<16x128xf32>
    %109 = vector.extract_strided_slice %61 {offsets = [144, 0], sizes = [16, 128], strides = [1, 1]} : vector<256x128xf32> to vector<16x128xf32>
    %c9 = arith.constant 9 : index
    %c0_81 = arith.constant 0 : index
    %c0_82 = arith.constant 0 : index
    %110 = vector.load %arg10[%c9, %c0_81, %c0_82] : memref<16x128x128xf32, #tpu.memory_space<vmem>>, vector<1x128x128xf32>
    %111 = vector.shape_cast %110 : vector<1x128x128xf32> to vector<128x128xf32>
    %cst_83 = arith.constant dense<0.000000e+00> : vector<16x128xf32>
    %112 = tpu.matmul %109, %111, %cst_83 {dimension_numbers = #tpu.dot_dimension_numbers<[1], [0], [0], [1], [0, 0, 1, 1], [], []>} : vector<16x128xf32>, vector<128x128xf32>, vector<16x128xf32> -> vector<16x128xf32>
    %113 = arith.addf %108, %112 : vector<16x128xf32>
    %114 = vector.extract_strided_slice %61 {offsets = [160, 0], sizes = [16, 128], strides = [1, 1]} : vector<256x128xf32> to vector<16x128xf32>
    %c10 = arith.constant 10 : index
    %c0_84 = arith.constant 0 : index
    %c0_85 = arith.constant 0 : index
    %115 = vector.load %arg10[%c10, %c0_84, %c0_85] : memref<16x128x128xf32, #tpu.memory_space<vmem>>, vector<1x128x128xf32>
    %116 = vector.shape_cast %115 : vector<1x128x128xf32> to vector<128x128xf32>
    %cst_86 = arith.constant dense<0.000000e+00> : vector<16x128xf32>
    %117 = tpu.matmul %114, %116, %cst_86 {dimension_numbers = #tpu.dot_dimension_numbers<[1], [0], [0], [1], [0, 0, 1, 1], [], []>} : vector<16x128xf32>, vector<128x128xf32>, vector<16x128xf32> -> vector<16x128xf32>
    %118 = arith.addf %113, %117 : vector<16x128xf32>
    %119 = vector.extract_strided_slice %61 {offsets = [176, 0], sizes = [16, 128], strides = [1, 1]} : vector<256x128xf32> to vector<16x128xf32>
    %c11 = arith.constant 11 : index
    %c0_87 = arith.constant 0 : index
    %c0_88 = arith.constant 0 : index
    %120 = vector.load %arg10[%c11, %c0_87, %c0_88] : memref<16x128x128xf32, #tpu.memory_space<vmem>>, vector<1x128x128xf32>
    %121 = vector.shape_cast %120 : vector<1x128x128xf32> to vector<128x128xf32>
    %cst_89 = arith.constant dense<0.000000e+00> : vector<16x128xf32>
    %122 = tpu.matmul %119, %121, %cst_89 {dimension_numbers = #tpu.dot_dimension_numbers<[1], [0], [0], [1], [0, 0, 1, 1], [], []>} : vector<16x128xf32>, vector<128x128xf32>, vector<16x128xf32> -> vector<16x128xf32>
    %123 = arith.addf %118, %122 : vector<16x128xf32>
    %124 = vector.extract_strided_slice %61 {offsets = [192, 0], sizes = [16, 128], strides = [1, 1]} : vector<256x128xf32> to vector<16x128xf32>
    %c12 = arith.constant 12 : index
    %c0_90 = arith.constant 0 : index
    %c0_91 = arith.constant 0 : index
    %125 = vector.load %arg10[%c12, %c0_90, %c0_91] : memref<16x128x128xf32, #tpu.memory_space<vmem>>, vector<1x128x128xf32>
    %126 = vector.shape_cast %125 : vector<1x128x128xf32> to vector<128x128xf32>
    %cst_92 = arith.constant dense<0.000000e+00> : vector<16x128xf32>
    %127 = tpu.matmul %124, %126, %cst_92 {dimension_numbers = #tpu.dot_dimension_numbers<[1], [0], [0], [1], [0, 0, 1, 1], [], []>} : vector<16x128xf32>, vector<128x128xf32>, vector<16x128xf32> -> vector<16x128xf32>
    %128 = arith.addf %123, %127 : vector<16x128xf32>
    %129 = vector.extract_strided_slice %61 {offsets = [208, 0], sizes = [16, 128], strides = [1, 1]} : vector<256x128xf32> to vector<16x128xf32>
    %c13 = arith.constant 13 : index
    %c0_93 = arith.constant 0 : index
    %c0_94 = arith.constant 0 : index
    %130 = vector.load %arg10[%c13, %c0_93, %c0_94] : memref<16x128x128xf32, #tpu.memory_space<vmem>>, vector<1x128x128xf32>
    %131 = vector.shape_cast %130 : vector<1x128x128xf32> to vector<128x128xf32>
    %cst_95 = arith.constant dense<0.000000e+00> : vector<16x128xf32>
    %132 = tpu.matmul %129, %131, %cst_95 {dimension_numbers = #tpu.dot_dimension_numbers<[1], [0], [0], [1], [0, 0, 1, 1], [], []>} : vector<16x128xf32>, vector<128x128xf32>, vector<16x128xf32> -> vector<16x128xf32>
    %133 = arith.addf %128, %132 : vector<16x128xf32>
    %134 = vector.extract_strided_slice %61 {offsets = [224, 0], sizes = [16, 128], strides = [1, 1]} : vector<256x128xf32> to vector<16x128xf32>
    %c14 = arith.constant 14 : index
    %c0_96 = arith.constant 0 : index
    %c0_97 = arith.constant 0 : index
    %135 = vector.load %arg10[%c14, %c0_96, %c0_97] : memref<16x128x128xf32, #tpu.memory_space<vmem>>, vector<1x128x128xf32>
    %136 = vector.shape_cast %135 : vector<1x128x128xf32> to vector<128x128xf32>
    %cst_98 = arith.constant dense<0.000000e+00> : vector<16x128xf32>
    %137 = tpu.matmul %134, %136, %cst_98 {dimension_numbers = #tpu.dot_dimension_numbers<[1], [0], [0], [1], [0, 0, 1, 1], [], []>} : vector<16x128xf32>, vector<128x128xf32>, vector<16x128xf32> -> vector<16x128xf32>
    %138 = arith.addf %133, %137 : vector<16x128xf32>
    %139 = vector.extract_strided_slice %61 {offsets = [240, 0], sizes = [16, 128], strides = [1, 1]} : vector<256x128xf32> to vector<16x128xf32>
    %c15 = arith.constant 15 : index
    %c0_99 = arith.constant 0 : index
    %c0_100 = arith.constant 0 : index
    %140 = vector.load %arg10[%c15, %c0_99, %c0_100] : memref<16x128x128xf32, #tpu.memory_space<vmem>>, vector<1x128x128xf32>
    %141 = vector.shape_cast %140 : vector<1x128x128xf32> to vector<128x128xf32>
    %cst_101 = arith.constant dense<0.000000e+00> : vector<16x128xf32>
    %142 = tpu.matmul %139, %141, %cst_101 {dimension_numbers = #tpu.dot_dimension_numbers<[1], [0], [0], [1], [0, 0, 1, 1], [], []>} : vector<16x128xf32>, vector<128x128xf32>, vector<16x128xf32> -> vector<16x128xf32>
    %143 = arith.addf %138, %142 : vector<16x128xf32>
    %cst_102 = arith.constant 2.000000e-01 : f32
    %144 = vector.broadcast %cst_102 : f32 to vector<16x128xf32>
    %145 = arith.mulf %144, %143 : vector<16x128xf32>
    %146 = arith.maximumf %143, %145 : vector<16x128xf32>
    %c0_103 = arith.constant 0 : index
    %c0_104 = arith.constant 0 : index
    %147 = vector.load %arg12[%c0_103, %c0_104] : memref<16x128xf32, #tpu.memory_space<vmem>>, vector<16x128xf32>
    %148 = arith.mulf %146, %147 : vector<16x128xf32>
    %cst_105 = arith.constant dense<0.000000e+00> : vector<16xf32>
    %149 = vector.multi_reduction <add>, %148, %cst_105 [1] : vector<16x128xf32> to vector<16xf32>
    %150 = vector.shape_cast %149 : vector<16xf32> to vector<16x1xf32>
    %cst_106 = arith.constant dense<0.000000e+00> : vector<1xf32>
    %151 = vector.multi_reduction <add>, %150, %cst_106 [0] : vector<16x1xf32> to vector<1xf32>
    %152 = vector.shape_cast %151 : vector<1xf32> to vector<1x1xf32>
    %cst_107 = arith.constant 0.000000e+00 : f32
    %153 = vector.broadcast %cst_107 : f32 to vector<1x1xf32>
    %154 = arith.subf %153, %152 : vector<1x1xf32>
    %155 = math.exp %154 : vector<1x1xf32>
    %cst_108 = arith.constant 1.000000e+00 : f32
    %156 = vector.broadcast %cst_108 : f32 to vector<1x1xf32>
    %157 = arith.addf %156, %155 : vector<1x1xf32>
    %cst_109 = arith.constant 1.000000e+00 : f32
    %158 = vector.broadcast %cst_109 : f32 to vector<1x1xf32>
    %159 = arith.divf %158, %157 : vector<1x1xf32>
    %160 = vector.shape_cast %159 : vector<1x1xf32> to vector<1x1xf32>
    %161 = vector.broadcast %160 : vector<1x1xf32> to vector<8x128xf32>
    %c0_110 = arith.constant 0 : index
    %c0_111 = arith.constant 0 : index
    %162 = vector.load %arg13[%c0_110, %c0_111] : memref<8x128xf32, #tpu.memory_space<vmem>>, vector<8x128xf32>
    tpu.vector_store %arg13[%c0_110, %c0_111], %161 {strides = array<i32>} : memref<8x128xf32, #tpu.memory_space<vmem>>, vector<8x128xf32>,
    return
  }
  func.func @transform_0(%arg0: i32) -> (i32, i32) {
    %c0_i32 = arith.constant 0 : i32
    %c0_i32_0 = arith.constant 0 : i32
    return %arg0, %c0_i32 : i32, i32
  }
  func.func @transform_1(%arg0: i32) -> (i32, i32) {
    %c0_i32 = arith.constant 0 : i32
    %c0_i32_0 = arith.constant 0 : i32
    %c0_i32_1 = arith.constant 0 : i32
    return %c0_i32, %c0_i32_0 : i32, i32
  }
  func.func @transform_2(%arg0: i32) -> (i32, i32) {
    %c0_i32 = arith.constant 0 : i32
    %c0_i32_0 = arith.constant 0 : i32
    %c0_i32_1 = arith.constant 0 : i32
    return %c0_i32, %c0_i32_0 : i32, i32
  }
  func.func @transform_3(%arg0: i32) -> (i32, i32, i32) {
    %c0_i32 = arith.constant 0 : i32
    %c0_i32_0 = arith.constant 0 : i32
    %c0_i32_1 = arith.constant 0 : i32
    %c0_i32_2 = arith.constant 0 : i32
    return %c0_i32, %c0_i32_0, %c0_i32_1 : i32, i32, i32
  }
  func.func @transform_4(%arg0: i32) -> (i32, i32) {
    %c0_i32 = arith.constant 0 : i32
    %c0_i32_0 = arith.constant 0 : i32
    %c0_i32_1 = arith.constant 0 : i32
    return %c0_i32, %c0_i32_0 : i32, i32
  }
  func.func @transform_5(%arg0: i32) -> (i32, i32) {
    %c0_i32 = arith.constant 0 : i32
    %c0_i32_0 = arith.constant 0 : i32
    %c0_i32_1 = arith.constant 0 : i32
    return %c0_i32, %c0_i32_0 : i32, i32
  }
  func.func @transform_6(%arg0: i32) -> (i32, i32, i32) {
    %c0_i32 = arith.constant 0 : i32
    %c0_i32_0 = arith.constant 0 : i32
    %c0_i32_1 = arith.constant 0 : i32
    %c0_i32_2 = arith.constant 0 : i32
    return %c0_i32, %c0_i32_0, %c0_i32_1 : i32, i32, i32
  }
  func.func @transform_7(%arg0: i32) -> (i32, i32) {
    %c0_i32 = arith.constant 0 : i32
    %c0_i32_0 = arith.constant 0 : i32
    %c0_i32_1 = arith.constant 0 : i32
    return %c0_i32, %c0_i32_0 : i32, i32
  }
  func.func @transform_8(%arg0: i32) -> (i32, i32) {
    %c0_i32 = arith.constant 0 : i32
    %c0_i32_0 = arith.constant 0 : i32
    %c0_i32_1 = arith.constant 0 : i32
    return %c0_i32, %c0_i32_0 : i32, i32
  }
  func.func @transform_9(%arg0: i32) -> (i32, i32, i32) {
    %c0_i32 = arith.constant 0 : i32
    %c0_i32_0 = arith.constant 0 : i32
    %c0_i32_1 = arith.constant 0 : i32
    %c0_i32_2 = arith.constant 0 : i32
    return %c0_i32, %c0_i32_0, %c0_i32_1 : i32, i32, i32
  }
  func.func @transform_10(%arg0: i32) -> (i32, i32) {
    %c0_i32 = arith.constant 0 : i32
    %c0_i32_0 = arith.constant 0 : i32
    %c0_i32_1 = arith.constant 0 : i32
    return %c0_i32, %c0_i32_0 : i32, i32
  }
  func.func @transform_11(%arg0: i32) -> (i32, i32) {
    %c0_i32 = arith.constant 0 : i32
    %c0_i32_0 = arith.constant 0 : i32
    %c0_i32_1 = arith.constant 0 : i32
    return %c0_i32, %c0_i32_0 : i32, i32
  }
  func.func @transform_12(%arg0: i32) -> (i32, i32) {
    %c0_i32 = arith.constant 0 : i32
    %c0_i32_0 = arith.constant 0 : i32
    return %arg0, %c0_i32 : i32, i32
  }
}

</mosaic_0001>

<llo_original>
// kernel: discriminator_forward.1
$region0: #{discriminator_forward.1}
  #allocation0 [shape = 'u32[]', space=smem, size = 0x4, offset = 0x4, fixed_abs, tag = 'smem constant byte address 0x4 - core index']
  #allocation1 [shape = 'u32[144,128]{1,0:T(1,128)}', space=vmem, size = 0x12000, scoped, tag = 'internal scratch']
  %s0 = inlined_call_operand.vmem [shape: f32[512,128], index: 0, kind: input, shape index: {}]
  %s1 = inlined_call_operand.vmem [shape: f32[128,64], index: 1, kind: input, shape index: {}]
  %s2 = inlined_call_operand.vmem [shape: f32[512,256], index: 2, kind: input, shape index: {}]
  %s3 = inlined_call_operand.vmem [shape: f32[4,64,128], index: 3, kind: input, shape index: {}]
  %s4 = inlined_call_operand.vmem [shape: f32[1,128], index: 4, kind: input, shape index: {}]
  %s5 = inlined_call_operand.vmem [shape: f32[512,128], index: 5, kind: input, shape index: {}]
  %s6 = inlined_call_operand.vmem [shape: f32[4,128,128], index: 6, kind: input, shape index: {}]
  %s7 = inlined_call_operand.vmem [shape: f32[1,128], index: 7, kind: input, shape index: {}]
  %s8 = inlined_call_operand.hbm [shape: f32[256,128], index: 8, kind: input, shape index: {}]
  %s9 = inlined_call_operand.vmem [shape: f32[16,128,128], index: 9, kind: input, shape index: {}]
  %s10 = inlined_call_operand.vmem [shape: f32[1,128], index: 10, kind: input, shape index: {}]
  %s11 = inlined_call_operand.vmem [shape: f32[16,128], index: 11, kind: input, shape index: {}]
  %s12 = inlined_call_operand.vmem [shape: f32[16,128], index: 12, kind: output, shape index: {}]
  %s13 = sld [smem:[#allocation0]]
  $region85: #{discriminator_forward.1} parent=0
    _
  %s15 = ssub.s32 1, %s13
  %s16 = scalar_select 0, %s15, %s13
  $region1: #{discriminator_forward.1} parent=0
    #allocation2 [shape = 'u8[131072]{0}', space=vmem, size = 0x20000, scoped, tag = 'input window, operand 8, single buffered']
    #allocation3 [shape = 's32[2]{0}', space=sflag, size = 0x8, scoped, tag = 'scoped memory for discriminator_forward.1']
    %17 = vsyncpa [#allocation3], 0
    loop: start=0, step=1, limit=4
    $region2: #{discriminator_forward.1} parent=1 // loop_pre_header
      _
    $region3: #{discriminator_forward.1} parent=1 // loop_header
      %s19 = sphi 0, %s23
      %p20 = scmp.ge.s32.totalorder %s19, 4
      %s29 = sphi 0, %s31
      %s32 = sphi 0, %s29
      %s33 = sphi 0, %s32
      %s49 = sphi 0, %s33
      %s53 = sphi 0, %s53
      %s55 = sphi 0, %s53
      %s56 = sphi 0, %s55
      %s70 = sphi 0, %s56
      %s74 = sphi 0, %s74
      %s76 = sphi 0, %s74
      %s77 = sphi 0, %s76
      %s91 = sphi 0, %s77
      %s95 = sphi 0, %s95
      %s97 = sphi 0, %s95
      %s98 = sphi 0, %s97
      %s112 = sphi 0, %s98
      %s116 = sphi 0, %s116
      %s118 = sphi 0, %s116
      %s119 = sphi 0, %s118
      %s133 = sphi 0, %s119
      %s137 = sphi 0, %s137
      %s139 = sphi 0, %s137
      %s140 = sphi 0, %s139
      %s154 = sphi 0, %s140
      %s158 = sphi 0, %s158
      %s160 = sphi 0, %s158
      %s161 = sphi 0, %s160
      %s175 = sphi 0, %s161
      %s179 = sphi 0, %s179
      %s181 = sphi 0, %s179
      %s182 = sphi 0, %s181
      %s196 = sphi 0, %s182
      %s200 = sphi 0, %s200
      %s202 = sphi 0, %s200
      %s203 = sphi 0, %s202
      %s217 = sphi 0, %s203
      %s221 = sphi 0, %s221
      %s223 = sphi 0, %s221
      %s224 = sphi 0, %s223
      %s238 = sphi 0, %s224
      %s242 = sphi 0, %s242
      %s244 = sphi 0, %s242
      %s245 = sphi 0, %s244
      %s259 = sphi 0, %s245
      %s263 = sphi 0, %s263
      %s265 = sphi 0, %s263
      %s266 = sphi 0, %s265
      %s280 = sphi 0, %s266
      %s286 = sphi 0, %s288
      %s289 = sphi 0, %s286
      %s290 = sphi 0, %s289
      %s306 = sphi 0, %s290
    $region4: #{discriminator_forward.1} parent=1 // loop_header_branch
      %22 = sbr.rel (%p20) target = $region8
    $region5: #{discriminator_forward.1} parent=1 // loop_body
      %s24 = ssub.s32 %s19, 1
      %s25 = ssub.s32 %s19, 2
      %s26 = sadd.s32 %s19, 1
      %s27 = ssub.s32 %s19, %s26
      %p28 = scmp.eq.s32.totalorder %s27, 0
      %s30 = sadd.s32 %s29, 1
      %s31 = scalar_select %p28, %s29, %s30
      %p34 = pneg %p28
      %p35 = scmp.eq.s32.totalorder %s19, 1
      %p36 = por %p34, %p35
      %p37 = scmp.ne.s32.totalorder %s29, %s32
      %p38 = scmp.eq.s32.totalorder %s19, 0
      %p39 = por %p37, %p38
      %p40 = scmp.ne.s32.totalorder %s29, %s32
      %p41 = scmp.eq.s32.totalorder %s24, 1
      %p42 = por %p40, %p41
      %p43 = scmp.ne.s32.totalorder %s32, %s33
      %p44 = scmp.eq.s32.totalorder %s24, 0
      %p45 = por %p43, %p44
      %p46 = scmp.ne.s32.totalorder %s32, %s33
      %p47 = scmp.eq.s32.totalorder %s25, 1
      %p48 = por %p46, %p47
      %p50 = scmp.ne.s32.totalorder %s33, %s49
      %p51 = scmp.eq.s32.totalorder %s25, 0
      %p52 = por %p50, %p51
      %s54 = sadd.s32 %s53, 1
      %p57 = scmp.eq.s32.totalorder %s19, 1
      %p58 = scmp.ne.s32.totalorder %s53, %s55
      %p59 = scmp.eq.s32.totalorder %s19, 0
      %p60 = por %p58, %p59
      %p61 = scmp.ne.s32.totalorder %s53, %s55
      %p62 = scmp.eq.s32.totalorder %s24, 1
      %p63 = por %p61, %p62
      %p64 = scmp.ne.s32.totalorder %s55, %s56
      %p65 = scmp.eq.s32.totalorder %s24, 0
      %p66 = por %p64, %p65
      %p67 = scmp.ne.s32.totalorder %s55, %s56
      %p68 = scmp.eq.s32.totalorder %s25, 1
      %p69 = por %p67, %p68
      %p71 = scmp.ne.s32.totalorder %s56, %s70
      %p72 = scmp.eq.s32.totalorder %s25, 0
      %p73 = por %p71, %p72
      %s75 = sadd.s32 %s74, 1
      %p78 = scmp.eq.s32.totalorder %s19, 1
      %p79 = scmp.ne.s32.totalorder %s74, %s76
      %p80 = scmp.eq.s32.totalorder %s19, 0
      %p81 = por %p79, %p80
      %p82 = scmp.ne.s32.totalorder %s74, %s76
      %p83 = scmp.eq.s32.totalorder %s24, 1
      %p84 = por %p82, %p83
      %p85 = scmp.ne.s32.totalorder %s76, %s77
      %p86 = scmp.eq.s32.totalorder %s24, 0
      %p87 = por %p85, %p86
      %p88 = scmp.ne.s32.totalorder %s76, %s77
      %p89 = scmp.eq.s32.totalorder %s25, 1
      %p90 = por %p88, %p89
      %p92 = scmp.ne.s32.totalorder %s77, %s91
      %p93 = scmp.eq.s32.totalorder %s25, 0
      %p94 = por %p92, %p93
      %s96 = sadd.s32 %s95, 1
      %p99 = scmp.eq.s32.totalorder %s19, 1
      %p100 = scmp.ne.s32.totalorder %s95, %s97
      %p101 = scmp.eq.s32.totalorder %s19, 0
      %p102 = por %p100, %p101
      %p103 = scmp.ne.s32.totalorder %s95, %s97
      %p104 = scmp.eq.s32.totalorder %s24, 1
      %p105 = por %p103, %p104
      %p106 = scmp.ne.s32.totalorder %s97, %s98
      %p107 = scmp.eq.s32.totalorder %s24, 0
      %p108 = por %p106, %p107
      %p109 = scmp.ne.s32.totalorder %s97, %s98
      %p110 = scmp.eq.s32.totalorder %s25, 1
      %p111 = por %p109, %p110
      %p113 = scmp.ne.s32.totalorder %s98, %s112
      %p114 = scmp.eq.s32.totalorder %s25, 0
      %p115 = por %p113, %p114
      %s117 = sadd.s32 %s116, 1
      %p120 = scmp.eq.s32.totalorder %s19, 1
      %p121 = scmp.ne.s32.totalorder %s116, %s118
      %p122 = scmp.eq.s32.totalorder %s19, 0
      %p123 = por %p121, %p122
      %p124 = scmp.ne.s32.totalorder %s116, %s118
      %p125 = scmp.eq.s32.totalorder %s24, 1
      %p126 = por %p124, %p125
      %p127 = scmp.ne.s32.totalorder %s118, %s119
      %p128 = scmp.eq.s32.totalorder %s24, 0
      %p129 = por %p127, %p128
      %p130 = scmp.ne.s32.totalorder %s118, %s119
      %p131 = scmp.eq.s32.totalorder %s25, 1
      %p132 = por %p130, %p131
      %p134 = scmp.ne.s32.totalorder %s119, %s133
      %p135 = scmp.eq.s32.totalorder %s25, 0
      %p136 = por %p134, %p135
      %s138 = sadd.s32 %s137, 1
      %p141 = scmp.eq.s32.totalorder %s19, 1
      %p142 = scmp.ne.s32.totalorder %s137, %s139
      %p143 = scmp.eq.s32.totalorder %s19, 0
      %p144 = por %p142, %p143
      %p145 = scmp.ne.s32.totalorder %s137, %s139
      %p146 = scmp.eq.s32.totalorder %s24, 1
      %p147 = por %p145, %p146
      %p148 = scmp.ne.s32.totalorder %s139, %s140
      %p149 = scmp.eq.s32.totalorder %s24, 0
      %p150 = por %p148, %p149
      %p151 = scmp.ne.s32.totalorder %s139, %s140
      %p152 = scmp.eq.s32.totalorder %s25, 1
      %p153 = por %p151, %p152
      %p155 = scmp.ne.s32.totalorder %s140, %s154
      %p156 = scmp.eq.s32.totalorder %s25, 0
      %p157 = por %p155, %p156
      %s159 = sadd.s32 %s158, 1
      %p162 = scmp.eq.s32.totalorder %s19, 1
      %p163 = scmp.ne.s32.totalorder %s158, %s160
      %p164 = scmp.eq.s32.totalorder %s19, 0
      %p165 = por %p163, %p164
      %p166 = scmp.ne.s32.totalorder %s158, %s160
      %p167 = scmp.eq.s32.totalorder %s24, 1
      %p168 = por %p166, %p167
      %p169 = scmp.ne.s32.totalorder %s160, %s161
      %p170 = scmp.eq.s32.totalorder %s24, 0
      %p171 = por %p169, %p170
      %p172 = scmp.ne.s32.totalorder %s160, %s161
      %p173 = scmp.eq.s32.totalorder %s25, 1
      %p174 = por %p172, %p173
      %p176 = scmp.ne.s32.totalorder %s161, %s175
      %p177 = scmp.eq.s32.totalorder %s25, 0
      %p178 = por %p176, %p177
      %s180 = sadd.s32 %s179, 1
      %p183 = scmp.eq.s32.totalorder %s19, 1
      %p184 = scmp.ne.s32.totalorder %s179, %s181
      %p185 = scmp.eq.s32.totalorder %s19, 0
      %p186 = por %p184, %p185
      %p187 = scmp.ne.s32.totalorder %s179, %s181
      %p188 = scmp.eq.s32.totalorder %s24, 1
      %p189 = por %p187, %p188
      %p190 = scmp.ne.s32.totalorder %s181, %s182
      %p191 = scmp.eq.s32.totalorder %s24, 0
      %p192 = por %p190, %p191
      %p193 = scmp.ne.s32.totalorder %s181, %s182
      %p194 = scmp.eq.s32.totalorder %s25, 1
      %p195 = por %p193, %p194
      %p197 = scmp.ne.s32.totalorder %s182, %s196
      %p198 = scmp.eq.s32.totalorder %s25, 0
      %p199 = por %p197, %p198
      %s201 = sadd.s32 %s200, 1
      %p204 = scmp.eq.s32.totalorder %s19, 1
      %p205 = scmp.ne.s32.totalorder %s200, %s202
      %p206 = scmp.eq.s32.totalorder %s19, 0
      %p207 = por %p205, %p206
      %p208 = scmp.ne.s32.totalorder %s200, %s202
      %p209 = scmp.eq.s32.totalorder %s24, 1
      %p210 = por %p208, %p209
      %p211 = scmp.ne.s32.totalorder %s202, %s203
      %p212 = scmp.eq.s32.totalorder %s24, 0
      %p213 = por %p211, %p212
      %p214 = scmp.ne.s32.totalorder %s202, %s203
      %p215 = scmp.eq.s32.totalorder %s25, 1
      %p216 = por %p214, %p215
      %p218 = scmp.ne.s32.totalorder %s203, %s217
      %p219 = scmp.eq.s32.totalorder %s25, 0
      %p220 = por %p218, %p219
      %s222 = sadd.s32 %s221, 1
      %p225 = scmp.eq.s32.totalorder %s19, 1
      %p226 = scmp.ne.s32.totalorder %s221, %s223
      %p227 = scmp.eq.s32.totalorder %s19, 0
      %p228 = por %p226, %p227
      %p229 = scmp.ne.s32.totalorder %s221, %s223
      %p230 = scmp.eq.s32.totalorder %s24, 1
      %p231 = por %p229, %p230
      %p232 = scmp.ne.s32.totalorder %s223, %s224
      %p233 = scmp.eq.s32.totalorder %s24, 0
      %p234 = por %p232, %p233
      %p235 = scmp.ne.s32.totalorder %s223, %s224
      %p236 = scmp.eq.s32.totalorder %s25, 1
      %p237 = por %p235, %p236
      %p239 = scmp.ne.s32.totalorder %s224, %s238
      %p240 = scmp.eq.s32.totalorder %s25, 0
      %p241 = por %p239, %p240
      %s243 = sadd.s32 %s242, 1
      %p246 = scmp.eq.s32.totalorder %s19, 1
      %p247 = scmp.ne.s32.totalorder %s242, %s244
      %p248 = scmp.eq.s32.totalorder %s19, 0
      %p249 = por %p247, %p248
      %p250 = scmp.ne.s32.totalorder %s242, %s244
      %p251 = scmp.eq.s32.totalorder %s24, 1
      %p252 = por %p250, %p251
      %p253 = scmp.ne.s32.totalorder %s244, %s245
      %p254 = scmp.eq.s32.totalorder %s24, 0
      %p255 = por %p253, %p254
      %p256 = scmp.ne.s32.totalorder %s244, %s245
      %p257 = scmp.eq.s32.totalorder %s25, 1
      %p258 = por %p256, %p257
      %p260 = scmp.ne.s32.totalorder %s245, %s259
      %p261 = scmp.eq.s32.totalorder %s25, 0
      %p262 = por %p260, %p261
      %s264 = sadd.s32 %s263, 1
      %p267 = scmp.eq.s32.totalorder %s19, 1
      %p268 = scmp.ne.s32.totalorder %s263, %s265
      %p269 = scmp.eq.s32.totalorder %s19, 0
      %p270 = por %p268, %p269
      %p271 = scmp.ne.s32.totalorder %s263, %s265
      %p272 = scmp.eq.s32.totalorder %s24, 1
      %p273 = por %p271, %p272
      %p274 = scmp.ne.s32.totalorder %s265, %s266
      %p275 = scmp.eq.s32.totalorder %s24, 0
      %p276 = por %p274, %p275
      %p277 = scmp.ne.s32.totalorder %s265, %s266
      %p278 = scmp.eq.s32.totalorder %s25, 1
      %p279 = por %p277, %p278
      %p281 = scmp.ne.s32.totalorder %s266, %s280
      %p282 = scmp.eq.s32.totalorder %s25, 0
      %p283 = por %p281, %p282
      %s284 = ssub.s32 %s19, %s26
      %p285 = scmp.eq.s32.totalorder %s284, 0
      %s287 = sadd.s32 %s286, 1
      %s288 = scalar_select %p285, %s286, %s287
      %p291 = pneg %p285
      %p292 = scmp.eq.s32.totalorder %s19, 1
      %p293 = por %p291, %p292
      %p294 = scmp.ne.s32.totalorder %s286, %s289
      %p295 = scmp.eq.s32.totalorder %s19, 0
      %p296 = por %p294, %p295
      %p297 = scmp.ne.s32.totalorder %s286, %s289
      %p298 = scmp.eq.s32.totalorder %s24, 1
      %p299 = por %p297, %p298
      %p300 = scmp.ne.s32.totalorder %s289, %s290
      %p301 = scmp.eq.s32.totalorder %s24, 0
      %p302 = por %p300, %p301
      %p303 = scmp.ne.s32.totalorder %s289, %s290
      %p304 = scmp.eq.s32.totalorder %s25, 1
      %p305 = por %p303, %p304
      %p307 = scmp.ne.s32.totalorder %s290, %s306
      %p308 = scmp.eq.s32.totalorder %s25, 0
      %p309 = por %p307, %p308
      %p310 = scmp.le.s32.totalorder 1, %s19
      %p311 = scmp.lt.s32.totalorder %s19, 3
      %p312 = pnand %p310, %p311
      %p313 = pneg %p312
      // Predicated region
      $region9: #{discriminator_forward.1} parent=5 // pred_check
        _
      $region10: #{discriminator_forward.1} parent=5 // pred_check_branch
        %315 = sbr.rel (%p312) target = $region12
      $region11: #{discriminator_forward.1} parent=5 // pred_region
        %s316 = ssub.s32 %s19, 1
        // Predicated region
        $region13: #{discriminator_forward.1} parent=11 // pred_check
          %p317 = pneg %p66
        $region14: #{discriminator_forward.1} parent=11 // pred_check_branch
          %319 = sbr.rel (%p317) target = $region16
        $region15: #{discriminator_forward.1} parent=11 // pred_region
          _
        $region16: #{discriminator_forward.1} parent=11 // pred_fallthru
          _
        // Predicated region
        $region17: #{discriminator_forward.1} parent=11 // pred_check
          %p320 = pneg %p87
        $region18: #{discriminator_forward.1} parent=11 // pred_check_branch
          %322 = sbr.rel (%p320) target = $region20
        $region19: #{discriminator_forward.1} parent=11 // pred_region
          _
        $region20: #{discriminator_forward.1} parent=11 // pred_fallthru
          _
        // Predicated region
        $region21: #{discriminator_forward.1} parent=11 // pred_check
          %p323 = pneg %p108
        $region22: #{discriminator_forward.1} parent=11 // pred_check_branch
          %325 = sbr.rel (%p323) target = $region24
        $region23: #{discriminator_forward.1} parent=11 // pred_region
          _
        $region24: #{discriminator_forward.1} parent=11 // pred_fallthru
          _
        // Predicated region
        $region25: #{discriminator_forward.1} parent=11 // pred_check
          %p326 = pneg %p129
        $region26: #{discriminator_forward.1} parent=11 // pred_check_branch
          %328 = sbr.rel (%p326) target = $region28
        $region27: #{discriminator_forward.1} parent=11 // pred_region
          _
        $region28: #{discriminator_forward.1} parent=11 // pred_fallthru
          _
        // Predicated region
        $region29: #{discriminator_forward.1} parent=11 // pred_check
          %p329 = pneg %p150
        $region30: #{discriminator_forward.1} parent=11 // pred_check_branch
          %331 = sbr.rel (%p329) target = $region32
        $region31: #{discriminator_forward.1} parent=11 // pred_region
          _
        $region32: #{discriminator_forward.1} parent=11 // pred_fallthru
          _
        // Predicated region
        $region33: #{discriminator_forward.1} parent=11 // pred_check
          %p332 = pneg %p171
        $region34: #{discriminator_forward.1} parent=11 // pred_check_branch
          %334 = sbr.rel (%p332) target = $region36
        $region35: #{discriminator_forward.1} parent=11 // pred_region
          _
        $region36: #{discriminator_forward.1} parent=11 // pred_fallthru
          _
        // Predicated region
        $region37: #{discriminator_forward.1} parent=11 // pred_check
          %p335 = pneg %p192
        $region38: #{discriminator_forward.1} parent=11 // pred_check_branch
          %337 = sbr.rel (%p335) target = $region40
        $region39: #{discriminator_forward.1} parent=11 // pred_region
          _
        $region40: #{discriminator_forward.1} parent=11 // pred_fallthru
          _
        // Predicated region
        $region41: #{discriminator_forward.1} parent=11 // pred_check
          %p338 = pneg %p213
        $region42: #{discriminator_forward.1} parent=11 // pred_check_branch
          %340 = sbr.rel (%p338) target = $region44
        $region43: #{discriminator_forward.1} parent=11 // pred_region
          %s342 = ssub.s32 4096, 4096
          %343 = vsyncadd [#allocation3], %s342
          %s344 = sshll.u32 [#allocation2], 4
          %s345 = int_to_ptr.vmem [resolvable:$true] %s344
          %350 = dma.hbm_to_vmem [thread:$0]  %s8, 4096, %s345, [#allocation3], 128, 128, 8
        $region44: #{discriminator_forward.1} parent=11 // pred_fallthru
          _
        // Predicated region
        $region45: #{discriminator_forward.1} parent=11 // pred_check
          %p351 = pneg %p234
        $region46: #{discriminator_forward.1} parent=11 // pred_check_branch
          %353 = sbr.rel (%p351) target = $region48
        $region47: #{discriminator_forward.1} parent=11 // pred_region
          _
        $region48: #{discriminator_forward.1} parent=11 // pred_fallthru
          _
        // Predicated region
        $region49: #{discriminator_forward.1} parent=11 // pred_check
          %p354 = pneg %p255
        $region50: #{discriminator_forward.1} parent=11 // pred_check_branch
          %356 = sbr.rel (%p354) target = $region52
        $region51: #{discriminator_forward.1} parent=11 // pred_region
          _
        $region52: #{discriminator_forward.1} parent=11 // pred_fallthru
          _
        // Predicated region
        $region53: #{discriminator_forward.1} parent=11 // pred_check
          %p357 = pneg %p276
        $region54: #{discriminator_forward.1} parent=11 // pred_check_branch
          %359 = sbr.rel (%p357) target = $region56
        $region55: #{discriminator_forward.1} parent=11 // pred_region
          _
        $region56: #{discriminator_forward.1} parent=11 // pred_fallthru
          _
      $region12: #{discriminator_forward.1} parent=5 // pred_fallthru
        _
      %p360 = scmp.lt.s32.totalorder %s19, 2
      // Predicated region
      $region57: #{discriminator_forward.1} parent=5 // pred_check
        %p361 = pneg %p360
      $region58: #{discriminator_forward.1} parent=5 // pred_check_branch
        %363 = sbr.rel (%p361) target = $region60
      $region59: #{discriminator_forward.1} parent=5 // pred_region
        // Predicated region
        $region61: #{discriminator_forward.1} parent=59 // pred_check
          %p364 = pneg %p39
        $region62: #{discriminator_forward.1} parent=59 // pred_check_branch
          %366 = sbr.rel (%p364) target = $region64
        $region63: #{discriminator_forward.1} parent=59 // pred_region
          %s367 = smul.u32 32, %s19
          %p368 = scmp.lt.s32.totalorder %s367, 63
          %s369 = scalar_select %p368, %s367, 63
          %s370 = smul.addr %s369, 8
          %s371 = scalar_lea.vmem %s0, %s370
          %s372 = smul.u32 32, %s19
        $region64: #{discriminator_forward.1} parent=59 // pred_fallthru
          _
      $region60: #{discriminator_forward.1} parent=5 // pred_fallthru
        _
      %p373 = scmp.le.s32.totalorder 1, %s19
      %p374 = scmp.lt.s32.totalorder %s19, 3
      %p375 = pnand %p373, %p374
      %p376 = pneg %p375
      // Predicated region
      $region65: #{discriminator_forward.1} parent=5 // pred_check
        _
      $region66: #{discriminator_forward.1} parent=5 // pred_check_branch
        %378 = sbr.rel (%p375) target = $region68
      $region67: #{discriminator_forward.1} parent=5 // pred_region
        %s379 = ssub.s32 %s19, 1
        // Predicated region
        $region69: #{discriminator_forward.1} parent=67 // pred_check
          %p380 = pneg %p213
        $region70: #{discriminator_forward.1} parent=67 // pred_check_branch
          %382 = sbr.rel (%p380) target = $region72
        $region71: #{discriminator_forward.1} parent=67 // pred_region
          %383 = dma.done [#allocation3], 4096
        $region72: #{discriminator_forward.1} parent=67 // pred_fallthru
          _
        %s384 = smul.u32 32, %s24
        %p385 = scmp.lt.s32.totalorder %s384, 63
        %s386 = scalar_select %p385, %s384, 63
        %s387 = smul.addr %s386, 8
        %s388 = scalar_lea.vmem %s0, %s387
        %p389 = pneg %p45
        %p390 = pneg %p42
        %p391 = pneg %p66
        %p392 = pneg %p63
        %p393 = pneg %p87
        %p394 = pneg %p84
        %p395 = pneg %p108
        %p396 = pneg %p105
        %p397 = pneg %p129
        %p398 = pneg %p126
        %p399 = pneg %p150
        %p400 = pneg %p147
        %p401 = pneg %p171
        %p402 = pneg %p168
        %p403 = pneg %p192
        %p404 = pneg %p189
        %p405 = pneg %p213
        %p406 = pneg %p210
        %p407 = pneg %p234
        %p408 = pneg %p231
        %p409 = pneg %p255
        %p410 = pneg %p252
        %p411 = pneg %p276
        %p412 = pneg %p273
        %p413 = pneg %p302
        %p414 = pneg %p299
        %p415 = scmp.lt.s32.totalorder %s24, 1
        %s416 = scalar_select %p415, %s24, 1
        %s417 = smul.addr %s416, 8
        %s418 = scalar_lea.vmem %s12, %s417
        %s419 = smul.u32 32, %s24
        %p420 = scmp.lt.s32.totalorder %s419, 63
        %s421 = scalar_select %p420, %s419, 63
        %s422 = smul.addr %s421, 8
        %s423 = scalar_lea.vmem %s0, %s422
        %s424 = smul.u32 32, %s24
        %p425 = scmp.lt.s32.totalorder %s24, 1
        %s426 = scalar_select %p425, %s24, 1
        %s427 = smul.addr %s426, 8
        %s428 = scalar_lea.vmem %s12, %s427
        %v429 = vld [vmem:[%s423] sm:$0xff]
        %v430 = vld [vmem:[%s423 + $0x8] sm:$0xff]
        %v431 = vld [vmem:[%s423 + $0x10] sm:$0xff]
        %v432 = vld [vmem:[%s423 + $0x18] sm:$0xff]
        %v433 = vld [vmem:[%s423 + $0x20] sm:$0xff]
        %v434 = vld [vmem:[%s423 + $0x28] sm:$0xff]
        %v435 = vld [vmem:[%s423 + $0x30] sm:$0xff]
        %v436 = vld [vmem:[%s423 + $0x38] sm:$0xff]
        %v437 = vld [vmem:[%s423 + $0x40] sm:$0xff]
        %v438 = vld [vmem:[%s423 + $0x48] sm:$0xff]
        %v439 = vld [vmem:[%s423 + $0x50] sm:$0xff]
        %v440 = vld [vmem:[%s423 + $0x58] sm:$0xff]
        %v441 = vld [vmem:[%s423 + $0x60] sm:$0xff]
        %v442 = vld [vmem:[%s423 + $0x68] sm:$0xff]
        %v443 = vld [vmem:[%s423 + $0x70] sm:$0xff]
        %v444 = vld [vmem:[%s423 + $0x78] sm:$0xff]
        %v445 = vld [vmem:[%s423 + $0x80] sm:$0xff]
        %v446 = vld [vmem:[%s423 + $0x88] sm:$0xff]
        %v447 = vld [vmem:[%s423 + $0x90] sm:$0xff]
        %v448 = vld [vmem:[%s423 + $0x98] sm:$0xff]
        %v449 = vld [vmem:[%s423 + $0xa0] sm:$0xff]
        %v450 = vld [vmem:[%s423 + $0xa8] sm:$0xff]
        %v451 = vld [vmem:[%s423 + $0xb0] sm:$0xff]
        %v452 = vld [vmem:[%s423 + $0xb8] sm:$0xff]
        %v453 = vld [vmem:[%s423 + $0xc0] sm:$0xff]
        %v454 = vld [vmem:[%s423 + $0xc8] sm:$0xff]
        %v455 = vld [vmem:[%s423 + $0xd0] sm:$0xff]
        %v456 = vld [vmem:[%s423 + $0xd8] sm:$0xff]
        %v457 = vld [vmem:[%s423 + $0xe0] sm:$0xff]
        %v458 = vld [vmem:[%s423 + $0xe8] sm:$0xff]
        %v459 = vld [vmem:[%s423 + $0xf0] sm:$0xff]
        %v460 = vld [vmem:[%s423 + $0xf8] sm:$0xff]
        %v461 = vld [vmem:[%s1] sm:$0xff]
        %v462 = vld [vmem:[%s1 + $0x8] sm:$0xff]
        %v463 = vld [vmem:[%s1 + $0x10] sm:$0xff]
        %v464 = vld [vmem:[%s1 + $0x18] sm:$0xff]
        %v465 = vld [vmem:[%s1 + $0x20] sm:$0xff]
        %v466 = vld [vmem:[%s1 + $0x28] sm:$0xff]
        %v467 = vld [vmem:[%s1 + $0x30] sm:$0xff]
        %v468 = vld [vmem:[%s1 + $0x38] sm:$0xff]
        %v469 = vld [vmem:[%s1 + $0x40] sm:$0xff]
        %v470 = vld [vmem:[%s1 + $0x48] sm:$0xff]
        %v471 = vld [vmem:[%s1 + $0x50] sm:$0xff]
        %v472 = vld [vmem:[%s1 + $0x58] sm:$0xff]
        %v473 = vld [vmem:[%s1 + $0x60] sm:$0xff]
        %v474 = vld [vmem:[%s1 + $0x68] sm:$0xff]
        %v475 = vld [vmem:[%s1 + $0x70] sm:$0xff]
        %v476 = vld [vmem:[%s1 + $0x78] sm:$0xff]
        %477 = vmatprep.subr.mxu0 0.0
        %478 = vmatpush1.msra.mxu0 %v461
        %479 = vmatprep.subr.mxu0 0.0
        %480 = vmatpush1.msra.mxu0 %v462
        %481 = vmatprep.subr.mxu0 0.0
        %482 = vmatpush1.msra.mxu0 %v463
        %483 = vmatprep.subr.mxu0 0.0
        %484 = vmatpush1.msra.mxu0 %v464
        %485 = vmatprep.subr.mxu0 0.0
        %486 = vmatpush1.msra.mxu0 %v465
        %487 = vmatprep.subr.mxu0 0.0
        %488 = vmatpush1.msra.mxu0 %v466
        %489 = vmatprep.subr.mxu0 0.0
        %490 = vmatpush1.msra.mxu0 %v467
        %491 = vmatprep.subr.mxu0 0.0
        %492 = vmatpush1.msra.mxu0 %v468
        %493 = vmatprep.subr.mxu0 0.0
        %494 = vmatpush1.msra.mxu0 %v469
        %495 = vmatprep.subr.mxu0 0.0
        %496 = vmatpush1.msra.mxu0 %v470
        %497 = vmatprep.subr.mxu0 0.0
        %498 = vmatpush1.msra.mxu0 %v471
        %499 = vmatprep.subr.mxu0 0.0
        %500 = vmatpush1.msra.mxu0 %v472
        %501 = vmatprep.subr.mxu0 0.0
        %502 = vmatpush1.msra.mxu0 %v473
        %503 = vmatprep.subr.mxu0 0.0
        %504 = vmatpush1.msra.mxu0 %v474
        %505 = vmatprep.subr.mxu0 0.0
        %506 = vmatpush1.msra.mxu0 %v475
        %507 = vmatprep.subr.mxu0 0.0
        %508 = vmatpush1.msra.mxu0 %v476
        %509 = vmatprep.subr.mxu0 0.0
        %510 = vmatpush1.msra.mxu0 0.0
        %511 = vmatprep.subr.mxu0 0.0
        %512 = vmatpush1.msra.mxu0 0.0
        %513 = vmatprep.subr.mxu0 0.0
        %514 = vmatpush1.msra.mxu0 0.0
        %515 = vmatprep.subr.mxu0 0.0
        %516 = vmatpush1.msra.mxu0 0.0
        %517 = vmatprep.subr.mxu0 0.0
        %518 = vmatpush1.msra.mxu0 0.0
        %519 = vmatprep.subr.mxu0 0.0
        %520 = vmatpush1.msra.mxu0 0.0
        %521 = vmatprep.subr.mxu0 0.0
        %522 = vmatpush1.msra.mxu0 0.0
        %523 = vmatprep.subr.mxu0 0.0
        %524 = vmatpush1.msra.mxu0 0.0
        %525 = vmatprep.subr.mxu0 0.0
        %526 = vmatpush1.msra.mxu0 0.0
        %527 = vmatprep.subr.mxu0 0.0
        %528 = vmatpush1.msra.mxu0 0.0
        %529 = vmatprep.subr.mxu0 0.0
        %530 = vmatpush1.msra.mxu0 0.0
        %531 = vmatprep.subr.mxu0 0.0
        %532 = vmatpush1.msra.mxu0 0.0
        %533 = vmatprep.subr.mxu0 0.0
        %534 = vmatpush1.msra.mxu0 0.0
        %535 = vmatprep.subr.mxu0 0.0
        %536 = vmatpush1.msra.mxu0 0.0
        %537 = vmatprep.subr.mxu0 0.0
        %538 = vmatpush1.msra.mxu0 0.0
        %539 = vmatprep.subr.mxu0 0.0
        %540 = vmatpush1.msra.mxu0 0.0
        %541 = vmatprep.mubr.f32.mxu0 0.0
        %542 = vmatmul.mubr.f32.gmra.mrb[0].mxu0 %v429
        %v543 = vpop.f32.mrb[0].mxu0
        %v544 = vadd.f32 0.0, %v543
        %v545 = vpop.f32.mrb[0].mxu0
        %546 = vmatprep.mubr.f32.mxu0 0.0
        %547 = vmatmul.mubr.f32.gmra.mrb[0].mxu0 %v430
        %v548 = vpop.f32.mrb[0].mxu0
        %v549 = vadd.f32 0.0, %v548
        %v550 = vpop.f32.mrb[0].mxu0
        %551 = vmatprep.mubr.f32.mxu0 0.0
        %552 = vmatmul.mubr.f32.gmra.mrb[0].mxu0 %v431
        %v553 = vpop.f32.mrb[0].mxu0
        %v554 = vadd.f32 0.0, %v553
        %v555 = vpop.f32.mrb[0].mxu0
        %556 = vmatprep.mubr.f32.mxu0 0.0
        %557 = vmatmul.mubr.f32.gmra.mrb[0].mxu0 %v432
        %v558 = vpop.f32.mrb[0].mxu0
        %v559 = vadd.f32 0.0, %v558
        %v560 = vpop.f32.mrb[0].mxu0
        %561 = vmatprep.mubr.f32.mxu0 0.0
        %562 = vmatmul.mubr.f32.gmra.mrb[0].mxu0 %v433
        %v563 = vpop.f32.mrb[0].mxu0
        %v564 = vadd.f32 0.0, %v563
        %v565 = vpop.f32.mrb[0].mxu0
        %566 = vmatprep.mubr.f32.mxu0 0.0
        %567 = vmatmul.mubr.f32.gmra.mrb[0].mxu0 %v434
        %v568 = vpop.f32.mrb[0].mxu0
        %v569 = vadd.f32 0.0, %v568
        %v570 = vpop.f32.mrb[0].mxu0
        %571 = vmatprep.mubr.f32.mxu0 0.0
        %572 = vmatmul.mubr.f32.gmra.mrb[0].mxu0 %v435
        %v573 = vpop.f32.mrb[0].mxu0
        %v574 = vadd.f32 0.0, %v573
        %v575 = vpop.f32.mrb[0].mxu0
        %576 = vmatprep.mubr.f32.mxu0 0.0
        %577 = vmatmul.mubr.f32.gmra.mrb[0].mxu0 %v436
        %v578 = vpop.f32.mrb[0].mxu0
        %v579 = vadd.f32 0.0, %v578
        %v580 = vpop.f32.mrb[0].mxu0
        %581 = vmatprep.mubr.f32.mxu0 0.0
        %582 = vmatmul.mubr.f32.gmra.mrb[0].mxu0 %v437
        %v583 = vpop.f32.mrb[0].mxu0
        %v584 = vadd.f32 0.0, %v583
        %v585 = vpop.f32.mrb[0].mxu0
        %586 = vmatprep.mubr.f32.mxu0 0.0
        %587 = vmatmul.mubr.f32.gmra.mrb[0].mxu0 %v438
        %v588 = vpop.f32.mrb[0].mxu0
        %v589 = vadd.f32 0.0, %v588
        %v590 = vpop.f32.mrb[0].mxu0
        %591 = vmatprep.mubr.f32.mxu0 0.0
        %592 = vmatmul.mubr.f32.gmra.mrb[0].mxu0 %v439
        %v593 = vpop.f32.mrb[0].mxu0
        %v594 = vadd.f32 0.0, %v593
        %v595 = vpop.f32.mrb[0].mxu0
        %596 = vmatprep.mubr.f32.mxu0 0.0
        %597 = vmatmul.mubr.f32.gmra.mrb[0].mxu0 %v440
        %v598 = vpop.f32.mrb[0].mxu0
        %v599 = vadd.f32 0.0, %v598
        %v600 = vpop.f32.mrb[0].mxu0
        %601 = vmatprep.mubr.f32.mxu0 0.0
        %602 = vmatmul.mubr.f32.gmra.mrb[0].mxu0 %v441
        %v603 = vpop.f32.mrb[0].mxu0
        %v604 = vadd.f32 0.0, %v603
        %v605 = vpop.f32.mrb[0].mxu0
        %606 = vmatprep.mubr.f32.mxu0 0.0
        %607 = vmatmul.mubr.f32.gmra.mrb[0].mxu0 %v442
        %v608 = vpop.f32.mrb[0].mxu0
        %v609 = vadd.f32 0.0, %v608
        %v610 = vpop.f32.mrb[0].mxu0
        %611 = vmatprep.mubr.f32.mxu0 0.0
        %612 = vmatmul.mubr.f32.gmra.mrb[0].mxu0 %v443
        %v613 = vpop.f32.mrb[0].mxu0
        %v614 = vadd.f32 0.0, %v613
        %v615 = vpop.f32.mrb[0].mxu0
        %616 = vmatprep.mubr.f32.mxu0 0.0
        %617 = vmatmul.mubr.f32.gmra.mrb[0].mxu0 %v444
        %v618 = vpop.f32.mrb[0].mxu0
        %v619 = vadd.f32 0.0, %v618
        %v620 = vpop.f32.mrb[0].mxu0
        %621 = vmatprep.mubr.f32.mxu0 0.0
        %622 = vmatmul.mubr.f32.gmra.mrb[0].mxu0 %v445
        %v623 = vpop.f32.mrb[0].mxu0
        %v624 = vadd.f32 0.0, %v623
        %v625 = vpop.f32.mrb[0].mxu0
        %626 = vmatprep.mubr.f32.mxu0 0.0
        %627 = vmatmul.mubr.f32.gmra.mrb[0].mxu0 %v446
        %v628 = vpop.f32.mrb[0].mxu0
        %v629 = vadd.f32 0.0, %v628
        %v630 = vpop.f32.mrb[0].mxu0
        %631 = vmatprep.mubr.f32.mxu0 0.0
        %632 = vmatmul.mubr.f32.gmra.mrb[0].mxu0 %v447
        %v633 = vpop.f32.mrb[0].mxu0
        %v634 = vadd.f32 0.0, %v633
        %v635 = vpop.f32.mrb[0].mxu0
        %636 = vmatprep.mubr.f32.mxu0 0.0
        %637 = vmatmul.mubr.f32.gmra.mrb[0].mxu0 %v448
        %v638 = vpop.f32.mrb[0].mxu0
        %v639 = vadd.f32 0.0, %v638
        %v640 = vpop.f32.mrb[0].mxu0
        %641 = vmatprep.mubr.f32.mxu0 0.0
        %642 = vmatmul.mubr.f32.gmra.mrb[0].mxu0 %v449
        %v643 = vpop.f32.mrb[0].mxu0
        %v644 = vadd.f32 0.0, %v643
        %v645 = vpop.f32.mrb[0].mxu0
        %646 = vmatprep.mubr.f32.mxu0 0.0
        %647 = vmatmul.mubr.f32.gmra.mrb[0].mxu0 %v450
        %v648 = vpop.f32.mrb[0].mxu0
        %v649 = vadd.f32 0.0, %v648
        %v650 = vpop.f32.mrb[0].mxu0
        %651 = vmatprep.mubr.f32.mxu0 0.0
        %652 = vmatmul.mubr.f32.gmra.mrb[0].mxu0 %v451
        %v653 = vpop.f32.mrb[0].mxu0
        %v654 = vadd.f32 0.0, %v653
        %v655 = vpop.f32.mrb[0].mxu0
        %656 = vmatprep.mubr.f32.mxu0 0.0
        %657 = vmatmul.mubr.f32.gmra.mrb[0].mxu0 %v452
        %v658 = vpop.f32.mrb[0].mxu0
        %v659 = vadd.f32 0.0, %v658
        %v660 = vpop.f32.mrb[0].mxu0
        %661 = vmatprep.mubr.f32.mxu0 0.0
        %662 = vmatmul.mubr.f32.gmra.mrb[0].mxu0 %v453
        %v663 = vpop.f32.mrb[0].mxu0
        %v664 = vadd.f32 0.0, %v663
        %v665 = vpop.f32.mrb[0].mxu0
        %666 = vmatprep.mubr.f32.mxu0 0.0
        %667 = vmatmul.mubr.f32.gmra.mrb[0].mxu0 %v454
        %v668 = vpop.f32.mrb[0].mxu0
        %v669 = vadd.f32 0.0, %v668
        %v670 = vpop.f32.mrb[0].mxu0
        %671 = vmatprep.mubr.f32.mxu0 0.0
        %672 = vmatmul.mubr.f32.gmra.mrb[0].mxu0 %v455
        %v673 = vpop.f32.mrb[0].mxu0
        %v674 = vadd.f32 0.0, %v673
        %v675 = vpop.f32.mrb[0].mxu0
        %676 = vmatprep.mubr.f32.mxu0 0.0
        %677 = vmatmul.mubr.f32.gmra.mrb[0].mxu0 %v456
        %v678 = vpop.f32.mrb[0].mxu0
        %v679 = vadd.f32 0.0, %v678
        %v680 = vpop.f32.mrb[0].mxu0
        %681 = vmatprep.mubr.f32.mxu0 0.0
        %682 = vmatmul.mubr.f32.gmra.mrb[0].mxu0 %v457
        %v683 = vpop.f32.mrb[0].mxu0
        %v684 = vadd.f32 0.0, %v683
        %v685 = vpop.f32.mrb[0].mxu0
        %686 = vmatprep.mubr.f32.mxu0 0.0
        %687 = vmatmul.mubr.f32.gmra.mrb[0].mxu0 %v458
        %v688 = vpop.f32.mrb[0].mxu0
        %v689 = vadd.f32 0.0, %v688
        %v690 = vpop.f32.mrb[0].mxu0
        %691 = vmatprep.mubr.f32.mxu0 0.0
        %692 = vmatmul.mubr.f32.gmra.mrb[0].mxu0 %v459
        %v693 = vpop.f32.mrb[0].mxu0
        %v694 = vadd.f32 0.0, %v693
        %v695 = vpop.f32.mrb[0].mxu0
        %696 = vmatprep.mubr.f32.mxu0 0.0
        %697 = vmatmul.mubr.f32.gmra.mrb[0].mxu0 %v460
        %v698 = vpop.f32.mrb[0].mxu0
        %v699 = vadd.f32 0.0, %v698
        %v700 = vpop.f32.mrb[0].mxu0
        %701 = vdwg.mxu0
        %v702 = vmul.f32 %v544, 0.2
        %v703 = vmul.f32 %v549, 0.2
        %v704 = vmul.f32 %v554, 0.2
        %v705 = vmul.f32 %v559, 0.2
        %v706 = vmul.f32 %v564, 0.2
        %v707 = vmul.f32 %v569, 0.2
        %v708 = vmul.f32 %v574, 0.2
        %v709 = vmul.f32 %v579, 0.2
        %v710 = vmul.f32 %v584, 0.2
        %v711 = vmul.f32 %v589, 0.2
        %v712 = vmul.f32 %v594, 0.2
        %v713 = vmul.f32 %v599, 0.2
        %v714 = vmul.f32 %v604, 0.2
        %v715 = vmul.f32 %v609, 0.2
        %v716 = vmul.f32 %v614, 0.2
        %v717 = vmul.f32 %v619, 0.2
        %v718 = vmul.f32 %v624, 0.2
        %v719 = vmul.f32 %v629, 0.2
        %v720 = vmul.f32 %v634, 0.2
        %v721 = vmul.f32 %v639, 0.2
        %v722 = vmul.f32 %v644, 0.2
        %v723 = vmul.f32 %v649, 0.2
        %v724 = vmul.f32 %v654, 0.2
        %v725 = vmul.f32 %v659, 0.2
        %v726 = vmul.f32 %v664, 0.2
        %v727 = vmul.f32 %v669, 0.2
        %v728 = vmul.f32 %v674, 0.2
        %v729 = vmul.f32 %v679, 0.2
        %v730 = vmul.f32 %v684, 0.2
        %v731 = vmul.f32 %v689, 0.2
        %v732 = vmul.f32 %v694, 0.2
        %v733 = vmul.f32 %v699, 0.2
        %v734 = vmax.f32 %v544, %v702
        %v735 = vmax.f32 %v549, %v703
        %v736 = vmax.f32 %v554, %v704
        %v737 = vmax.f32 %v559, %v705
        %v738 = vmax.f32 %v564, %v706
        %v739 = vmax.f32 %v569, %v707
        %v740 = vmax.f32 %v574, %v708
        %v741 = vmax.f32 %v579, %v709
        %v742 = vmax.f32 %v584, %v710
        %v743 = vmax.f32 %v589, %v711
        %v744 = vmax.f32 %v594, %v712
        %v745 = vmax.f32 %v599, %v713
        %v746 = vmax.f32 %v604, %v714
        %v747 = vmax.f32 %v609, %v715
        %v748 = vmax.f32 %v614, %v716
        %v749 = vmax.f32 %v619, %v717
        %v750 = vmax.f32 %v624, %v718
        %v751 = vmax.f32 %v629, %v719
        %v752 = vmax.f32 %v634, %v720
        %v753 = vmax.f32 %v639, %v721
        %v754 = vmax.f32 %v644, %v722
        %v755 = vmax.f32 %v649, %v723
        %v756 = vmax.f32 %v654, %v724
        %v757 = vmax.f32 %v659, %v725
        %v758 = vmax.f32 %v664, %v726
        %v759 = vmax.f32 %v669, %v727
        %v760 = vmax.f32 %v674, %v728
        %v761 = vmax.f32 %v679, %v729
        %v762 = vmax.f32 %v684, %v730
        %v763 = vmax.f32 %v689, %v731
        %v764 = vmax.f32 %v694, %v732
        %v765 = vmax.f32 %v699, %v733
        %v766 = vld [vmem:[%s2] sm:$0xff]
        %v767 = vld [vmem:[%s2 + $0x8] sm:$0xff]
        %v768 = vld [vmem:[%s2 + $0x10] sm:$0xff]
        %v769 = vld [vmem:[%s2 + $0x18] sm:$0xff]
        %v770 = vld [vmem:[%s2 + $0x20] sm:$0xff]
        %v771 = vld [vmem:[%s2 + $0x28] sm:$0xff]
        %v772 = vld [vmem:[%s2 + $0x30] sm:$0xff]
        %v773 = vld [vmem:[%s2 + $0x38] sm:$0xff]
        %v774 = vld [vmem:[%s2 + $0x40] sm:$0xff]
        %v775 = vld [vmem:[%s2 + $0x48] sm:$0xff]
        %v776 = vld [vmem:[%s2 + $0x50] sm:$0xff]
        %v777 = vld [vmem:[%s2 + $0x58] sm:$0xff]
        %v778 = vld [vmem:[%s2 + $0x60] sm:$0xff]
        %v779 = vld [vmem:[%s2 + $0x68] sm:$0xff]
        %v780 = vld [vmem:[%s2 + $0x70] sm:$0xff]
        %v781 = vld [vmem:[%s2 + $0x78] sm:$0xff]
        %v782 = vld [vmem:[%s2 + $0x80] sm:$0xff]
        %v783 = vld [vmem:[%s2 + $0x88] sm:$0xff]
        %v784 = vld [vmem:[%s2 + $0x90] sm:$0xff]
        %v785 = vld [vmem:[%s2 + $0x98] sm:$0xff]
        %v786 = vld [vmem:[%s2 + $0xa0] sm:$0xff]
        %v787 = vld [vmem:[%s2 + $0xa8] sm:$0xff]
        %v788 = vld [vmem:[%s2 + $0xb0] sm:$0xff]
        %v789 = vld [vmem:[%s2 + $0xb8] sm:$0xff]
        %v790 = vld [vmem:[%s2 + $0xc0] sm:$0xff]
        %v791 = vld [vmem:[%s2 + $0xc8] sm:$0xff]
        %v792 = vld [vmem:[%s2 + $0xd0] sm:$0xff]
        %v793 = vld [vmem:[%s2 + $0xd8] sm:$0xff]
        %v794 = vld [vmem:[%s2 + $0xe0] sm:$0xff]
        %v795 = vld [vmem:[%s2 + $0xe8] sm:$0xff]
        %v796 = vld [vmem:[%s2 + $0xf0] sm:$0xff]
        %v797 = vld [vmem:[%s2 + $0xf8] sm:$0xff]
        %v798 = vld [vmem:[%s2 + $0x100] sm:$0xff]
        %v799 = vld [vmem:[%s2 + $0x108] sm:$0xff]
        %v800 = vld [vmem:[%s2 + $0x110] sm:$0xff]
        %v801 = vld [vmem:[%s2 + $0x118] sm:$0xff]
        %v802 = vld [vmem:[%s2 + $0x120] sm:$0xff]
        %v803 = vld [vmem:[%s2 + $0x128] sm:$0xff]
        %v804 = vld [vmem:[%s2 + $0x130] sm:$0xff]
        %v805 = vld [vmem:[%s2 + $0x138] sm:$0xff]
        %v806 = vld [vmem:[%s2 + $0x140] sm:$0xff]
        %v807 = vld [vmem:[%s2 + $0x148] sm:$0xff]
        %v808 = vld [vmem:[%s2 + $0x150] sm:$0xff]
        %v809 = vld [vmem:[%s2 + $0x158] sm:$0xff]
        %v810 = vld [vmem:[%s2 + $0x160] sm:$0xff]
        %v811 = vld [vmem:[%s2 + $0x168] sm:$0xff]
        %v812 = vld [vmem:[%s2 + $0x170] sm:$0xff]
        %v813 = vld [vmem:[%s2 + $0x178] sm:$0xff]
        %v814 = vld [vmem:[%s2 + $0x180] sm:$0xff]
        %v815 = vld [vmem:[%s2 + $0x188] sm:$0xff]
        %v816 = vld [vmem:[%s2 + $0x190] sm:$0xff]
        %v817 = vld [vmem:[%s2 + $0x198] sm:$0xff]
        %v818 = vld [vmem:[%s2 + $0x1a0] sm:$0xff]
        %v819 = vld [vmem:[%s2 + $0x1a8] sm:$0xff]
        %v820 = vld [vmem:[%s2 + $0x1b0] sm:$0xff]
        %v821 = vld [vmem:[%s2 + $0x1b8] sm:$0xff]
        %v822 = vld [vmem:[%s2 + $0x1c0] sm:$0xff]
        %v823 = vld [vmem:[%s2 + $0x1c8] sm:$0xff]
        %v824 = vld [vmem:[%s2 + $0x1d0] sm:$0xff]
        %v825 = vld [vmem:[%s2 + $0x1d8] sm:$0xff]
        %v826 = vld [vmem:[%s2 + $0x1e0] sm:$0xff]
        %v827 = vld [vmem:[%s2 + $0x1e8] sm:$0xff]
        %v828 = vld [vmem:[%s2 + $0x1f0] sm:$0xff]
        %v829 = vld [vmem:[%s2 + $0x1f8] sm:$0xff]
        %v830 = vld [vmem:[%s2 + $0x200] sm:$0xff]
        %v831 = vld [vmem:[%s2 + $0x208] sm:$0xff]
        %v832 = vld [vmem:[%s2 + $0x210] sm:$0xff]
        %v833 = vld [vmem:[%s2 + $0x218] sm:$0xff]
        %v834 = vld [vmem:[%s2 + $0x220] sm:$0xff]
        %v835 = vld [vmem:[%s2 + $0x228] sm:$0xff]
        %v836 = vld [vmem:[%s2 + $0x230] sm:$0xff]
        %v837 = vld [vmem:[%s2 + $0x238] sm:$0xff]
        %v838 = vld [vmem:[%s2 + $0x240] sm:$0xff]
        %v839 = vld [vmem:[%s2 + $0x248] sm:$0xff]
        %v840 = vld [vmem:[%s2 + $0x250] sm:$0xff]
        %v841 = vld [vmem:[%s2 + $0x258] sm:$0xff]
        %v842 = vld [vmem:[%s2 + $0x260] sm:$0xff]
        %v843 = vld [vmem:[%s2 + $0x268] sm:$0xff]
        %v844 = vld [vmem:[%s2 + $0x270] sm:$0xff]
        %v845 = vld [vmem:[%s2 + $0x278] sm:$0xff]
        %v846 = vld [vmem:[%s2 + $0x280] sm:$0xff]
        %v847 = vld [vmem:[%s2 + $0x288] sm:$0xff]
        %v848 = vld [vmem:[%s2 + $0x290] sm:$0xff]
        %v849 = vld [vmem:[%s2 + $0x298] sm:$0xff]
        %v850 = vld [vmem:[%s2 + $0x2a0] sm:$0xff]
        %v851 = vld [vmem:[%s2 + $0x2a8] sm:$0xff]
        %v852 = vld [vmem:[%s2 + $0x2b0] sm:$0xff]
        %v853 = vld [vmem:[%s2 + $0x2b8] sm:$0xff]
        %v854 = vld [vmem:[%s2 + $0x2c0] sm:$0xff]
        %v855 = vld [vmem:[%s2 + $0x2c8] sm:$0xff]
        %v856 = vld [vmem:[%s2 + $0x2d0] sm:$0xff]
        %v857 = vld [vmem:[%s2 + $0x2d8] sm:$0xff]
        %v858 = vld [vmem:[%s2 + $0x2e0] sm:$0xff]
        %v859 = vld [vmem:[%s2 + $0x2e8] sm:$0xff]
        %v860 = vld [vmem:[%s2 + $0x2f0] sm:$0xff]
        %v861 = vld [vmem:[%s2 + $0x2f8] sm:$0xff]
        %v862 = vld [vmem:[%s2 + $0x300] sm:$0xff]
        %v863 = vld [vmem:[%s2 + $0x308] sm:$0xff]
        %v864 = vld [vmem:[%s2 + $0x310] sm:$0xff]
        %v865 = vld [vmem:[%s2 + $0x318] sm:$0xff]
        %v866 = vld [vmem:[%s2 + $0x320] sm:$0xff]
        %v867 = vld [vmem:[%s2 + $0x328] sm:$0xff]
        %v868 = vld [vmem:[%s2 + $0x330] sm:$0xff]
        %v869 = vld [vmem:[%s2 + $0x338] sm:$0xff]
        %v870 = vld [vmem:[%s2 + $0x340] sm:$0xff]
        %v871 = vld [vmem:[%s2 + $0x348] sm:$0xff]
        %v872 = vld [vmem:[%s2 + $0x350] sm:$0xff]
        %v873 = vld [vmem:[%s2 + $0x358] sm:$0xff]
        %v874 = vld [vmem:[%s2 + $0x360] sm:$0xff]
        %v875 = vld [vmem:[%s2 + $0x368] sm:$0xff]
        %v876 = vld [vmem:[%s2 + $0x370] sm:$0xff]
        %v877 = vld [vmem:[%s2 + $0x378] sm:$0xff]
        %v878 = vld [vmem:[%s2 + $0x380] sm:$0xff]
        %v879 = vld [vmem:[%s2 + $0x388] sm:$0xff]
        %v880 = vld [vmem:[%s2 + $0x390] sm:$0xff]
        %v881 = vld [vmem:[%s2 + $0x398] sm:$0xff]
        %v882 = vld [vmem:[%s2 + $0x3a0] sm:$0xff]
        %v883 = vld [vmem:[%s2 + $0x3a8] sm:$0xff]
        %v884 = vld [vmem:[%s2 + $0x3b0] sm:$0xff]
        %v885 = vld [vmem:[%s2 + $0x3b8] sm:$0xff]
        %v886 = vld [vmem:[%s2 + $0x3c0] sm:$0xff]
        %v887 = vld [vmem:[%s2 + $0x3c8] sm:$0xff]
        %v888 = vld [vmem:[%s2 + $0x3d0] sm:$0xff]
        %v889 = vld [vmem:[%s2 + $0x3d8] sm:$0xff]
        %v890 = vld [vmem:[%s2 + $0x3e0] sm:$0xff]
        %v891 = vld [vmem:[%s2 + $0x3e8] sm:$0xff]
        %v892 = vld [vmem:[%s2 + $0x3f0] sm:$0xff]
        %v893 = vld [vmem:[%s2 + $0x3f8] sm:$0xff]
        %894 = vmatprep.subr.mxu0 0.0
        %895 = vmatpush1.msra.mxu0 %v734
        %896 = vmatprep.subr.mxu0 0.0
        %897 = vmatpush1.msra.mxu0 %v735
        %898 = vmatprep.subr.mxu0 0.0
        %899 = vmatpush1.msra.mxu0 %v736
        %900 = vmatprep.subr.mxu0 0.0
        %901 = vmatpush1.msra.mxu0 %v737
        %902 = vmatprep.subr.mxu0 0.0
        %903 = vmatpush1.msra.mxu0 %v738
        %904 = vmatprep.subr.mxu0 0.0
        %905 = vmatpush1.msra.mxu0 %v739
        %906 = vmatprep.subr.mxu0 0.0
        %907 = vmatpush1.msra.mxu0 %v740
        %908 = vmatprep.subr.mxu0 0.0
        %909 = vmatpush1.msra.mxu0 %v741
        %910 = vmatprep.subr.mxu0 0.0
        %911 = vmatpush1.msra.mxu0 %v742
        %912 = vmatprep.subr.mxu0 0.0
        %913 = vmatpush1.msra.mxu0 %v743
        %914 = vmatprep.subr.mxu0 0.0
        %915 = vmatpush1.msra.mxu0 %v744
        %916 = vmatprep.subr.mxu0 0.0
        %917 = vmatpush1.msra.mxu0 %v745
        %918 = vmatprep.subr.mxu0 0.0
        %919 = vmatpush1.msra.mxu0 %v746
        %920 = vmatprep.subr.mxu0 0.0
        %921 = vmatpush1.msra.mxu0 %v747
        %922 = vmatprep.subr.mxu0 0.0
        %923 = vmatpush1.msra.mxu0 %v748
        %924 = vmatprep.subr.mxu0 0.0
        %925 = vmatpush1.msra.mxu0 %v749
        %926 = vmatprep.subr.mxu0 0.0
        %927 = vmatpush1.msra.mxu0 %v750
        %928 = vmatprep.subr.mxu0 0.0
        %929 = vmatpush1.msra.mxu0 %v751
        %930 = vmatprep.subr.mxu0 0.0
        %931 = vmatpush1.msra.mxu0 %v752
        %932 = vmatprep.subr.mxu0 0.0
        %933 = vmatpush1.msra.mxu0 %v753
        %934 = vmatprep.subr.mxu0 0.0
        %935 = vmatpush1.msra.mxu0 %v754
        %936 = vmatprep.subr.mxu0 0.0
        %937 = vmatpush1.msra.mxu0 %v755
        %938 = vmatprep.subr.mxu0 0.0
        %939 = vmatpush1.msra.mxu0 %v756
        %940 = vmatprep.subr.mxu0 0.0
        %941 = vmatpush1.msra.mxu0 %v757
        %942 = vmatprep.subr.mxu0 0.0
        %943 = vmatpush1.msra.mxu0 %v758
        %944 = vmatprep.subr.mxu0 0.0
        %945 = vmatpush1.msra.mxu0 %v759
        %946 = vmatprep.subr.mxu0 0.0
        %947 = vmatpush1.msra.mxu0 %v760
        %948 = vmatprep.subr.mxu0 0.0
        %949 = vmatpush1.msra.mxu0 %v761
        %950 = vmatprep.subr.mxu0 0.0
        %951 = vmatpush1.msra.mxu0 %v762
        %952 = vmatprep.subr.mxu0 0.0
        %953 = vmatpush1.msra.mxu0 %v763
        %954 = vmatprep.subr.mxu0 0.0
        %955 = vmatpush1.msra.mxu0 %v764
        %956 = vmatprep.subr.mxu0 0.0
        %957 = vmatpush1.msra.mxu0 %v765
        %958 = vmatprep.mubr.f32.mxu0 %v767
        %959 = vmatmul.mubr.f32.gmra.mrb[0].mxu0 %v766
        %v960 = vpop.f32.mrb[0].mxu0
        %v961 = vadd.f32 0.0, %v960
        %v962 = vpop.f32.mrb[0].mxu0
        %963 = vmatprep.mubr.f32.mxu0 %v769
        %964 = vmatmul.mubr.f32.gmra.mrb[0].mxu0 %v768
        %v965 = vpop.f32.mrb[0].mxu0
        %v966 = vadd.f32 0.0, %v965
        %v967 = vpop.f32.mrb[0].mxu0
        %968 = vmatprep.mubr.f32.mxu0 %v771
        %969 = vmatmul.mubr.f32.gmra.mrb[0].mxu0 %v770
        %v970 = vpop.f32.mrb[0].mxu0
        %v971 = vadd.f32 0.0, %v970
        %v972 = vpop.f32.mrb[0].mxu0
        %973 = vmatprep.mubr.f32.mxu0 %v773
        %974 = vmatmul.mubr.f32.gmra.mrb[0].mxu0 %v772
        %v975 = vpop.f32.mrb[0].mxu0
        %v976 = vadd.f32 0.0, %v975
        %v977 = vpop.f32.mrb[0].mxu0
        %978 = vmatprep.mubr.f32.mxu0 %v775
        %979 = vmatmul.mubr.f32.gmra.mrb[0].mxu0 %v774
        %v980 = vpop.f32.mrb[0].mxu0
        %v981 = vadd.f32 0.0, %v980
        %v982 = vpop.f32.mrb[0].mxu0
        %983 = vmatprep.mubr.f32.mxu0 %v777
        %984 = vmatmul.mubr.f32.gmra.mrb[0].mxu0 %v776
        %v985 = vpop.f32.mrb[0].mxu0
        %v986 = vadd.f32 0.0, %v985
        %v987 = vpop.f32.mrb[0].mxu0
        %988 = vmatprep.mubr.f32.mxu0 %v779
        %989 = vmatmul.mubr.f32.gmra.mrb[0].mxu0 %v778
        %v990 = vpop.f32.mrb[0].mxu0
        %v991 = vadd.f32 0.0, %v990
        %v992 = vpop.f32.mrb[0].mxu0
        %993 = vmatprep.mubr.f32.mxu0 %v781
        %994 = vmatmul.mubr.f32.gmra.mrb[0].mxu0 %v780
        %v995 = vpop.f32.mrb[0].mxu0
        %v996 = vadd.f32 0.0, %v995
        %v997 = vpop.f32.mrb[0].mxu0
        %998 = vmatprep.mubr.f32.mxu0 %v783
        %999 = vmatmul.mubr.f32.gmra.mrb[0].mxu0 %v782
        %v1000 = vpop.f32.mrb[0].mxu0
        %v1001 = vadd.f32 0.0, %v1000
        %v1002 = vpop.f32.mrb[0].mxu0
        %1003 = vmatprep.mubr.f32.mxu0 %v785
        %1004 = vmatmul.mubr.f32.gmra.mrb[0].mxu0 %v784
        %v1005 = vpop.f32.mrb[0].mxu0
        %v1006 = vadd.f32 0.0, %v1005
        %v1007 = vpop.f32.mrb[0].mxu0
        %1008 = vmatprep.mubr.f32.mxu0 %v787
        %1009 = vmatmul.mubr.f32.gmra.mrb[0].mxu0 %v786
        %v1010 = vpop.f32.mrb[0].mxu0
        %v1011 = vadd.f32 0.0, %v1010
        %v1012 = vpop.f32.mrb[0].mxu0
        %1013 = vmatprep.mubr.f32.mxu0 %v789
        %1014 = vmatmul.mubr.f32.gmra.mrb[0].mxu0 %v788
        %v1015 = vpop.f32.mrb[0].mxu0
        %v1016 = vadd.f32 0.0, %v1015
        %v1017 = vpop.f32.mrb[0].mxu0
        %1018 = vmatprep.mubr.f32.mxu0 %v791
        %1019 = vmatmul.mubr.f32.gmra.mrb[0].mxu0 %v790
        %v1020 = vpop.f32.mrb[0].mxu0
        %v1021 = vadd.f32 0.0, %v1020
        %v1022 = vpop.f32.mrb[0].mxu0
        %1023 = vmatprep.mubr.f32.mxu0 %v793
        %1024 = vmatmul.mubr.f32.gmra.mrb[0].mxu0 %v792
        %v1025 = vpop.f32.mrb[0].mxu0
        %v1026 = vadd.f32 0.0, %v1025
        %v1027 = vpop.f32.mrb[0].mxu0
        %1028 = vmatprep.mubr.f32.mxu0 %v795
        %1029 = vmatmul.mubr.f32.gmra.mrb[0].mxu0 %v794
        %v1030 = vpop.f32.mrb[0].mxu0
        %v1031 = vadd.f32 0.0, %v1030
        %v1032 = vpop.f32.mrb[0].mxu0
        %1033 = vmatprep.mubr.f32.mxu0 %v797
        %1034 = vmatmul.mubr.f32.gmra.mrb[0].mxu0 %v796
        %v1035 = vpop.f32.mrb[0].mxu0
        %v1036 = vadd.f32 0.0, %v1035
        %v1037 = vpop.f32.mrb[0].mxu0
        %1038 = vmatprep.mubr.f32.mxu0 %v799
        %1039 = vmatmul.mubr.f32.gmra.mrb[0].mxu0 %v798
        %v1040 = vpop.f32.mrb[0].mxu0
        %v1041 = vadd.f32 0.0, %v1040
        %v1042 = vpop.f32.mrb[0].mxu0
        %1043 = vmatprep.mubr.f32.mxu0 %v801
        %1044 = vmatmul.mubr.f32.gmra.mrb[0].mxu0 %v800
        %v1045 = vpop.f32.mrb[0].mxu0
        %v1046 = vadd.f32 0.0, %v1045
        %v1047 = vpop.f32.mrb[0].mxu0
        %1048 = vmatprep.mubr.f32.mxu0 %v803
        %1049 = vmatmul.mubr.f32.gmra.mrb[0].mxu0 %v802
        %v1050 = vpop.f32.mrb[0].mxu0
        %v1051 = vadd.f32 0.0, %v1050
        %v1052 = vpop.f32.mrb[0].mxu0
        %1053 = vmatprep.mubr.f32.mxu0 %v805
        %1054 = vmatmul.mubr.f32.gmra.mrb[0].mxu0 %v804
        %v1055 = vpop.f32.mrb[0].mxu0
        %v1056 = vadd.f32 0.0, %v1055
        %v1057 = vpop.f32.mrb[0].mxu0
        %1058 = vmatprep.mubr.f32.mxu0 %v807
        %1059 = vmatmul.mubr.f32.gmra.mrb[0].mxu0 %v806
        %v1060 = vpop.f32.mrb[0].mxu0
        %v1061 = vadd.f32 0.0, %v1060
        %v1062 = vpop.f32.mrb[0].mxu0
        %1063 = vmatprep.mubr.f32.mxu0 %v809
        %1064 = vmatmul.mubr.f32.gmra.mrb[0].mxu0 %v808
        %v1065 = vpop.f32.mrb[0].mxu0
        %v1066 = vadd.f32 0.0, %v1065
        %v1067 = vpop.f32.mrb[0].mxu0
        %1068 = vmatprep.mubr.f32.mxu0 %v811
        %1069 = vmatmul.mubr.f32.gmra.mrb[0].mxu0 %v810
        %v1070 = vpop.f32.mrb[0].mxu0
        %v1071 = vadd.f32 0.0, %v1070
        %v1072 = vpop.f32.mrb[0].mxu0
        %1073 = vmatprep.mubr.f32.mxu0 %v813
        %1074 = vmatmul.mubr.f32.gmra.mrb[0].mxu0 %v812
        %v1075 = vpop.f32.mrb[0].mxu0
        %v1076 = vadd.f32 0.0, %v1075
        %v1077 = vpop.f32.mrb[0].mxu0
        %1078 = vmatprep.mubr.f32.mxu0 %v815
        %1079 = vmatmul.mubr.f32.gmra.mrb[0].mxu0 %v814
        %v1080 = vpop.f32.mrb[0].mxu0
        %v1081 = vadd.f32 0.0, %v1080
        %v1082 = vpop.f32.mrb[0].mxu0
        %1083 = vmatprep.mubr.f32.mxu0 %v817
        %1084 = vmatmul.mubr.f32.gmra.mrb[0].mxu0 %v816
        %v1085 = vpop.f32.mrb[0].mxu0
        %v1086 = vadd.f32 0.0, %v1085
        %v1087 = vpop.f32.mrb[0].mxu0
        %1088 = vmatprep.mubr.f32.mxu0 %v819
        %1089 = vmatmul.mubr.f32.gmra.mrb[0].mxu0 %v818
        %v1090 = vpop.f32.mrb[0].mxu0
        %v1091 = vadd.f32 0.0, %v1090
        %v1092 = vpop.f32.mrb[0].mxu0
        %1093 = vmatprep.mubr.f32.mxu0 %v821
        %1094 = vmatmul.mubr.f32.gmra.mrb[0].mxu0 %v820
        %v1095 = vpop.f32.mrb[0].mxu0
        %v1096 = vadd.f32 0.0, %v1095
        %v1097 = vpop.f32.mrb[0].mxu0
        %1098 = vmatprep.mubr.f32.mxu0 %v823
        %1099 = vmatmul.mubr.f32.gmra.mrb[0].mxu0 %v822
        %v1100 = vpop.f32.mrb[0].mxu0
        %v1101 = vadd.f32 0.0, %v1100
        %v1102 = vpop.f32.mrb[0].mxu0
        %1103 = vmatprep.mubr.f32.mxu0 %v825
        %1104 = vmatmul.mubr.f32.gmra.mrb[0].mxu0 %v824
        %v1105 = vpop.f32.mrb[0].mxu0
        %v1106 = vadd.f32 0.0, %v1105
        %v1107 = vpop.f32.mrb[0].mxu0
        %1108 = vmatprep.mubr.f32.mxu0 %v827
        %1109 = vmatmul.mubr.f32.gmra.mrb[0].mxu0 %v826
        %v1110 = vpop.f32.mrb[0].mxu0
        %v1111 = vadd.f32 0.0, %v1110
        %v1112 = vpop.f32.mrb[0].mxu0
        %1113 = vmatprep.mubr.f32.mxu0 %v829
        %1114 = vmatmul.mubr.f32.gmra.mrb[0].mxu0 %v828
        %v1115 = vpop.f32.mrb[0].mxu0
        %v1116 = vadd.f32 0.0, %v1115
        %v1117 = vpop.f32.mrb[0].mxu0
        %1118 = vmatprep.mubr.f32.mxu0 %v831
        %1119 = vmatmul.mubr.f32.gmra.mrb[0].mxu0 %v830
        %v1120 = vpop.f32.mrb[0].mxu0
        %v1121 = vadd.f32 0.0, %v1120
        %v1122 = vpop.f32.mrb[0].mxu0
        %1123 = vmatprep.mubr.f32.mxu0 %v833
        %1124 = vmatmul.mubr.f32.gmra.mrb[0].mxu0 %v832
        %v1125 = vpop.f32.mrb[0].mxu0
        %v1126 = vadd.f32 0.0, %v1125
        %v1127 = vpop.f32.mrb[0].mxu0
        %1128 = vmatprep.mubr.f32.mxu0 %v835
        %1129 = vmatmul.mubr.f32.gmra.mrb[0].mxu0 %v834
        %v1130 = vpop.f32.mrb[0].mxu0
        %v1131 = vadd.f32 0.0, %v1130
        %v1132 = vpop.f32.mrb[0].mxu0
        %1133 = vmatprep.mubr.f32.mxu0 %v837
        %1134 = vmatmul.mubr.f32.gmra.mrb[0].mxu0 %v836
        %v1135 = vpop.f32.mrb[0].mxu0
        %v1136 = vadd.f32 0.0, %v1135
        %v1137 = vpop.f32.mrb[0].mxu0
        %1138 = vmatprep.mubr.f32.mxu0 %v839
        %1139 = vmatmul.mubr.f32.gmra.mrb[0].mxu0 %v838
        %v1140 = vpop.f32.mrb[0].mxu0
        %v1141 = vadd.f32 0.0, %v1140
        %v1142 = vpop.f32.mrb[0].mxu0
        %1143 = vmatprep.mubr.f32.mxu0 %v841
        %1144 = vmatmul.mubr.f32.gmra.mrb[0].mxu0 %v840
        %v1145 = vpop.f32.mrb[0].mxu0
        %v1146 = vadd.f32 0.0, %v1145
        %v1147 = vpop.f32.mrb[0].mxu0
        %1148 = vmatprep.mubr.f32.mxu0 %v843
        %1149 = vmatmul.mubr.f32.gmra.mrb[0].mxu0 %v842
        %v1150 = vpop.f32.mrb[0].mxu0
        %v1151 = vadd.f32 0.0, %v1150
        %v1152 = vpop.f32.mrb[0].mxu0
        %1153 = vmatprep.mubr.f32.mxu0 %v845
        %1154 = vmatmul.mubr.f32.gmra.mrb[0].mxu0 %v844
        %v1155 = vpop.f32.mrb[0].mxu0
        %v1156 = vadd.f32 0.0, %v1155
        %v1157 = vpop.f32.mrb[0].mxu0
        %1158 = vmatprep.mubr.f32.mxu0 %v847
        %1159 = vmatmul.mubr.f32.gmra.mrb[0].mxu0 %v846
        %v1160 = vpop.f32.mrb[0].mxu0
        %v1161 = vadd.f32 0.0, %v1160
        %v1162 = vpop.f32.mrb[0].mxu0
        %1163 = vmatprep.mubr.f32.mxu0 %v849
        %1164 = vmatmul.mubr.f32.gmra.mrb[0].mxu0 %v848
        %v1165 = vpop.f32.mrb[0].mxu0
        %v1166 = vadd.f32 0.0, %v1165
        %v1167 = vpop.f32.mrb[0].mxu0
        %1168 = vmatprep.mubr.f32.mxu0 %v851
        %1169 = vmatmul.mubr.f32.gmra.mrb[0].mxu0 %v850
        %v1170 = vpop.f32.mrb[0].mxu0
        %v1171 = vadd.f32 0.0, %v1170
        %v1172 = vpop.f32.mrb[0].mxu0
        %1173 = vmatprep.mubr.f32.mxu0 %v853
        %1174 = vmatmul.mubr.f32.gmra.mrb[0].mxu0 %v852
        %v1175 = vpop.f32.mrb[0].mxu0
        %v1176 = vadd.f32 0.0, %v1175
        %v1177 = vpop.f32.mrb[0].mxu0
        %1178 = vmatprep.mubr.f32.mxu0 %v855
        %1179 = vmatmul.mubr.f32.gmra.mrb[0].mxu0 %v854
        %v1180 = vpop.f32.mrb[0].mxu0
        %v1181 = vadd.f32 0.0, %v1180
        %v1182 = vpop.f32.mrb[0].mxu0
        %1183 = vmatprep.mubr.f32.mxu0 %v857
        %1184 = vmatmul.mubr.f32.gmra.mrb[0].mxu0 %v856
        %v1185 = vpop.f32.mrb[0].mxu0
        %v1186 = vadd.f32 0.0, %v1185
        %v1187 = vpop.f32.mrb[0].mxu0
        %1188 = vmatprep.mubr.f32.mxu0 %v859
        %1189 = vmatmul.mubr.f32.gmra.mrb[0].mxu0 %v858
        %v1190 = vpop.f32.mrb[0].mxu0
        %v1191 = vadd.f32 0.0, %v1190
        %v1192 = vpop.f32.mrb[0].mxu0
        %1193 = vmatprep.mubr.f32.mxu0 %v861
        %1194 = vmatmul.mubr.f32.gmra.mrb[0].mxu0 %v860
        %v1195 = vpop.f32.mrb[0].mxu0
        %v1196 = vadd.f32 0.0, %v1195
        %v1197 = vpop.f32.mrb[0].mxu0
        %1198 = vmatprep.mubr.f32.mxu0 %v863
        %1199 = vmatmul.mubr.f32.gmra.mrb[0].mxu0 %v862
        %v1200 = vpop.f32.mrb[0].mxu0
        %v1201 = vadd.f32 0.0, %v1200
        %v1202 = vpop.f32.mrb[0].mxu0
        %1203 = vmatprep.mubr.f32.mxu0 %v865
        %1204 = vmatmul.mubr.f32.gmra.mrb[0].mxu0 %v864
        %v1205 = vpop.f32.mrb[0].mxu0
        %v1206 = vadd.f32 0.0, %v1205
        %v1207 = vpop.f32.mrb[0].mxu0
        %1208 = vmatprep.mubr.f32.mxu0 %v867
        %1209 = vmatmul.mubr.f32.gmra.mrb[0].mxu0 %v866
        %v1210 = vpop.f32.mrb[0].mxu0
        %v1211 = vadd.f32 0.0, %v1210
        %v1212 = vpop.f32.mrb[0].mxu0
        %1213 = vmatprep.mubr.f32.mxu0 %v869
        %1214 = vmatmul.mubr.f32.gmra.mrb[0].mxu0 %v868
        %v1215 = vpop.f32.mrb[0].mxu0
        %v1216 = vadd.f32 0.0, %v1215
        %v1217 = vpop.f32.mrb[0].mxu0
        %1218 = vmatprep.mubr.f32.mxu0 %v871
        %1219 = vmatmul.mubr.f32.gmra.mrb[0].mxu0 %v870
        %v1220 = vpop.f32.mrb[0].mxu0
        %v1221 = vadd.f32 0.0, %v1220
        %v1222 = vpop.f32.mrb[0].mxu0
        %1223 = vmatprep.mubr.f32.mxu0 %v873
        %1224 = vmatmul.mubr.f32.gmra.mrb[0].mxu0 %v872
        %v1225 = vpop.f32.mrb[0].mxu0
        %v1226 = vadd.f32 0.0, %v1225
        %v1227 = vpop.f32.mrb[0].mxu0
        %1228 = vmatprep.mubr.f32.mxu0 %v875
        %1229 = vmatmul.mubr.f32.gmra.mrb[0].mxu0 %v874
        %v1230 = vpop.f32.mrb[0].mxu0
        %v1231 = vadd.f32 0.0, %v1230
        %v1232 = vpop.f32.mrb[0].mxu0
        %1233 = vmatprep.mubr.f32.mxu0 %v877
        %1234 = vmatmul.mubr.f32.gmra.mrb[0].mxu0 %v876
        %v1235 = vpop.f32.mrb[0].mxu0
        %v1236 = vadd.f32 0.0, %v1235
        %v1237 = vpop.f32.mrb[0].mxu0
        %1238 = vmatprep.mubr.f32.mxu0 %v879
        %1239 = vmatmul.mubr.f32.gmra.mrb[0].mxu0 %v878
        %v1240 = vpop.f32.mrb[0].mxu0
        %v1241 = vadd.f32 0.0, %v1240
        %v1242 = vpop.f32.mrb[0].mxu0
        %1243 = vmatprep.mubr.f32.mxu0 %v881
        %1244 = vmatmul.mubr.f32.gmra.mrb[0].mxu0 %v880
        %v1245 = vpop.f32.mrb[0].mxu0
        %v1246 = vadd.f32 0.0, %v1245
        %v1247 = vpop.f32.mrb[0].mxu0
        %1248 = vmatprep.mubr.f32.mxu0 %v883
        %1249 = vmatmul.mubr.f32.gmra.mrb[0].mxu0 %v882
        %v1250 = vpop.f32.mrb[0].mxu0
        %v1251 = vadd.f32 0.0, %v1250
        %v1252 = vpop.f32.mrb[0].mxu0
        %1253 = vmatprep.mubr.f32.mxu0 %v885
        %1254 = vmatmul.mubr.f32.gmra.mrb[0].mxu0 %v884
        %v1255 = vpop.f32.mrb[0].mxu0
        %v1256 = vadd.f32 0.0, %v1255
        %v1257 = vpop.f32.mrb[0].mxu0
        %1258 = vmatprep.mubr.f32.mxu0 %v887
        %1259 = vmatmul.mubr.f32.gmra.mrb[0].mxu0 %v886
        %v1260 = vpop.f32.mrb[0].mxu0
        %v1261 = vadd.f32 0.0, %v1260
        %v1262 = vpop.f32.mrb[0].mxu0
        %1263 = vmatprep.mubr.f32.mxu0 %v889
        %1264 = vmatmul.mubr.f32.gmra.mrb[0].mxu0 %v888
        %v1265 = vpop.f32.mrb[0].mxu0
        %v1266 = vadd.f32 0.0, %v1265
        %v1267 = vpop.f32.mrb[0].mxu0
        %1268 = vmatprep.mubr.f32.mxu0 %v891
        %1269 = vmatmul.mubr.f32.gmra.mrb[0].mxu0 %v890
        %v1270 = vpop.f32.mrb[0].mxu0
        %v1271 = vadd.f32 0.0, %v1270
        %v1272 = vpop.f32.mrb[0].mxu0
        %1273 = vmatprep.mubr.f32.mxu0 %v893
        %1274 = vmatmul.mubr.f32.gmra.mrb[0].mxu0 %v892
        %v1275 = vpop.f32.mrb[0].mxu0
        %v1276 = vadd.f32 0.0, %v1275
        %v1277 = vpop.f32.mrb[0].mxu0
        %1278 = vdwg.mxu0
        %v1279 = vld [vmem:[%s4] sm:$0x1]
        %v1280 = vld [vmem:[%s3] sm:$0xff]
        %v1281 = vld [vmem:[%s3 + $0x8] sm:$0xff]
        %v1282 = vld [vmem:[%s3 + $0x10] sm:$0xff]
        %v1283 = vld [vmem:[%s3 + $0x18] sm:$0xff]
        %v1284 = vld [vmem:[%s3 + $0x20] sm:$0xff]
        %v1285 = vld [vmem:[%s3 + $0x28] sm:$0xff]
        %v1286 = vld [vmem:[%s3 + $0x30] sm:$0xff]
        %v1287 = vld [vmem:[%s3 + $0x38] sm:$0xff]
        %vm1288 = vcmask 523264
        %v1290 = vsel %vm1288, %v961, 0
        %v1293 = vsel %vm1288, %v966, 0
        %v1296 = vsel %vm1288, %v971, 0
        %v1299 = vsel %vm1288, %v976, 0
        %v1302 = vsel %vm1288, %v981, 0
        %v1305 = vsel %vm1288, %v986, 0
        %v1308 = vsel %vm1288, %v991, 0
        %v1311 = vsel %vm1288, %v996, 0
        %v1314 = vsel %vm1288, %v1001, 0
        %v1317 = vsel %vm1288, %v1006, 0
        %v1320 = vsel %vm1288, %v1011, 0
        %v1323 = vsel %vm1288, %v1016, 0
        %v1326 = vsel %vm1288, %v1021, 0
        %v1329 = vsel %vm1288, %v1026, 0
        %v1332 = vsel %vm1288, %v1031, 0
        %v1335 = vsel %vm1288, %v1036, 0
        %1337 = vmatprep.subr.mxu0 0.0
        %1338 = vmatpush1.msra.mxu0 %v1280
        %1339 = vmatprep.subr.mxu0 0.0
        %1340 = vmatpush1.msra.mxu0 %v1281
        %1341 = vmatprep.subr.mxu0 0.0
        %1342 = vmatpush1.msra.mxu0 %v1282
        %1343 = vmatprep.subr.mxu0 0.0
        %1344 = vmatpush1.msra.mxu0 %v1283
        %1345 = vmatprep.subr.mxu0 0.0
        %1346 = vmatpush1.msra.mxu0 %v1284
        %1347 = vmatprep.subr.mxu0 0.0
        %1348 = vmatpush1.msra.mxu0 %v1285
        %1349 = vmatprep.subr.mxu0 0.0
        %1350 = vmatpush1.msra.mxu0 %v1286
        %1351 = vmatprep.subr.mxu0 0.0
        %1352 = vmatpush1.msra.mxu0 %v1287
        %1353 = vmatprep.subr.mxu0 0.0
        %1354 = vmatpush1.msra.mxu0 0.0
        %1355 = vmatprep.subr.mxu0 0.0
        %1356 = vmatpush1.msra.mxu0 0.0
        %1357 = vmatprep.subr.mxu0 0.0
        %1358 = vmatpush1.msra.mxu0 0.0
        %1359 = vmatprep.subr.mxu0 0.0
        %1360 = vmatpush1.msra.mxu0 0.0
        %1361 = vmatprep.subr.mxu0 0.0
        %1362 = vmatpush1.msra.mxu0 0.0
        %1363 = vmatprep.subr.mxu0 0.0
        %1364 = vmatpush1.msra.mxu0 0.0
        %1365 = vmatprep.subr.mxu0 0.0
        %1366 = vmatpush1.msra.mxu0 0.0
        %1367 = vmatprep.subr.mxu0 0.0
        %1368 = vmatpush1.msra.mxu0 0.0
        %1369 = vmatprep.subr.mxu0 0.0
        %1370 = vmatpush1.msra.mxu0 0.0
        %1371 = vmatprep.subr.mxu0 0.0
        %1372 = vmatpush1.msra.mxu0 0.0
        %1373 = vmatprep.subr.mxu0 0.0
        %1374 = vmatpush1.msra.mxu0 0.0
        %1375 = vmatprep.subr.mxu0 0.0
        %1376 = vmatpush1.msra.mxu0 0.0
        %1377 = vmatprep.subr.mxu0 0.0
        %1378 = vmatpush1.msra.mxu0 0.0
        %1379 = vmatprep.subr.mxu0 0.0
        %1380 = vmatpush1.msra.mxu0 0.0
        %1381 = vmatprep.subr.mxu0 0.0
        %1382 = vmatpush1.msra.mxu0 0.0
        %1383 = vmatprep.subr.mxu0 0.0
        %1384 = vmatpush1.msra.mxu0 0.0
        %1385 = vmatprep.subr.mxu0 0.0
        %1386 = vmatpush1.msra.mxu0 0.0
        %1387 = vmatprep.subr.mxu0 0.0
        %1388 = vmatpush1.msra.mxu0 0.0
        %1389 = vmatprep.subr.mxu0 0.0
        %1390 = vmatpush1.msra.mxu0 0.0
        %1391 = vmatprep.subr.mxu0 0.0
        %1392 = vmatpush1.msra.mxu0 0.0
        %1393 = vmatprep.subr.mxu0 0.0
        %1394 = vmatpush1.msra.mxu0 0.0
        %1395 = vmatprep.subr.mxu0 0.0
        %1396 = vmatpush1.msra.mxu0 0.0
        %1397 = vmatprep.subr.mxu0 0.0
        %1398 = vmatpush1.msra.mxu0 0.0
        %1399 = vmatprep.subr.mxu0 0.0
        %1400 = vmatpush1.msra.mxu0 0.0
        %1401 = vmatprep.mubr.f32.mxu0 0.0
        %1402 = vmatmul.mubr.f32.gmra.mrb[0].mxu0 %v1290
        %v1403 = vpop.f32.mrb[0].mxu0
        %v1404 = vadd.f32 0.0, %v1403
        %v1405 = vpop.f32.mrb[0].mxu0
        %1406 = vmatprep.mubr.f32.mxu0 0.0
        %1407 = vmatmul.mubr.f32.gmra.mrb[0].mxu0 %v1293
        %v1408 = vpop.f32.mrb[0].mxu0
        %v1409 = vadd.f32 0.0, %v1408
        %v1410 = vpop.f32.mrb[0].mxu0
        %1411 = vmatprep.mubr.f32.mxu0 0.0
        %1412 = vmatmul.mubr.f32.gmra.mrb[0].mxu0 %v1296
        %v1413 = vpop.f32.mrb[0].mxu0
        %v1414 = vadd.f32 0.0, %v1413
        %v1415 = vpop.f32.mrb[0].mxu0
        %1416 = vmatprep.mubr.f32.mxu0 0.0
        %1417 = vmatmul.mubr.f32.gmra.mrb[0].mxu0 %v1299
        %v1418 = vpop.f32.mrb[0].mxu0
        %v1419 = vadd.f32 0.0, %v1418
        %v1420 = vpop.f32.mrb[0].mxu0
        %1421 = vmatprep.mubr.f32.mxu0 0.0
        %1422 = vmatmul.mubr.f32.gmra.mrb[0].mxu0 %v1302
        %v1423 = vpop.f32.mrb[0].mxu0
        %v1424 = vadd.f32 0.0, %v1423
        %v1425 = vpop.f32.mrb[0].mxu0
        %1426 = vmatprep.mubr.f32.mxu0 0.0
        %1427 = vmatmul.mubr.f32.gmra.mrb[0].mxu0 %v1305
        %v1428 = vpop.f32.mrb[0].mxu0
        %v1429 = vadd.f32 0.0, %v1428
        %v1430 = vpop.f32.mrb[0].mxu0
        %1431 = vmatprep.mubr.f32.mxu0 0.0
        %1432 = vmatmul.mubr.f32.gmra.mrb[0].mxu0 %v1308
        %v1433 = vpop.f32.mrb[0].mxu0
        %v1434 = vadd.f32 0.0, %v1433
        %v1435 = vpop.f32.mrb[0].mxu0
        %1436 = vmatprep.mubr.f32.mxu0 0.0
        %1437 = vmatmul.mubr.f32.gmra.mrb[0].mxu0 %v1311
        %v1438 = vpop.f32.mrb[0].mxu0
        %v1439 = vadd.f32 0.0, %v1438
        %v1440 = vpop.f32.mrb[0].mxu0
        %1441 = vmatprep.mubr.f32.mxu0 0.0
        %1442 = vmatmul.mubr.f32.gmra.mrb[0].mxu0 %v1314
        %v1443 = vpop.f32.mrb[0].mxu0
        %v1444 = vadd.f32 0.0, %v1443
        %v1445 = vpop.f32.mrb[0].mxu0
        %1446 = vmatprep.mubr.f32.mxu0 0.0
        %1447 = vmatmul.mubr.f32.gmra.mrb[0].mxu0 %v1317
        %v1448 = vpop.f32.mrb[0].mxu0
        %v1449 = vadd.f32 0.0, %v1448
        %v1450 = vpop.f32.mrb[0].mxu0
        %1451 = vmatprep.mubr.f32.mxu0 0.0
        %1452 = vmatmul.mubr.f32.gmra.mrb[0].mxu0 %v1320
        %v1453 = vpop.f32.mrb[0].mxu0
        %v1454 = vadd.f32 0.0, %v1453
        %v1455 = vpop.f32.mrb[0].mxu0
        %1456 = vmatprep.mubr.f32.mxu0 0.0
        %1457 = vmatmul.mubr.f32.gmra.mrb[0].mxu0 %v1323
        %v1458 = vpop.f32.mrb[0].mxu0
        %v1459 = vadd.f32 0.0, %v1458
        %v1460 = vpop.f32.mrb[0].mxu0
        %1461 = vmatprep.mubr.f32.mxu0 0.0
        %1462 = vmatmul.mubr.f32.gmra.mrb[0].mxu0 %v1326
        %v1463 = vpop.f32.mrb[0].mxu0
        %v1464 = vadd.f32 0.0, %v1463
        %v1465 = vpop.f32.mrb[0].mxu0
        %1466 = vmatprep.mubr.f32.mxu0 0.0
        %1467 = vmatmul.mubr.f32.gmra.mrb[0].mxu0 %v1329
        %v1468 = vpop.f32.mrb[0].mxu0
        %v1469 = vadd.f32 0.0, %v1468
        %v1470 = vpop.f32.mrb[0].mxu0
        %1471 = vmatprep.mubr.f32.mxu0 0.0
        %1472 = vmatmul.mubr.f32.gmra.mrb[0].mxu0 %v1332
        %v1473 = vpop.f32.mrb[0].mxu0
        %v1474 = vadd.f32 0.0, %v1473
        %v1475 = vpop.f32.mrb[0].mxu0
        %1476 = vmatprep.mubr.f32.mxu0 0.0
        %1477 = vmatmul.mubr.f32.gmra.mrb[0].mxu0 %v1335
        %v1478 = vpop.f32.mrb[0].mxu0
        %v1479 = vadd.f32 0.0, %v1478
        %v1480 = vpop.f32.mrb[0].mxu0
        %1481 = vdwg.mxu0
        %v1483 = vlaneseq
        %v1484 = vshrl.u32 %v1483, 7
        %v1485 = vsub.s32 0, %v1484
        %v1486 = vrot.slane %v1279, %v1485
        %v1488 = vadd.f32 %v1486, %v1404
        %v1489 = vadd.f32 %v1486, %v1409
        %v1490 = vadd.f32 %v1486, %v1414
        %v1491 = vadd.f32 %v1486, %v1419
        %v1492 = vadd.f32 %v1486, %v1424
        %v1493 = vadd.f32 %v1486, %v1429
        %v1494 = vadd.f32 %v1486, %v1434
        %v1495 = vadd.f32 %v1486, %v1439
        %v1496 = vadd.f32 %v1486, %v1444
        %v1497 = vadd.f32 %v1486, %v1449
        %v1498 = vadd.f32 %v1486, %v1454
        %v1499 = vadd.f32 %v1486, %v1459
        %v1500 = vadd.f32 %v1486, %v1464
        %v1501 = vadd.f32 %v1486, %v1469
        %v1502 = vadd.f32 %v1486, %v1474
        %v1503 = vadd.f32 %v1486, %v1479
        %s1504 = scalar_lea.vmem %s3, 64
        %v1505 = vld [vmem:[%s1504] sm:$0xff]
        %v1506 = vld [vmem:[%s1504 + $0x8] sm:$0xff]
        %v1507 = vld [vmem:[%s1504 + $0x10] sm:$0xff]
        %v1508 = vld [vmem:[%s1504 + $0x18] sm:$0xff]
        %v1509 = vld [vmem:[%s1504 + $0x20] sm:$0xff]
        %v1510 = vld [vmem:[%s1504 + $0x28] sm:$0xff]
        %v1511 = vld [vmem:[%s1504 + $0x30] sm:$0xff]
        %v1512 = vld [vmem:[%s1504 + $0x38] sm:$0xff]
        %v1514 = vsel %vm1288, %v1041, 0
        %v1517 = vsel %vm1288, %v1046, 0
        %v1520 = vsel %vm1288, %v1051, 0
        %v1523 = vsel %vm1288, %v1056, 0
        %v1526 = vsel %vm1288, %v1061, 0
        %v1529 = vsel %vm1288, %v1066, 0
        %v1532 = vsel %vm1288, %v1071, 0
        %v1535 = vsel %vm1288, %v1076, 0
        %v1538 = vsel %vm1288, %v1081, 0
        %v1541 = vsel %vm1288, %v1086, 0
        %v1544 = vsel %vm1288, %v1091, 0
        %v1547 = vsel %vm1288, %v1096, 0
        %v1550 = vsel %vm1288, %v1101, 0
        %v1553 = vsel %vm1288, %v1106, 0
        %v1556 = vsel %vm1288, %v1111, 0
        %v1559 = vsel %vm1288, %v1116, 0
        %1561 = vmatprep.subr.mxu0 0.0
        %1562 = vmatpush1.msra.mxu0 %v1505
        %1563 = vmatprep.subr.mxu0 0.0
        %1564 = vmatpush1.msra.mxu0 %v1506
        %1565 = vmatprep.subr.mxu0 0.0
        %1566 = vmatpush1.msra.mxu0 %v1507
        %1567 = vmatprep.subr.mxu0 0.0
        %1568 = vmatpush1.msra.mxu0 %v1508
        %1569 = vmatprep.subr.mxu0 0.0
        %1570 = vmatpush1.msra.mxu0 %v1509
        %1571 = vmatprep.subr.mxu0 0.0
        %1572 = vmatpush1.msra.mxu0 %v1510
        %1573 = vmatprep.subr.mxu0 0.0
        %1574 = vmatpush1.msra.mxu0 %v1511
        %1575 = vmatprep.subr.mxu0 0.0
        %1576 = vmatpush1.msra.mxu0 %v1512
        %1577 = vmatprep.subr.mxu0 0.0
        %1578 = vmatpush1.msra.mxu0 0.0
        %1579 = vmatprep.subr.mxu0 0.0
        %1580 = vmatpush1.msra.mxu0 0.0
        %1581 = vmatprep.subr.mxu0 0.0
        %1582 = vmatpush1.msra.mxu0 0.0
        %1583 = vmatprep.subr.mxu0 0.0
        %1584 = vmatpush1.msra.mxu0 0.0
        %1585 = vmatprep.subr.mxu0 0.0
        %1586 = vmatpush1.msra.mxu0 0.0
        %1587 = vmatprep.subr.mxu0 0.0
        %1588 = vmatpush1.msra.mxu0 0.0
        %1589 = vmatprep.subr.mxu0 0.0
        %1590 = vmatpush1.msra.mxu0 0.0
        %1591 = vmatprep.subr.mxu0 0.0
        %1592 = vmatpush1.msra.mxu0 0.0
        %1593 = vmatprep.subr.mxu0 0.0
        %1594 = vmatpush1.msra.mxu0 0.0
        %1595 = vmatprep.subr.mxu0 0.0
        %1596 = vmatpush1.msra.mxu0 0.0
        %1597 = vmatprep.subr.mxu0 0.0
        %1598 = vmatpush1.msra.mxu0 0.0
        %1599 = vmatprep.subr.mxu0 0.0
        %1600 = vmatpush1.msra.mxu0 0.0
        %1601 = vmatprep.subr.mxu0 0.0
        %1602 = vmatpush1.msra.mxu0 0.0
        %1603 = vmatprep.subr.mxu0 0.0
        %1604 = vmatpush1.msra.mxu0 0.0
        %1605 = vmatprep.subr.mxu0 0.0
        %1606 = vmatpush1.msra.mxu0 0.0
        %1607 = vmatprep.subr.mxu0 0.0
        %1608 = vmatpush1.msra.mxu0 0.0
        %1609 = vmatprep.subr.mxu0 0.0
        %1610 = vmatpush1.msra.mxu0 0.0
        %1611 = vmatprep.subr.mxu0 0.0
        %1612 = vmatpush1.msra.mxu0 0.0
        %1613 = vmatprep.subr.mxu0 0.0
        %1614 = vmatpush1.msra.mxu0 0.0
        %1615 = vmatprep.subr.mxu0 0.0
        %1616 = vmatpush1.msra.mxu0 0.0
        %1617 = vmatprep.subr.mxu0 0.0
        %1618 = vmatpush1.msra.mxu0 0.0
        %1619 = vmatprep.subr.mxu0 0.0
        %1620 = vmatpush1.msra.mxu0 0.0
        %1621 = vmatprep.subr.mxu0 0.0
        %1622 = vmatpush1.msra.mxu0 0.0
        %1623 = vmatprep.subr.mxu0 0.0
        %1624 = vmatpush1.msra.mxu0 0.0
        %1625 = vmatprep.mubr.f32.mxu0 0.0
        %1626 = vmatmul.mubr.f32.gmra.mrb[0].mxu0 %v1514
        %v1627 = vpop.f32.mrb[0].mxu0
        %v1628 = vadd.f32 0.0, %v1627
        %v1629 = vpop.f32.mrb[0].mxu0
        %1630 = vmatprep.mubr.f32.mxu0 0.0
        %1631 = vmatmul.mubr.f32.gmra.mrb[0].mxu0 %v1517
        %v1632 = vpop.f32.mrb[0].mxu0
        %v1633 = vadd.f32 0.0, %v1632
        %v1634 = vpop.f32.mrb[0].mxu0
        %1635 = vmatprep.mubr.f32.mxu0 0.0
        %1636 = vmatmul.mubr.f32.gmra.mrb[0].mxu0 %v1520
        %v1637 = vpop.f32.mrb[0].mxu0
        %v1638 = vadd.f32 0.0, %v1637
        %v1639 = vpop.f32.mrb[0].mxu0
        %1640 = vmatprep.mubr.f32.mxu0 0.0
        %1641 = vmatmul.mubr.f32.gmra.mrb[0].mxu0 %v1523
        %v1642 = vpop.f32.mrb[0].mxu0
        %v1643 = vadd.f32 0.0, %v1642
        %v1644 = vpop.f32.mrb[0].mxu0
        %1645 = vmatprep.mubr.f32.mxu0 0.0
        %1646 = vmatmul.mubr.f32.gmra.mrb[0].mxu0 %v1526
        %v1647 = vpop.f32.mrb[0].mxu0
        %v1648 = vadd.f32 0.0, %v1647
        %v1649 = vpop.f32.mrb[0].mxu0
        %1650 = vmatprep.mubr.f32.mxu0 0.0
        %1651 = vmatmul.mubr.f32.gmra.mrb[0].mxu0 %v1529
        %v1652 = vpop.f32.mrb[0].mxu0
        %v1653 = vadd.f32 0.0, %v1652
        %v1654 = vpop.f32.mrb[0].mxu0
        %1655 = vmatprep.mubr.f32.mxu0 0.0
        %1656 = vmatmul.mubr.f32.gmra.mrb[0].mxu0 %v1532
        %v1657 = vpop.f32.mrb[0].mxu0
        %v1658 = vadd.f32 0.0, %v1657
        %v1659 = vpop.f32.mrb[0].mxu0
        %1660 = vmatprep.mubr.f32.mxu0 0.0
        %1661 = vmatmul.mubr.f32.gmra.mrb[0].mxu0 %v1535
        %v1662 = vpop.f32.mrb[0].mxu0
        %v1663 = vadd.f32 0.0, %v1662
        %v1664 = vpop.f32.mrb[0].mxu0
        %1665 = vmatprep.mubr.f32.mxu0 0.0
        %1666 = vmatmul.mubr.f32.gmra.mrb[0].mxu0 %v1538
        %v1667 = vpop.f32.mrb[0].mxu0
        %v1668 = vadd.f32 0.0, %v1667
        %v1669 = vpop.f32.mrb[0].mxu0
        %1670 = vmatprep.mubr.f32.mxu0 0.0
        %1671 = vmatmul.mubr.f32.gmra.mrb[0].mxu0 %v1541
        %v1672 = vpop.f32.mrb[0].mxu0
        %v1673 = vadd.f32 0.0, %v1672
        %v1674 = vpop.f32.mrb[0].mxu0
        %1675 = vmatprep.mubr.f32.mxu0 0.0
        %1676 = vmatmul.mubr.f32.gmra.mrb[0].mxu0 %v1544
        %v1677 = vpop.f32.mrb[0].mxu0
        %v1678 = vadd.f32 0.0, %v1677
        %v1679 = vpop.f32.mrb[0].mxu0
        %1680 = vmatprep.mubr.f32.mxu0 0.0
        %1681 = vmatmul.mubr.f32.gmra.mrb[0].mxu0 %v1547
        %v1682 = vpop.f32.mrb[0].mxu0
        %v1683 = vadd.f32 0.0, %v1682
        %v1684 = vpop.f32.mrb[0].mxu0
        %1685 = vmatprep.mubr.f32.mxu0 0.0
        %1686 = vmatmul.mubr.f32.gmra.mrb[0].mxu0 %v1550
        %v1687 = vpop.f32.mrb[0].mxu0
        %v1688 = vadd.f32 0.0, %v1687
        %v1689 = vpop.f32.mrb[0].mxu0
        %1690 = vmatprep.mubr.f32.mxu0 0.0
        %1691 = vmatmul.mubr.f32.gmra.mrb[0].mxu0 %v1553
        %v1692 = vpop.f32.mrb[0].mxu0
        %v1693 = vadd.f32 0.0, %v1692
        %v1694 = vpop.f32.mrb[0].mxu0
        %1695 = vmatprep.mubr.f32.mxu0 0.0
        %1696 = vmatmul.mubr.f32.gmra.mrb[0].mxu0 %v1556
        %v1697 = vpop.f32.mrb[0].mxu0
        %v1698 = vadd.f32 0.0, %v1697
        %v1699 = vpop.f32.mrb[0].mxu0
        %1700 = vmatprep.mubr.f32.mxu0 0.0
        %1701 = vmatmul.mubr.f32.gmra.mrb[0].mxu0 %v1559
        %v1702 = vpop.f32.mrb[0].mxu0
        %v1703 = vadd.f32 0.0, %v1702
        %v1704 = vpop.f32.mrb[0].mxu0
        %1705 = vdwg.mxu0
        %v1706 = vadd.f32 %v1488, %v1628
        %v1707 = vadd.f32 %v1489, %v1633
        %v1708 = vadd.f32 %v1490, %v1638
        %v1709 = vadd.f32 %v1491, %v1643
        %v1710 = vadd.f32 %v1492, %v1648
        %v1711 = vadd.f32 %v1493, %v1653
        %v1712 = vadd.f32 %v1494, %v1658
        %v1713 = vadd.f32 %v1495, %v1663
        %v1714 = vadd.f32 %v1496, %v1668
        %v1715 = vadd.f32 %v1497, %v1673
        %v1716 = vadd.f32 %v1498, %v1678
        %v1717 = vadd.f32 %v1499, %v1683
        %v1718 = vadd.f32 %v1500, %v1688
        %v1719 = vadd.f32 %v1501, %v1693
        %v1720 = vadd.f32 %v1502, %v1698
        %v1721 = vadd.f32 %v1503, %v1703
        %s1722 = scalar_lea.vmem %s3, 128
        %v1723 = vld [vmem:[%s1722] sm:$0xff]
        %v1724 = vld [vmem:[%s1722 + $0x8] sm:$0xff]
        %v1725 = vld [vmem:[%s1722 + $0x10] sm:$0xff]
        %v1726 = vld [vmem:[%s1722 + $0x18] sm:$0xff]
        %v1727 = vld [vmem:[%s1722 + $0x20] sm:$0xff]
        %v1728 = vld [vmem:[%s1722 + $0x28] sm:$0xff]
        %v1729 = vld [vmem:[%s1722 + $0x30] sm:$0xff]
        %v1730 = vld [vmem:[%s1722 + $0x38] sm:$0xff]
        %v1732 = vsel %vm1288, %v1121, 0
        %v1735 = vsel %vm1288, %v1126, 0
        %v1738 = vsel %vm1288, %v1131, 0
        %v1741 = vsel %vm1288, %v1136, 0
        %v1744 = vsel %vm1288, %v1141, 0
        %v1747 = vsel %vm1288, %v1146, 0
        %v1750 = vsel %vm1288, %v1151, 0
        %v1753 = vsel %vm1288, %v1156, 0
        %v1756 = vsel %vm1288, %v1161, 0
        %v1759 = vsel %vm1288, %v1166, 0
        %v1762 = vsel %vm1288, %v1171, 0
        %v1765 = vsel %vm1288, %v1176, 0
        %v1768 = vsel %vm1288, %v1181, 0
        %v1771 = vsel %vm1288, %v1186, 0
        %v1774 = vsel %vm1288, %v1191, 0
        %v1777 = vsel %vm1288, %v1196, 0
        %1779 = vmatprep.subr.mxu0 0.0
        %1780 = vmatpush1.msra.mxu0 %v1723
        %1781 = vmatprep.subr.mxu0 0.0
        %1782 = vmatpush1.msra.mxu0 %v1724
        %1783 = vmatprep.subr.mxu0 0.0
        %1784 = vmatpush1.msra.mxu0 %v1725
        %1785 = vmatprep.subr.mxu0 0.0
        %1786 = vmatpush1.msra.mxu0 %v1726
        %1787 = vmatprep.subr.mxu0 0.0
        %1788 = vmatpush1.msra.mxu0 %v1727
        %1789 = vmatprep.subr.mxu0 0.0
        %1790 = vmatpush1.msra.mxu0 %v1728
        %1791 = vmatprep.subr.mxu0 0.0
        %1792 = vmatpush1.msra.mxu0 %v1729
        %1793 = vmatprep.subr.mxu0 0.0
        %1794 = vmatpush1.msra.mxu0 %v1730
        %1795 = vmatprep.subr.mxu0 0.0
        %1796 = vmatpush1.msra.mxu0 0.0
        %1797 = vmatprep.subr.mxu0 0.0
        %1798 = vmatpush1.msra.mxu0 0.0
        %1799 = vmatprep.subr.mxu0 0.0
        %1800 = vmatpush1.msra.mxu0 0.0
        %1801 = vmatprep.subr.mxu0 0.0
        %1802 = vmatpush1.msra.mxu0 0.0
        %1803 = vmatprep.subr.mxu0 0.0
        %1804 = vmatpush1.msra.mxu0 0.0
        %1805 = vmatprep.subr.mxu0 0.0
        %1806 = vmatpush1.msra.mxu0 0.0
        %1807 = vmatprep.subr.mxu0 0.0
        %1808 = vmatpush1.msra.mxu0 0.0
        %1809 = vmatprep.subr.mxu0 0.0
        %1810 = vmatpush1.msra.mxu0 0.0
        %1811 = vmatprep.subr.mxu0 0.0
        %1812 = vmatpush1.msra.mxu0 0.0
        %1813 = vmatprep.subr.mxu0 0.0
        %1814 = vmatpush1.msra.mxu0 0.0
        %1815 = vmatprep.subr.mxu0 0.0
        %1816 = vmatpush1.msra.mxu0 0.0
        %1817 = vmatprep.subr.mxu0 0.0
        %1818 = vmatpush1.msra.mxu0 0.0
        %1819 = vmatprep.subr.mxu0 0.0
        %1820 = vmatpush1.msra.mxu0 0.0
        %1821 = vmatprep.subr.mxu0 0.0
        %1822 = vmatpush1.msra.mxu0 0.0
        %1823 = vmatprep.subr.mxu0 0.0
        %1824 = vmatpush1.msra.mxu0 0.0
        %1825 = vmatprep.subr.mxu0 0.0
        %1826 = vmatpush1.msra.mxu0 0.0
        %1827 = vmatprep.subr.mxu0 0.0
        %1828 = vmatpush1.msra.mxu0 0.0
        %1829 = vmatprep.subr.mxu0 0.0
        %1830 = vmatpush1.msra.mxu0 0.0
        %1831 = vmatprep.subr.mxu0 0.0
        %1832 = vmatpush1.msra.mxu0 0.0
        %1833 = vmatprep.subr.mxu0 0.0
        %1834 = vmatpush1.msra.mxu0 0.0
        %1835 = vmatprep.subr.mxu0 0.0
        %1836 = vmatpush1.msra.mxu0 0.0
        %1837 = vmatprep.subr.mxu0 0.0
        %1838 = vmatpush1.msra.mxu0 0.0
        %1839 = vmatprep.subr.mxu0 0.0
        %1840 = vmatpush1.msra.mxu0 0.0
        %1841 = vmatprep.subr.mxu0 0.0
        %1842 = vmatpush1.msra.mxu0 0.0
        %1843 = vmatprep.mubr.f32.mxu0 0.0
        %1844 = vmatmul.mubr.f32.gmra.mrb[0].mxu0 %v1732
        %v1845 = vpop.f32.mrb[0].mxu0
        %v1846 = vadd.f32 0.0, %v1845
        %v1847 = vpop.f32.mrb[0].mxu0
        %1848 = vmatprep.mubr.f32.mxu0 0.0
        %1849 = vmatmul.mubr.f32.gmra.mrb[0].mxu0 %v1735
        %v1850 = vpop.f32.mrb[0].mxu0
        %v1851 = vadd.f32 0.0, %v1850
        %v1852 = vpop.f32.mrb[0].mxu0
        %1853 = vmatprep.mubr.f32.mxu0 0.0
        %1854 = vmatmul.mubr.f32.gmra.mrb[0].mxu0 %v1738
        %v1855 = vpop.f32.mrb[0].mxu0
        %v1856 = vadd.f32 0.0, %v1855
        %v1857 = vpop.f32.mrb[0].mxu0
        %1858 = vmatprep.mubr.f32.mxu0 0.0
        %1859 = vmatmul.mubr.f32.gmra.mrb[0].mxu0 %v1741
        %v1860 = vpop.f32.mrb[0].mxu0
        %v1861 = vadd.f32 0.0, %v1860
        %v1862 = vpop.f32.mrb[0].mxu0
        %1863 = vmatprep.mubr.f32.mxu0 0.0
        %1864 = vmatmul.mubr.f32.gmra.mrb[0].mxu0 %v1744
        %v1865 = vpop.f32.mrb[0].mxu0
        %v1866 = vadd.f32 0.0, %v1865
        %v1867 = vpop.f32.mrb[0].mxu0
        %1868 = vmatprep.mubr.f32.mxu0 0.0
        %1869 = vmatmul.mubr.f32.gmra.mrb[0].mxu0 %v1747
        %v1870 = vpop.f32.mrb[0].mxu0
        %v1871 = vadd.f32 0.0, %v1870
        %v1872 = vpop.f32.mrb[0].mxu0
        %1873 = vmatprep.mubr.f32.mxu0 0.0
        %1874 = vmatmul.mubr.f32.gmra.mrb[0].mxu0 %v1750
        %v1875 = vpop.f32.mrb[0].mxu0
        %v1876 = vadd.f32 0.0, %v1875
        %v1877 = vpop.f32.mrb[0].mxu0
        %1878 = vmatprep.mubr.f32.mxu0 0.0
        %1879 = vmatmul.mubr.f32.gmra.mrb[0].mxu0 %v1753
        %v1880 = vpop.f32.mrb[0].mxu0
        %v1881 = vadd.f32 0.0, %v1880
        %v1882 = vpop.f32.mrb[0].mxu0
        %1883 = vmatprep.mubr.f32.mxu0 0.0
        %1884 = vmatmul.mubr.f32.gmra.mrb[0].mxu0 %v1756
        %v1885 = vpop.f32.mrb[0].mxu0
        %v1886 = vadd.f32 0.0, %v1885
        %v1887 = vpop.f32.mrb[0].mxu0
        %1888 = vmatprep.mubr.f32.mxu0 0.0
        %1889 = vmatmul.mubr.f32.gmra.mrb[0].mxu0 %v1759
        %v1890 = vpop.f32.mrb[0].mxu0
        %v1891 = vadd.f32 0.0, %v1890
        %v1892 = vpop.f32.mrb[0].mxu0
        %1893 = vmatprep.mubr.f32.mxu0 0.0
        %1894 = vmatmul.mubr.f32.gmra.mrb[0].mxu0 %v1762
        %v1895 = vpop.f32.mrb[0].mxu0
        %v1896 = vadd.f32 0.0, %v1895
        %v1897 = vpop.f32.mrb[0].mxu0
        %1898 = vmatprep.mubr.f32.mxu0 0.0
        %1899 = vmatmul.mubr.f32.gmra.mrb[0].mxu0 %v1765
        %v1900 = vpop.f32.mrb[0].mxu0
        %v1901 = vadd.f32 0.0, %v1900
        %v1902 = vpop.f32.mrb[0].mxu0
        %1903 = vmatprep.mubr.f32.mxu0 0.0
        %1904 = vmatmul.mubr.f32.gmra.mrb[0].mxu0 %v1768
        %v1905 = vpop.f32.mrb[0].mxu0
        %v1906 = vadd.f32 0.0, %v1905
        %v1907 = vpop.f32.mrb[0].mxu0
        %1908 = vmatprep.mubr.f32.mxu0 0.0
        %1909 = vmatmul.mubr.f32.gmra.mrb[0].mxu0 %v1771
        %v1910 = vpop.f32.mrb[0].mxu0
        %v1911 = vadd.f32 0.0, %v1910
        %v1912 = vpop.f32.mrb[0].mxu0
        %1913 = vmatprep.mubr.f32.mxu0 0.0
        %1914 = vmatmul.mubr.f32.gmra.mrb[0].mxu0 %v1774
        %v1915 = vpop.f32.mrb[0].mxu0
        %v1916 = vadd.f32 0.0, %v1915
        %v1917 = vpop.f32.mrb[0].mxu0
        %1918 = vmatprep.mubr.f32.mxu0 0.0
        %1919 = vmatmul.mubr.f32.gmra.mrb[0].mxu0 %v1777
        %v1920 = vpop.f32.mrb[0].mxu0
        %v1921 = vadd.f32 0.0, %v1920
        %v1922 = vpop.f32.mrb[0].mxu0
        %1923 = vdwg.mxu0
        %v1924 = vadd.f32 %v1706, %v1846
        %v1925 = vadd.f32 %v1707, %v1851
        %v1926 = vadd.f32 %v1708, %v1856
        %v1927 = vadd.f32 %v1709, %v1861
        %v1928 = vadd.f32 %v1710, %v1866
        %v1929 = vadd.f32 %v1711, %v1871
        %v1930 = vadd.f32 %v1712, %v1876
        %v1931 = vadd.f32 %v1713, %v1881
        %v1932 = vadd.f32 %v1714, %v1886
        %v1933 = vadd.f32 %v1715, %v1891
        %v1934 = vadd.f32 %v1716, %v1896
        %v1935 = vadd.f32 %v1717, %v1901
        %v1936 = vadd.f32 %v1718, %v1906
        %v1937 = vadd.f32 %v1719, %v1911
        %v1938 = vadd.f32 %v1720, %v1916
        %v1939 = vadd.f32 %v1721, %v1921
        %s1940 = scalar_lea.vmem %s3, 192
        %v1941 = vld [vmem:[%s1940] sm:$0xff]
        %v1942 = vld [vmem:[%s1940 + $0x8] sm:$0xff]
        %v1943 = vld [vmem:[%s1940 + $0x10] sm:$0xff]
        %v1944 = vld [vmem:[%s1940 + $0x18] sm:$0xff]
        %v1945 = vld [vmem:[%s1940 + $0x20] sm:$0xff]
        %v1946 = vld [vmem:[%s1940 + $0x28] sm:$0xff]
        %v1947 = vld [vmem:[%s1940 + $0x30] sm:$0xff]
        %v1948 = vld [vmem:[%s1940 + $0x38] sm:$0xff]
        %v1950 = vsel %vm1288, %v1201, 0
        %v1953 = vsel %vm1288, %v1206, 0
        %v1956 = vsel %vm1288, %v1211, 0
        %v1959 = vsel %vm1288, %v1216, 0
        %v1962 = vsel %vm1288, %v1221, 0
        %v1965 = vsel %vm1288, %v1226, 0
        %v1968 = vsel %vm1288, %v1231, 0
        %v1971 = vsel %vm1288, %v1236, 0
        %v1974 = vsel %vm1288, %v1241, 0
        %v1977 = vsel %vm1288, %v1246, 0
        %v1980 = vsel %vm1288, %v1251, 0
        %v1983 = vsel %vm1288, %v1256, 0
        %v1986 = vsel %vm1288, %v1261, 0
        %v1989 = vsel %vm1288, %v1266, 0
        %v1992 = vsel %vm1288, %v1271, 0
        %v1995 = vsel %vm1288, %v1276, 0
        %1997 = vmatprep.subr.mxu0 0.0
        %1998 = vmatpush1.msra.mxu0 %v1941
        %1999 = vmatprep.subr.mxu0 0.0
        %2000 = vmatpush1.msra.mxu0 %v1942
        %2001 = vmatprep.subr.mxu0 0.0
        %2002 = vmatpush1.msra.mxu0 %v1943
        %2003 = vmatprep.subr.mxu0 0.0
        %2004 = vmatpush1.msra.mxu0 %v1944
        %2005 = vmatprep.subr.mxu0 0.0
        %2006 = vmatpush1.msra.mxu0 %v1945
        %2007 = vmatprep.subr.mxu0 0.0
        %2008 = vmatpush1.msra.mxu0 %v1946
        %2009 = vmatprep.subr.mxu0 0.0
        %2010 = vmatpush1.msra.mxu0 %v1947
        %2011 = vmatprep.subr.mxu0 0.0
        %2012 = vmatpush1.msra.mxu0 %v1948
        %2013 = vmatprep.subr.mxu0 0.0
        %2014 = vmatpush1.msra.mxu0 0.0
        %2015 = vmatprep.subr.mxu0 0.0
        %2016 = vmatpush1.msra.mxu0 0.0
        %2017 = vmatprep.subr.mxu0 0.0
        %2018 = vmatpush1.msra.mxu0 0.0
        %2019 = vmatprep.subr.mxu0 0.0
        %2020 = vmatpush1.msra.mxu0 0.0
        %2021 = vmatprep.subr.mxu0 0.0
        %2022 = vmatpush1.msra.mxu0 0.0
        %2023 = vmatprep.subr.mxu0 0.0
        %2024 = vmatpush1.msra.mxu0 0.0
        %2025 = vmatprep.subr.mxu0 0.0
        %2026 = vmatpush1.msra.mxu0 0.0
        %2027 = vmatprep.subr.mxu0 0.0
        %2028 = vmatpush1.msra.mxu0 0.0
        %2029 = vmatprep.subr.mxu0 0.0
        %2030 = vmatpush1.msra.mxu0 0.0
        %2031 = vmatprep.subr.mxu0 0.0
        %2032 = vmatpush1.msra.mxu0 0.0
        %2033 = vmatprep.subr.mxu0 0.0
        %2034 = vmatpush1.msra.mxu0 0.0
        %2035 = vmatprep.subr.mxu0 0.0
        %2036 = vmatpush1.msra.mxu0 0.0
        %2037 = vmatprep.subr.mxu0 0.0
        %2038 = vmatpush1.msra.mxu0 0.0
        %2039 = vmatprep.subr.mxu0 0.0
        %2040 = vmatpush1.msra.mxu0 0.0
        %2041 = vmatprep.subr.mxu0 0.0
        %2042 = vmatpush1.msra.mxu0 0.0
        %2043 = vmatprep.subr.mxu0 0.0
        %2044 = vmatpush1.msra.mxu0 0.0
        %2045 = vmatprep.subr.mxu0 0.0
        %2046 = vmatpush1.msra.mxu0 0.0
        %2047 = vmatprep.subr.mxu0 0.0
        %2048 = vmatpush1.msra.mxu0 0.0
        %2049 = vmatprep.subr.mxu0 0.0
        %2050 = vmatpush1.msra.mxu0 0.0
        %2051 = vmatprep.subr.mxu0 0.0
        %2052 = vmatpush1.msra.mxu0 0.0
        %2053 = vmatprep.subr.mxu0 0.0
        %2054 = vmatpush1.msra.mxu0 0.0
        %2055 = vmatprep.subr.mxu0 0.0
        %2056 = vmatpush1.msra.mxu0 0.0
        %2057 = vmatprep.subr.mxu0 0.0
        %2058 = vmatpush1.msra.mxu0 0.0
        %2059 = vmatprep.subr.mxu0 0.0
        %2060 = vmatpush1.msra.mxu0 0.0
        %2061 = vmatprep.mubr.f32.mxu0 0.0
        %2062 = vmatmul.mubr.f32.gmra.mrb[0].mxu0 %v1950
        %v2063 = vpop.f32.mrb[0].mxu0
        %v2064 = vadd.f32 0.0, %v2063
        %v2065 = vpop.f32.mrb[0].mxu0
        %2066 = vmatprep.mubr.f32.mxu0 0.0
        %2067 = vmatmul.mubr.f32.gmra.mrb[0].mxu0 %v1953
        %v2068 = vpop.f32.mrb[0].mxu0
        %v2069 = vadd.f32 0.0, %v2068
        %v2070 = vpop.f32.mrb[0].mxu0
        %2071 = vmatprep.mubr.f32.mxu0 0.0
        %2072 = vmatmul.mubr.f32.gmra.mrb[0].mxu0 %v1956
        %v2073 = vpop.f32.mrb[0].mxu0
        %v2074 = vadd.f32 0.0, %v2073
        %v2075 = vpop.f32.mrb[0].mxu0
        %2076 = vmatprep.mubr.f32.mxu0 0.0
        %2077 = vmatmul.mubr.f32.gmra.mrb[0].mxu0 %v1959
        %v2078 = vpop.f32.mrb[0].mxu0
        %v2079 = vadd.f32 0.0, %v2078
        %v2080 = vpop.f32.mrb[0].mxu0
        %2081 = vmatprep.mubr.f32.mxu0 0.0
        %2082 = vmatmul.mubr.f32.gmra.mrb[0].mxu0 %v1962
        %v2083 = vpop.f32.mrb[0].mxu0
        %v2084 = vadd.f32 0.0, %v2083
        %v2085 = vpop.f32.mrb[0].mxu0
        %2086 = vmatprep.mubr.f32.mxu0 0.0
        %2087 = vmatmul.mubr.f32.gmra.mrb[0].mxu0 %v1965
        %v2088 = vpop.f32.mrb[0].mxu0
        %v2089 = vadd.f32 0.0, %v2088
        %v2090 = vpop.f32.mrb[0].mxu0
        %2091 = vmatprep.mubr.f32.mxu0 0.0
        %2092 = vmatmul.mubr.f32.gmra.mrb[0].mxu0 %v1968
        %v2093 = vpop.f32.mrb[0].mxu0
        %v2094 = vadd.f32 0.0, %v2093
        %v2095 = vpop.f32.mrb[0].mxu0
        %2096 = vmatprep.mubr.f32.mxu0 0.0
        %2097 = vmatmul.mubr.f32.gmra.mrb[0].mxu0 %v1971
        %v2098 = vpop.f32.mrb[0].mxu0
        %v2099 = vadd.f32 0.0, %v2098
        %v2100 = vpop.f32.mrb[0].mxu0
        %2101 = vmatprep.mubr.f32.mxu0 0.0
        %2102 = vmatmul.mubr.f32.gmra.mrb[0].mxu0 %v1974
        %v2103 = vpop.f32.mrb[0].mxu0
        %v2104 = vadd.f32 0.0, %v2103
        %v2105 = vpop.f32.mrb[0].mxu0
        %2106 = vmatprep.mubr.f32.mxu0 0.0
        %2107 = vmatmul.mubr.f32.gmra.mrb[0].mxu0 %v1977
        %v2108 = vpop.f32.mrb[0].mxu0
        %v2109 = vadd.f32 0.0, %v2108
        %v2110 = vpop.f32.mrb[0].mxu0
        %2111 = vmatprep.mubr.f32.mxu0 0.0
        %2112 = vmatmul.mubr.f32.gmra.mrb[0].mxu0 %v1980
        %v2113 = vpop.f32.mrb[0].mxu0
        %v2114 = vadd.f32 0.0, %v2113
        %v2115 = vpop.f32.mrb[0].mxu0
        %2116 = vmatprep.mubr.f32.mxu0 0.0
        %2117 = vmatmul.mubr.f32.gmra.mrb[0].mxu0 %v1983
        %v2118 = vpop.f32.mrb[0].mxu0
        %v2119 = vadd.f32 0.0, %v2118
        %v2120 = vpop.f32.mrb[0].mxu0
        %2121 = vmatprep.mubr.f32.mxu0 0.0
        %2122 = vmatmul.mubr.f32.gmra.mrb[0].mxu0 %v1986
        %v2123 = vpop.f32.mrb[0].mxu0
        %v2124 = vadd.f32 0.0, %v2123
        %v2125 = vpop.f32.mrb[0].mxu0
        %2126 = vmatprep.mubr.f32.mxu0 0.0
        %2127 = vmatmul.mubr.f32.gmra.mrb[0].mxu0 %v1989
        %v2128 = vpop.f32.mrb[0].mxu0
        %v2129 = vadd.f32 0.0, %v2128
        %v2130 = vpop.f32.mrb[0].mxu0
        %2131 = vmatprep.mubr.f32.mxu0 0.0
        %2132 = vmatmul.mubr.f32.gmra.mrb[0].mxu0 %v1992
        %v2133 = vpop.f32.mrb[0].mxu0
        %v2134 = vadd.f32 0.0, %v2133
        %v2135 = vpop.f32.mrb[0].mxu0
        %2136 = vmatprep.mubr.f32.mxu0 0.0
        %2137 = vmatmul.mubr.f32.gmra.mrb[0].mxu0 %v1995
        %v2138 = vpop.f32.mrb[0].mxu0
        %v2139 = vadd.f32 0.0, %v2138
        %v2140 = vpop.f32.mrb[0].mxu0
        %2141 = vdwg.mxu0
        %v2142 = vadd.f32 %v1924, %v2064
        %v2143 = vadd.f32 %v1925, %v2069
        %v2144 = vadd.f32 %v1926, %v2074
        %v2145 = vadd.f32 %v1927, %v2079
        %v2146 = vadd.f32 %v1928, %v2084
        %v2147 = vadd.f32 %v1929, %v2089
        %v2148 = vadd.f32 %v1930, %v2094
        %v2149 = vadd.f32 %v1931, %v2099
        %v2150 = vadd.f32 %v1932, %v2104
        %v2151 = vadd.f32 %v1933, %v2109
        %v2152 = vadd.f32 %v1934, %v2114
        %v2153 = vadd.f32 %v1935, %v2119
        %v2154 = vadd.f32 %v1936, %v2124
        %v2155 = vadd.f32 %v1937, %v2129
        %v2156 = vadd.f32 %v1938, %v2134
        %v2157 = vadd.f32 %v1939, %v2139
        %v2158 = vmul.f32 %v2142, 0.2
        %v2159 = vmul.f32 %v2143, 0.2
        %v2160 = vmul.f32 %v2144, 0.2
        %v2161 = vmul.f32 %v2145, 0.2
        %v2162 = vmul.f32 %v2146, 0.2
        %v2163 = vmul.f32 %v2147, 0.2
        %v2164 = vmul.f32 %v2148, 0.2
        %v2165 = vmul.f32 %v2149, 0.2
        %v2166 = vmul.f32 %v2150, 0.2
        %v2167 = vmul.f32 %v2151, 0.2
        %v2168 = vmul.f32 %v2152, 0.2
        %v2169 = vmul.f32 %v2153, 0.2
        %v2170 = vmul.f32 %v2154, 0.2
        %v2171 = vmul.f32 %v2155, 0.2
        %v2172 = vmul.f32 %v2156, 0.2
        %v2173 = vmul.f32 %v2157, 0.2
        %v2174 = vmax.f32 %v2142, %v2158
        %v2175 = vmax.f32 %v2143, %v2159
        %v2176 = vmax.f32 %v2144, %v2160
        %v2177 = vmax.f32 %v2145, %v2161
        %v2178 = vmax.f32 %v2146, %v2162
        %v2179 = vmax.f32 %v2147, %v2163
        %v2180 = vmax.f32 %v2148, %v2164
        %v2181 = vmax.f32 %v2149, %v2165
        %v2182 = vmax.f32 %v2150, %v2166
        %v2183 = vmax.f32 %v2151, %v2167
        %v2184 = vmax.f32 %v2152, %v2168
        %v2185 = vmax.f32 %v2153, %v2169
        %v2186 = vmax.f32 %v2154, %v2170
        %v2187 = vmax.f32 %v2155, %v2171
        %v2188 = vmax.f32 %v2156, %v2172
        %v2189 = vmax.f32 %v2157, %v2173
        %v2190 = vld [vmem:[%s5] sm:$0xff]
        %v2191 = vld [vmem:[%s5 + $0x8] sm:$0xff]
        %v2192 = vld [vmem:[%s5 + $0x10] sm:$0xff]
        %v2193 = vld [vmem:[%s5 + $0x18] sm:$0xff]
        %v2194 = vld [vmem:[%s5 + $0x20] sm:$0xff]
        %v2195 = vld [vmem:[%s5 + $0x28] sm:$0xff]
        %v2196 = vld [vmem:[%s5 + $0x30] sm:$0xff]
        %v2197 = vld [vmem:[%s5 + $0x38] sm:$0xff]
        %v2198 = vld [vmem:[%s5 + $0x40] sm:$0xff]
        %v2199 = vld [vmem:[%s5 + $0x48] sm:$0xff]
        %v2200 = vld [vmem:[%s5 + $0x50] sm:$0xff]
        %v2201 = vld [vmem:[%s5 + $0x58] sm:$0xff]
        %v2202 = vld [vmem:[%s5 + $0x60] sm:$0xff]
        %v2203 = vld [vmem:[%s5 + $0x68] sm:$0xff]
        %v2204 = vld [vmem:[%s5 + $0x70] sm:$0xff]
        %v2205 = vld [vmem:[%s5 + $0x78] sm:$0xff]
        %v2206 = vld [vmem:[%s5 + $0x80] sm:$0xff]
        %v2207 = vld [vmem:[%s5 + $0x88] sm:$0xff]
        %v2208 = vld [vmem:[%s5 + $0x90] sm:$0xff]
        %v2209 = vld [vmem:[%s5 + $0x98] sm:$0xff]
        %v2210 = vld [vmem:[%s5 + $0xa0] sm:$0xff]
        %v2211 = vld [vmem:[%s5 + $0xa8] sm:$0xff]
        %v2212 = vld [vmem:[%s5 + $0xb0] sm:$0xff]
        %v2213 = vld [vmem:[%s5 + $0xb8] sm:$0xff]
        %v2214 = vld [vmem:[%s5 + $0xc0] sm:$0xff]
        %v2215 = vld [vmem:[%s5 + $0xc8] sm:$0xff]
        %v2216 = vld [vmem:[%s5 + $0xd0] sm:$0xff]
        %v2217 = vld [vmem:[%s5 + $0xd8] sm:$0xff]
        %v2218 = vld [vmem:[%s5 + $0xe0] sm:$0xff]
        %v2219 = vld [vmem:[%s5 + $0xe8] sm:$0xff]
        %v2220 = vld [vmem:[%s5 + $0xf0] sm:$0xff]
        %v2221 = vld [vmem:[%s5 + $0xf8] sm:$0xff]
        %v2222 = vld [vmem:[%s5 + $0x100] sm:$0xff]
        %v2223 = vld [vmem:[%s5 + $0x108] sm:$0xff]
        %v2224 = vld [vmem:[%s5 + $0x110] sm:$0xff]
        %v2225 = vld [vmem:[%s5 + $0x118] sm:$0xff]
        %v2226 = vld [vmem:[%s5 + $0x120] sm:$0xff]
        %v2227 = vld [vmem:[%s5 + $0x128] sm:$0xff]
        %v2228 = vld [vmem:[%s5 + $0x130] sm:$0xff]
        %v2229 = vld [vmem:[%s5 + $0x138] sm:$0xff]
        %v2230 = vld [vmem:[%s5 + $0x140] sm:$0xff]
        %v2231 = vld [vmem:[%s5 + $0x148] sm:$0xff]
        %v2232 = vld [vmem:[%s5 + $0x150] sm:$0xff]
        %v2233 = vld [vmem:[%s5 + $0x158] sm:$0xff]
        %v2234 = vld [vmem:[%s5 + $0x160] sm:$0xff]
        %v2235 = vld [vmem:[%s5 + $0x168] sm:$0xff]
        %v2236 = vld [vmem:[%s5 + $0x170] sm:$0xff]
        %v2237 = vld [vmem:[%s5 + $0x178] sm:$0xff]
        %v2238 = vld [vmem:[%s5 + $0x180] sm:$0xff]
        %v2239 = vld [vmem:[%s5 + $0x188] sm:$0xff]
        %v2240 = vld [vmem:[%s5 + $0x190] sm:$0xff]
        %v2241 = vld [vmem:[%s5 + $0x198] sm:$0xff]
        %v2242 = vld [vmem:[%s5 + $0x1a0] sm:$0xff]
        %v2243 = vld [vmem:[%s5 + $0x1a8] sm:$0xff]
        %v2244 = vld [vmem:[%s5 + $0x1b0] sm:$0xff]
        %v2245 = vld [vmem:[%s5 + $0x1b8] sm:$0xff]
        %v2246 = vld [vmem:[%s5 + $0x1c0] sm:$0xff]
        %v2247 = vld [vmem:[%s5 + $0x1c8] sm:$0xff]
        %v2248 = vld [vmem:[%s5 + $0x1d0] sm:$0xff]
        %v2249 = vld [vmem:[%s5 + $0x1d8] sm:$0xff]
        %v2250 = vld [vmem:[%s5 + $0x1e0] sm:$0xff]
        %v2251 = vld [vmem:[%s5 + $0x1e8] sm:$0xff]
        %v2252 = vld [vmem:[%s5 + $0x1f0] sm:$0xff]
        %v2253 = vld [vmem:[%s5 + $0x1f8] sm:$0xff]
        %2254 = vmatprep.subr.mxu0 0.0
        %2255 = vmatpush1.msra.mxu0 %v2174
        %2256 = vmatprep.subr.mxu0 0.0
        %2257 = vmatpush1.msra.mxu0 %v2175
        %2258 = vmatprep.subr.mxu0 0.0
        %2259 = vmatpush1.msra.mxu0 %v2176
        %2260 = vmatprep.subr.mxu0 0.0
        %2261 = vmatpush1.msra.mxu0 %v2177
        %2262 = vmatprep.subr.mxu0 0.0
        %2263 = vmatpush1.msra.mxu0 %v2178
        %2264 = vmatprep.subr.mxu0 0.0
        %2265 = vmatpush1.msra.mxu0 %v2179
        %2266 = vmatprep.subr.mxu0 0.0
        %2267 = vmatpush1.msra.mxu0 %v2180
        %2268 = vmatprep.subr.mxu0 0.0
        %2269 = vmatpush1.msra.mxu0 %v2181
        %2270 = vmatprep.subr.mxu0 0.0
        %2271 = vmatpush1.msra.mxu0 %v2182
        %2272 = vmatprep.subr.mxu0 0.0
        %2273 = vmatpush1.msra.mxu0 %v2183
        %2274 = vmatprep.subr.mxu0 0.0
        %2275 = vmatpush1.msra.mxu0 %v2184
        %2276 = vmatprep.subr.mxu0 0.0
        %2277 = vmatpush1.msra.mxu0 %v2185
        %2278 = vmatprep.subr.mxu0 0.0
        %2279 = vmatpush1.msra.mxu0 %v2186
        %2280 = vmatprep.subr.mxu0 0.0
        %2281 = vmatpush1.msra.mxu0 %v2187
        %2282 = vmatprep.subr.mxu0 0.0
        %2283 = vmatpush1.msra.mxu0 %v2188
        %2284 = vmatprep.subr.mxu0 0.0
        %2285 = vmatpush1.msra.mxu0 %v2189
        %2286 = vmatprep.subr.mxu0 0.0
        %2287 = vmatpush1.msra.mxu0 0.0
        %2288 = vmatprep.subr.mxu0 0.0
        %2289 = vmatpush1.msra.mxu0 0.0
        %2290 = vmatprep.subr.mxu0 0.0
        %2291 = vmatpush1.msra.mxu0 0.0
        %2292 = vmatprep.subr.mxu0 0.0
        %2293 = vmatpush1.msra.mxu0 0.0
        %2294 = vmatprep.subr.mxu0 0.0
        %2295 = vmatpush1.msra.mxu0 0.0
        %2296 = vmatprep.subr.mxu0 0.0
        %2297 = vmatpush1.msra.mxu0 0.0
        %2298 = vmatprep.subr.mxu0 0.0
        %2299 = vmatpush1.msra.mxu0 0.0
        %2300 = vmatprep.subr.mxu0 0.0
        %2301 = vmatpush1.msra.mxu0 0.0
        %2302 = vmatprep.subr.mxu0 0.0
        %2303 = vmatpush1.msra.mxu0 0.0
        %2304 = vmatprep.subr.mxu0 0.0
        %2305 = vmatpush1.msra.mxu0 0.0
        %2306 = vmatprep.subr.mxu0 0.0
        %2307 = vmatpush1.msra.mxu0 0.0
        %2308 = vmatprep.subr.mxu0 0.0
        %2309 = vmatpush1.msra.mxu0 0.0
        %2310 = vmatprep.subr.mxu0 0.0
        %2311 = vmatpush1.msra.mxu0 0.0
        %2312 = vmatprep.subr.mxu0 0.0
        %2313 = vmatpush1.msra.mxu0 0.0
        %2314 = vmatprep.subr.mxu0 0.0
        %2315 = vmatpush1.msra.mxu0 0.0
        %2316 = vmatprep.subr.mxu0 0.0
        %2317 = vmatpush1.msra.mxu0 0.0
        %2318 = vmatprep.mubr.f32.mxu0 0.0
        %2319 = vmatmul.mubr.f32.gmra.mrb[0].mxu0 %v2190
        %v2320 = vpop.f32.mrb[0].mxu0
        %v2321 = vadd.f32 0.0, %v2320
        %v2322 = vpop.f32.mrb[0].mxu0
        %2323 = vmatprep.mubr.f32.mxu0 0.0
        %2324 = vmatmul.mubr.f32.gmra.mrb[0].mxu0 %v2191
        %v2325 = vpop.f32.mrb[0].mxu0
        %v2326 = vadd.f32 0.0, %v2325
        %v2327 = vpop.f32.mrb[0].mxu0
        %2328 = vmatprep.mubr.f32.mxu0 0.0
        %2329 = vmatmul.mubr.f32.gmra.mrb[0].mxu0 %v2192
        %v2330 = vpop.f32.mrb[0].mxu0
        %v2331 = vadd.f32 0.0, %v2330
        %v2332 = vpop.f32.mrb[0].mxu0
        %2333 = vmatprep.mubr.f32.mxu0 0.0
        %2334 = vmatmul.mubr.f32.gmra.mrb[0].mxu0 %v2193
        %v2335 = vpop.f32.mrb[0].mxu0
        %v2336 = vadd.f32 0.0, %v2335
        %v2337 = vpop.f32.mrb[0].mxu0
        %2338 = vmatprep.mubr.f32.mxu0 0.0
        %2339 = vmatmul.mubr.f32.gmra.mrb[0].mxu0 %v2194
        %v2340 = vpop.f32.mrb[0].mxu0
        %v2341 = vadd.f32 0.0, %v2340
        %v2342 = vpop.f32.mrb[0].mxu0
        %2343 = vmatprep.mubr.f32.mxu0 0.0
        %2344 = vmatmul.mubr.f32.gmra.mrb[0].mxu0 %v2195
        %v2345 = vpop.f32.mrb[0].mxu0
        %v2346 = vadd.f32 0.0, %v2345
        %v2347 = vpop.f32.mrb[0].mxu0
        %2348 = vmatprep.mubr.f32.mxu0 0.0
        %2349 = vmatmul.mubr.f32.gmra.mrb[0].mxu0 %v2196
        %v2350 = vpop.f32.mrb[0].mxu0
        %v2351 = vadd.f32 0.0, %v2350
        %v2352 = vpop.f32.mrb[0].mxu0
        %2353 = vmatprep.mubr.f32.mxu0 0.0
        %2354 = vmatmul.mubr.f32.gmra.mrb[0].mxu0 %v2197
        %v2355 = vpop.f32.mrb[0].mxu0
        %v2356 = vadd.f32 0.0, %v2355
        %v2357 = vpop.f32.mrb[0].mxu0
        %2358 = vmatprep.mubr.f32.mxu0 0.0
        %2359 = vmatmul.mubr.f32.gmra.mrb[0].mxu0 %v2198
        %v2360 = vpop.f32.mrb[0].mxu0
        %v2361 = vadd.f32 0.0, %v2360
        %v2362 = vpop.f32.mrb[0].mxu0
        %2363 = vmatprep.mubr.f32.mxu0 0.0
        %2364 = vmatmul.mubr.f32.gmra.mrb[0].mxu0 %v2199
        %v2365 = vpop.f32.mrb[0].mxu0
        %v2366 = vadd.f32 0.0, %v2365
        %v2367 = vpop.f32.mrb[0].mxu0
        %2368 = vmatprep.mubr.f32.mxu0 0.0
        %2369 = vmatmul.mubr.f32.gmra.mrb[0].mxu0 %v2200
        %v2370 = vpop.f32.mrb[0].mxu0
        %v2371 = vadd.f32 0.0, %v2370
        %v2372 = vpop.f32.mrb[0].mxu0
        %2373 = vmatprep.mubr.f32.mxu0 0.0
        %2374 = vmatmul.mubr.f32.gmra.mrb[0].mxu0 %v2201
        %v2375 = vpop.f32.mrb[0].mxu0
        %v2376 = vadd.f32 0.0, %v2375
        %v2377 = vpop.f32.mrb[0].mxu0
        %2378 = vmatprep.mubr.f32.mxu0 0.0
        %2379 = vmatmul.mubr.f32.gmra.mrb[0].mxu0 %v2202
        %v2380 = vpop.f32.mrb[0].mxu0
        %v2381 = vadd.f32 0.0, %v2380
        %v2382 = vpop.f32.mrb[0].mxu0
        %2383 = vmatprep.mubr.f32.mxu0 0.0
        %2384 = vmatmul.mubr.f32.gmra.mrb[0].mxu0 %v2203
        %v2385 = vpop.f32.mrb[0].mxu0
        %v2386 = vadd.f32 0.0, %v2385
        %v2387 = vpop.f32.mrb[0].mxu0
        %2388 = vmatprep.mubr.f32.mxu0 0.0
        %2389 = vmatmul.mubr.f32.gmra.mrb[0].mxu0 %v2204
        %v2390 = vpop.f32.mrb[0].mxu0
        %v2391 = vadd.f32 0.0, %v2390
        %v2392 = vpop.f32.mrb[0].mxu0
        %2393 = vmatprep.mubr.f32.mxu0 0.0
        %2394 = vmatmul.mubr.f32.gmra.mrb[0].mxu0 %v2205
        %v2395 = vpop.f32.mrb[0].mxu0
        %v2396 = vadd.f32 0.0, %v2395
        %v2397 = vpop.f32.mrb[0].mxu0
        %2398 = vmatprep.mubr.f32.mxu0 0.0
        %2399 = vmatmul.mubr.f32.gmra.mrb[0].mxu0 %v2206
        %v2400 = vpop.f32.mrb[0].mxu0
        %v2401 = vadd.f32 0.0, %v2400
        %v2402 = vpop.f32.mrb[0].mxu0
        %2403 = vmatprep.mubr.f32.mxu0 0.0
        %2404 = vmatmul.mubr.f32.gmra.mrb[0].mxu0 %v2207
        %v2405 = vpop.f32.mrb[0].mxu0
        %v2406 = vadd.f32 0.0, %v2405
        %v2407 = vpop.f32.mrb[0].mxu0
        %2408 = vmatprep.mubr.f32.mxu0 0.0
        %2409 = vmatmul.mubr.f32.gmra.mrb[0].mxu0 %v2208
        %v2410 = vpop.f32.mrb[0].mxu0
        %v2411 = vadd.f32 0.0, %v2410
        %v2412 = vpop.f32.mrb[0].mxu0
        %2413 = vmatprep.mubr.f32.mxu0 0.0
        %2414 = vmatmul.mubr.f32.gmra.mrb[0].mxu0 %v2209
        %v2415 = vpop.f32.mrb[0].mxu0
        %v2416 = vadd.f32 0.0, %v2415
        %v2417 = vpop.f32.mrb[0].mxu0
        %2418 = vmatprep.mubr.f32.mxu0 0.0
        %2419 = vmatmul.mubr.f32.gmra.mrb[0].mxu0 %v2210
        %v2420 = vpop.f32.mrb[0].mxu0
        %v2421 = vadd.f32 0.0, %v2420
        %v2422 = vpop.f32.mrb[0].mxu0
        %2423 = vmatprep.mubr.f32.mxu0 0.0
        %2424 = vmatmul.mubr.f32.gmra.mrb[0].mxu0 %v2211
        %v2425 = vpop.f32.mrb[0].mxu0
        %v2426 = vadd.f32 0.0, %v2425
        %v2427 = vpop.f32.mrb[0].mxu0
        %2428 = vmatprep.mubr.f32.mxu0 0.0
        %2429 = vmatmul.mubr.f32.gmra.mrb[0].mxu0 %v2212
        %v2430 = vpop.f32.mrb[0].mxu0
        %v2431 = vadd.f32 0.0, %v2430
        %v2432 = vpop.f32.mrb[0].mxu0
        %2433 = vmatprep.mubr.f32.mxu0 0.0
        %2434 = vmatmul.mubr.f32.gmra.mrb[0].mxu0 %v2213
        %v2435 = vpop.f32.mrb[0].mxu0
        %v2436 = vadd.f32 0.0, %v2435
        %v2437 = vpop.f32.mrb[0].mxu0
        %2438 = vmatprep.mubr.f32.mxu0 0.0
        %2439 = vmatmul.mubr.f32.gmra.mrb[0].mxu0 %v2214
        %v2440 = vpop.f32.mrb[0].mxu0
        %v2441 = vadd.f32 0.0, %v2440
        %v2442 = vpop.f32.mrb[0].mxu0
        %2443 = vmatprep.mubr.f32.mxu0 0.0
        %2444 = vmatmul.mubr.f32.gmra.mrb[0].mxu0 %v2215
        %v2445 = vpop.f32.mrb[0].mxu0
        %v2446 = vadd.f32 0.0, %v2445
        %v2447 = vpop.f32.mrb[0].mxu0
        %2448 = vmatprep.mubr.f32.mxu0 0.0
        %2449 = vmatmul.mubr.f32.gmra.mrb[0].mxu0 %v2216
        %v2450 = vpop.f32.mrb[0].mxu0
        %v2451 = vadd.f32 0.0, %v2450
        %v2452 = vpop.f32.mrb[0].mxu0
        %2453 = vmatprep.mubr.f32.mxu0 0.0
        %2454 = vmatmul.mubr.f32.gmra.mrb[0].mxu0 %v2217
        %v2455 = vpop.f32.mrb[0].mxu0
        %v2456 = vadd.f32 0.0, %v2455
        %v2457 = vpop.f32.mrb[0].mxu0
        %2458 = vmatprep.mubr.f32.mxu0 0.0
        %2459 = vmatmul.mubr.f32.gmra.mrb[0].mxu0 %v2218
        %v2460 = vpop.f32.mrb[0].mxu0
        %v2461 = vadd.f32 0.0, %v2460
        %v2462 = vpop.f32.mrb[0].mxu0
        %2463 = vmatprep.mubr.f32.mxu0 0.0
        %2464 = vmatmul.mubr.f32.gmra.mrb[0].mxu0 %v2219
        %v2465 = vpop.f32.mrb[0].mxu0
        %v2466 = vadd.f32 0.0, %v2465
        %v2467 = vpop.f32.mrb[0].mxu0
        %2468 = vmatprep.mubr.f32.mxu0 0.0
        %2469 = vmatmul.mubr.f32.gmra.mrb[0].mxu0 %v2220
        %v2470 = vpop.f32.mrb[0].mxu0
        %v2471 = vadd.f32 0.0, %v2470
        %v2472 = vpop.f32.mrb[0].mxu0
        %2473 = vmatprep.mubr.f32.mxu0 0.0
        %2474 = vmatmul.mubr.f32.gmra.mrb[0].mxu0 %v2221
        %v2475 = vpop.f32.mrb[0].mxu0
        %v2476 = vadd.f32 0.0, %v2475
        %v2477 = vpop.f32.mrb[0].mxu0
        %2478 = vmatprep.mubr.f32.mxu0 0.0
        %2479 = vmatmul.mubr.f32.gmra.mrb[0].mxu0 %v2222
        %v2480 = vpop.f32.mrb[0].mxu0
        %v2481 = vadd.f32 0.0, %v2480
        %v2482 = vpop.f32.mrb[0].mxu0
        %2483 = vmatprep.mubr.f32.mxu0 0.0
        %2484 = vmatmul.mubr.f32.gmra.mrb[0].mxu0 %v2223
        %v2485 = vpop.f32.mrb[0].mxu0
        %v2486 = vadd.f32 0.0, %v2485
        %v2487 = vpop.f32.mrb[0].mxu0
        %2488 = vmatprep.mubr.f32.mxu0 0.0
        %2489 = vmatmul.mubr.f32.gmra.mrb[0].mxu0 %v2224
        %v2490 = vpop.f32.mrb[0].mxu0
        %v2491 = vadd.f32 0.0, %v2490
        %v2492 = vpop.f32.mrb[0].mxu0
        %2493 = vmatprep.mubr.f32.mxu0 0.0
        %2494 = vmatmul.mubr.f32.gmra.mrb[0].mxu0 %v2225
        %v2495 = vpop.f32.mrb[0].mxu0
        %v2496 = vadd.f32 0.0, %v2495
        %v2497 = vpop.f32.mrb[0].mxu0
        %2498 = vmatprep.mubr.f32.mxu0 0.0
        %2499 = vmatmul.mubr.f32.gmra.mrb[0].mxu0 %v2226
        %v2500 = vpop.f32.mrb[0].mxu0
        %v2501 = vadd.f32 0.0, %v2500
        %v2502 = vpop.f32.mrb[0].mxu0
        %2503 = vmatprep.mubr.f32.mxu0 0.0
        %2504 = vmatmul.mubr.f32.gmra.mrb[0].mxu0 %v2227
        %v2505 = vpop.f32.mrb[0].mxu0
        %v2506 = vadd.f32 0.0, %v2505
        %v2507 = vpop.f32.mrb[0].mxu0
        %2508 = vmatprep.mubr.f32.mxu0 0.0
        %2509 = vmatmul.mubr.f32.gmra.mrb[0].mxu0 %v2228
        %v2510 = vpop.f32.mrb[0].mxu0
        %v2511 = vadd.f32 0.0, %v2510
        %v2512 = vpop.f32.mrb[0].mxu0
        %2513 = vmatprep.mubr.f32.mxu0 0.0
        %2514 = vmatmul.mubr.f32.gmra.mrb[0].mxu0 %v2229
        %v2515 = vpop.f32.mrb[0].mxu0
        %v2516 = vadd.f32 0.0, %v2515
        %v2517 = vpop.f32.mrb[0].mxu0
        %2518 = vmatprep.mubr.f32.mxu0 0.0
        %2519 = vmatmul.mubr.f32.gmra.mrb[0].mxu0 %v2230
        %v2520 = vpop.f32.mrb[0].mxu0
        %v2521 = vadd.f32 0.0, %v2520
        %v2522 = vpop.f32.mrb[0].mxu0
        %2523 = vmatprep.mubr.f32.mxu0 0.0
        %2524 = vmatmul.mubr.f32.gmra.mrb[0].mxu0 %v2231
        %v2525 = vpop.f32.mrb[0].mxu0
        %v2526 = vadd.f32 0.0, %v2525
        %v2527 = vpop.f32.mrb[0].mxu0
        %2528 = vmatprep.mubr.f32.mxu0 0.0
        %2529 = vmatmul.mubr.f32.gmra.mrb[0].mxu0 %v2232
        %v2530 = vpop.f32.mrb[0].mxu0
        %v2531 = vadd.f32 0.0, %v2530
        %v2532 = vpop.f32.mrb[0].mxu0
        %2533 = vmatprep.mubr.f32.mxu0 0.0
        %2534 = vmatmul.mubr.f32.gmra.mrb[0].mxu0 %v2233
        %v2535 = vpop.f32.mrb[0].mxu0
        %v2536 = vadd.f32 0.0, %v2535
        %v2537 = vpop.f32.mrb[0].mxu0
        %2538 = vmatprep.mubr.f32.mxu0 0.0
        %2539 = vmatmul.mubr.f32.gmra.mrb[0].mxu0 %v2234
        %v2540 = vpop.f32.mrb[0].mxu0
        %v2541 = vadd.f32 0.0, %v2540
        %v2542 = vpop.f32.mrb[0].mxu0
        %2543 = vmatprep.mubr.f32.mxu0 0.0
        %2544 = vmatmul.mubr.f32.gmra.mrb[0].mxu0 %v2235
        %v2545 = vpop.f32.mrb[0].mxu0
        %v2546 = vadd.f32 0.0, %v2545
        %v2547 = vpop.f32.mrb[0].mxu0
        %2548 = vmatprep.mubr.f32.mxu0 0.0
        %2549 = vmatmul.mubr.f32.gmra.mrb[0].mxu0 %v2236
        %v2550 = vpop.f32.mrb[0].mxu0
        %v2551 = vadd.f32 0.0, %v2550
        %v2552 = vpop.f32.mrb[0].mxu0
        %2553 = vmatprep.mubr.f32.mxu0 0.0
        %2554 = vmatmul.mubr.f32.gmra.mrb[0].mxu0 %v2237
        %v2555 = vpop.f32.mrb[0].mxu0
        %v2556 = vadd.f32 0.0, %v2555
        %v2557 = vpop.f32.mrb[0].mxu0
        %2558 = vmatprep.mubr.f32.mxu0 0.0
        %2559 = vmatmul.mubr.f32.gmra.mrb[0].mxu0 %v2238
        %v2560 = vpop.f32.mrb[0].mxu0
        %v2561 = vadd.f32 0.0, %v2560
        %v2562 = vpop.f32.mrb[0].mxu0
        %2563 = vmatprep.mubr.f32.mxu0 0.0
        %2564 = vmatmul.mubr.f32.gmra.mrb[0].mxu0 %v2239
        %v2565 = vpop.f32.mrb[0].mxu0
        %v2566 = vadd.f32 0.0, %v2565
        %v2567 = vpop.f32.mrb[0].mxu0
        %2568 = vmatprep.mubr.f32.mxu0 0.0
        %2569 = vmatmul.mubr.f32.gmra.mrb[0].mxu0 %v2240
        %v2570 = vpop.f32.mrb[0].mxu0
        %v2571 = vadd.f32 0.0, %v2570
        %v2572 = vpop.f32.mrb[0].mxu0
        %2573 = vmatprep.mubr.f32.mxu0 0.0
        %2574 = vmatmul.mubr.f32.gmra.mrb[0].mxu0 %v2241
        %v2575 = vpop.f32.mrb[0].mxu0
        %v2576 = vadd.f32 0.0, %v2575
        %v2577 = vpop.f32.mrb[0].mxu0
        %2578 = vmatprep.mubr.f32.mxu0 0.0
        %2579 = vmatmul.mubr.f32.gmra.mrb[0].mxu0 %v2242
        %v2580 = vpop.f32.mrb[0].mxu0
        %v2581 = vadd.f32 0.0, %v2580
        %v2582 = vpop.f32.mrb[0].mxu0
        %2583 = vmatprep.mubr.f32.mxu0 0.0
        %2584 = vmatmul.mubr.f32.gmra.mrb[0].mxu0 %v2243
        %v2585 = vpop.f32.mrb[0].mxu0
        %v2586 = vadd.f32 0.0, %v2585
        %v2587 = vpop.f32.mrb[0].mxu0
        %2588 = vmatprep.mubr.f32.mxu0 0.0
        %2589 = vmatmul.mubr.f32.gmra.mrb[0].mxu0 %v2244
        %v2590 = vpop.f32.mrb[0].mxu0
        %v2591 = vadd.f32 0.0, %v2590
        %v2592 = vpop.f32.mrb[0].mxu0
        %2593 = vmatprep.mubr.f32.mxu0 0.0
        %2594 = vmatmul.mubr.f32.gmra.mrb[0].mxu0 %v2245
        %v2595 = vpop.f32.mrb[0].mxu0
        %v2596 = vadd.f32 0.0, %v2595
        %v2597 = vpop.f32.mrb[0].mxu0
        %2598 = vmatprep.mubr.f32.mxu0 0.0
        %2599 = vmatmul.mubr.f32.gmra.mrb[0].mxu0 %v2246
        %v2600 = vpop.f32.mrb[0].mxu0
        %v2601 = vadd.f32 0.0, %v2600
        %v2602 = vpop.f32.mrb[0].mxu0
        %2603 = vmatprep.mubr.f32.mxu0 0.0
        %2604 = vmatmul.mubr.f32.gmra.mrb[0].mxu0 %v2247
        %v2605 = vpop.f32.mrb[0].mxu0
        %v2606 = vadd.f32 0.0, %v2605
        %v2607 = vpop.f32.mrb[0].mxu0
        %2608 = vmatprep.mubr.f32.mxu0 0.0
        %2609 = vmatmul.mubr.f32.gmra.mrb[0].mxu0 %v2248
        %v2610 = vpop.f32.mrb[0].mxu0
        %v2611 = vadd.f32 0.0, %v2610
        %v2612 = vpop.f32.mrb[0].mxu0
        %2613 = vmatprep.mubr.f32.mxu0 0.0
        %2614 = vmatmul.mubr.f32.gmra.mrb[0].mxu0 %v2249
        %v2615 = vpop.f32.mrb[0].mxu0
        %v2616 = vadd.f32 0.0, %v2615
        %v2617 = vpop.f32.mrb[0].mxu0
        %2618 = vmatprep.mubr.f32.mxu0 0.0
        %2619 = vmatmul.mubr.f32.gmra.mrb[0].mxu0 %v2250
        %v2620 = vpop.f32.mrb[0].mxu0
        %v2621 = vadd.f32 0.0, %v2620
        %v2622 = vpop.f32.mrb[0].mxu0
        %2623 = vmatprep.mubr.f32.mxu0 0.0
        %2624 = vmatmul.mubr.f32.gmra.mrb[0].mxu0 %v2251
        %v2625 = vpop.f32.mrb[0].mxu0
        %v2626 = vadd.f32 0.0, %v2625
        %v2627 = vpop.f32.mrb[0].mxu0
        %2628 = vmatprep.mubr.f32.mxu0 0.0
        %2629 = vmatmul.mubr.f32.gmra.mrb[0].mxu0 %v2252
        %v2630 = vpop.f32.mrb[0].mxu0
        %v2631 = vadd.f32 0.0, %v2630
        %v2632 = vpop.f32.mrb[0].mxu0
        %2633 = vmatprep.mubr.f32.mxu0 0.0
        %2634 = vmatmul.mubr.f32.gmra.mrb[0].mxu0 %v2253
        %v2635 = vpop.f32.mrb[0].mxu0
        %v2636 = vadd.f32 0.0, %v2635
        %v2637 = vpop.f32.mrb[0].mxu0
        %2638 = vdwg.mxu0
        %v2639 = vld [vmem:[%s7] sm:$0x1]
        %v2640 = vld [vmem:[%s6] sm:$0xff]
        %v2641 = vld [vmem:[%s6 + $0x8] sm:$0xff]
        %v2642 = vld [vmem:[%s6 + $0x10] sm:$0xff]
        %v2643 = vld [vmem:[%s6 + $0x18] sm:$0xff]
        %v2644 = vld [vmem:[%s6 + $0x20] sm:$0xff]
        %v2645 = vld [vmem:[%s6 + $0x28] sm:$0xff]
        %v2646 = vld [vmem:[%s6 + $0x30] sm:$0xff]
        %v2647 = vld [vmem:[%s6 + $0x38] sm:$0xff]
        %v2648 = vld [vmem:[%s6 + $0x40] sm:$0xff]
        %v2649 = vld [vmem:[%s6 + $0x48] sm:$0xff]
        %v2650 = vld [vmem:[%s6 + $0x50] sm:$0xff]
        %v2651 = vld [vmem:[%s6 + $0x58] sm:$0xff]
        %v2652 = vld [vmem:[%s6 + $0x60] sm:$0xff]
        %v2653 = vld [vmem:[%s6 + $0x68] sm:$0xff]
        %v2654 = vld [vmem:[%s6 + $0x70] sm:$0xff]
        %v2655 = vld [vmem:[%s6 + $0x78] sm:$0xff]
        %2656 = vmatprep.subr.mxu0 0.0
        %2657 = vmatpush1.msra.mxu0 %v2640
        %2658 = vmatprep.subr.mxu0 0.0
        %2659 = vmatpush1.msra.mxu0 %v2641
        %2660 = vmatprep.subr.mxu0 0.0
        %2661 = vmatpush1.msra.mxu0 %v2642
        %2662 = vmatprep.subr.mxu0 0.0
        %2663 = vmatpush1.msra.mxu0 %v2643
        %2664 = vmatprep.subr.mxu0 0.0
        %2665 = vmatpush1.msra.mxu0 %v2644
        %2666 = vmatprep.subr.mxu0 0.0
        %2667 = vmatpush1.msra.mxu0 %v2645
        %2668 = vmatprep.subr.mxu0 0.0
        %2669 = vmatpush1.msra.mxu0 %v2646
        %2670 = vmatprep.subr.mxu0 0.0
        %2671 = vmatpush1.msra.mxu0 %v2647
        %2672 = vmatprep.subr.mxu0 0.0
        %2673 = vmatpush1.msra.mxu0 %v2648
        %2674 = vmatprep.subr.mxu0 0.0
        %2675 = vmatpush1.msra.mxu0 %v2649
        %2676 = vmatprep.subr.mxu0 0.0
        %2677 = vmatpush1.msra.mxu0 %v2650
        %2678 = vmatprep.subr.mxu0 0.0
        %2679 = vmatpush1.msra.mxu0 %v2651
        %2680 = vmatprep.subr.mxu0 0.0
        %2681 = vmatpush1.msra.mxu0 %v2652
        %2682 = vmatprep.subr.mxu0 0.0
        %2683 = vmatpush1.msra.mxu0 %v2653
        %2684 = vmatprep.subr.mxu0 0.0
        %2685 = vmatpush1.msra.mxu0 %v2654
        %2686 = vmatprep.subr.mxu0 0.0
        %2687 = vmatpush1.msra.mxu0 %v2655
        %2688 = vmatprep.subr.mxu0 0.0
        %2689 = vmatpush1.msra.mxu0 0.0
        %2690 = vmatprep.subr.mxu0 0.0
        %2691 = vmatpush1.msra.mxu0 0.0
        %2692 = vmatprep.subr.mxu0 0.0
        %2693 = vmatpush1.msra.mxu0 0.0
        %2694 = vmatprep.subr.mxu0 0.0
        %2695 = vmatpush1.msra.mxu0 0.0
        %2696 = vmatprep.subr.mxu0 0.0
        %2697 = vmatpush1.msra.mxu0 0.0
        %2698 = vmatprep.subr.mxu0 0.0
        %2699 = vmatpush1.msra.mxu0 0.0
        %2700 = vmatprep.subr.mxu0 0.0
        %2701 = vmatpush1.msra.mxu0 0.0
        %2702 = vmatprep.subr.mxu0 0.0
        %2703 = vmatpush1.msra.mxu0 0.0
        %2704 = vmatprep.subr.mxu0 0.0
        %2705 = vmatpush1.msra.mxu0 0.0
        %2706 = vmatprep.subr.mxu0 0.0
        %2707 = vmatpush1.msra.mxu0 0.0
        %2708 = vmatprep.subr.mxu0 0.0
        %2709 = vmatpush1.msra.mxu0 0.0
        %2710 = vmatprep.subr.mxu0 0.0
        %2711 = vmatpush1.msra.mxu0 0.0
        %2712 = vmatprep.subr.mxu0 0.0
        %2713 = vmatpush1.msra.mxu0 0.0
        %2714 = vmatprep.subr.mxu0 0.0
        %2715 = vmatpush1.msra.mxu0 0.0
        %2716 = vmatprep.subr.mxu0 0.0
        %2717 = vmatpush1.msra.mxu0 0.0
        %2718 = vmatprep.subr.mxu0 0.0
        %2719 = vmatpush1.msra.mxu0 0.0
        %2720 = vmatprep.mubr.f32.mxu0 0.0
        %2721 = vmatmul.mubr.f32.gmra.mrb[0].mxu0 %v2321
        %v2722 = vpop.f32.mrb[0].mxu0
        %v2723 = vadd.f32 0.0, %v2722
        %v2724 = vpop.f32.mrb[0].mxu0
        %2725 = vmatprep.mubr.f32.mxu0 0.0
        %2726 = vmatmul.mubr.f32.gmra.mrb[0].mxu0 %v2326
        %v2727 = vpop.f32.mrb[0].mxu0
        %v2728 = vadd.f32 0.0, %v2727
        %v2729 = vpop.f32.mrb[0].mxu0
        %2730 = vmatprep.mubr.f32.mxu0 0.0
        %2731 = vmatmul.mubr.f32.gmra.mrb[0].mxu0 %v2331
        %v2732 = vpop.f32.mrb[0].mxu0
        %v2733 = vadd.f32 0.0, %v2732
        %v2734 = vpop.f32.mrb[0].mxu0
        %2735 = vmatprep.mubr.f32.mxu0 0.0
        %2736 = vmatmul.mubr.f32.gmra.mrb[0].mxu0 %v2336
        %v2737 = vpop.f32.mrb[0].mxu0
        %v2738 = vadd.f32 0.0, %v2737
        %v2739 = vpop.f32.mrb[0].mxu0
        %2740 = vmatprep.mubr.f32.mxu0 0.0
        %2741 = vmatmul.mubr.f32.gmra.mrb[0].mxu0 %v2341
        %v2742 = vpop.f32.mrb[0].mxu0
        %v2743 = vadd.f32 0.0, %v2742
        %v2744 = vpop.f32.mrb[0].mxu0
        %2745 = vmatprep.mubr.f32.mxu0 0.0
        %2746 = vmatmul.mubr.f32.gmra.mrb[0].mxu0 %v2346
        %v2747 = vpop.f32.mrb[0].mxu0
        %v2748 = vadd.f32 0.0, %v2747
        %v2749 = vpop.f32.mrb[0].mxu0
        %2750 = vmatprep.mubr.f32.mxu0 0.0
        %2751 = vmatmul.mubr.f32.gmra.mrb[0].mxu0 %v2351
        %v2752 = vpop.f32.mrb[0].mxu0
        %v2753 = vadd.f32 0.0, %v2752
        %v2754 = vpop.f32.mrb[0].mxu0
        %2755 = vmatprep.mubr.f32.mxu0 0.0
        %2756 = vmatmul.mubr.f32.gmra.mrb[0].mxu0 %v2356
        %v2757 = vpop.f32.mrb[0].mxu0
        %v2758 = vadd.f32 0.0, %v2757
        %v2759 = vpop.f32.mrb[0].mxu0
        %2760 = vmatprep.mubr.f32.mxu0 0.0
        %2761 = vmatmul.mubr.f32.gmra.mrb[0].mxu0 %v2361
        %v2762 = vpop.f32.mrb[0].mxu0
        %v2763 = vadd.f32 0.0, %v2762
        %v2764 = vpop.f32.mrb[0].mxu0
        %2765 = vmatprep.mubr.f32.mxu0 0.0
        %2766 = vmatmul.mubr.f32.gmra.mrb[0].mxu0 %v2366
        %v2767 = vpop.f32.mrb[0].mxu0
        %v2768 = vadd.f32 0.0, %v2767
        %v2769 = vpop.f32.mrb[0].mxu0
        %2770 = vmatprep.mubr.f32.mxu0 0.0
        %2771 = vmatmul.mubr.f32.gmra.mrb[0].mxu0 %v2371
        %v2772 = vpop.f32.mrb[0].mxu0
        %v2773 = vadd.f32 0.0, %v2772
        %v2774 = vpop.f32.mrb[0].mxu0
        %2775 = vmatprep.mubr.f32.mxu0 0.0
        %2776 = vmatmul.mubr.f32.gmra.mrb[0].mxu0 %v2376
        %v2777 = vpop.f32.mrb[0].mxu0
        %v2778 = vadd.f32 0.0, %v2777
        %v2779 = vpop.f32.mrb[0].mxu0
        %2780 = vmatprep.mubr.f32.mxu0 0.0
        %2781 = vmatmul.mubr.f32.gmra.mrb[0].mxu0 %v2381
        %v2782 = vpop.f32.mrb[0].mxu0
        %v2783 = vadd.f32 0.0, %v2782
        %v2784 = vpop.f32.mrb[0].mxu0
        %2785 = vmatprep.mubr.f32.mxu0 0.0
        %2786 = vmatmul.mubr.f32.gmra.mrb[0].mxu0 %v2386
        %v2787 = vpop.f32.mrb[0].mxu0
        %v2788 = vadd.f32 0.0, %v2787
        %v2789 = vpop.f32.mrb[0].mxu0
        %2790 = vmatprep.mubr.f32.mxu0 0.0
        %2791 = vmatmul.mubr.f32.gmra.mrb[0].mxu0 %v2391
        %v2792 = vpop.f32.mrb[0].mxu0
        %v2793 = vadd.f32 0.0, %v2792
        %v2794 = vpop.f32.mrb[0].mxu0
        %2795 = vmatprep.mubr.f32.mxu0 0.0
        %2796 = vmatmul.mubr.f32.gmra.mrb[0].mxu0 %v2396
        %v2797 = vpop.f32.mrb[0].mxu0
        %v2798 = vadd.f32 0.0, %v2797
        %v2799 = vpop.f32.mrb[0].mxu0
        %2800 = vdwg.mxu0
        %v2802 = vlaneseq
        %v2803 = vshrl.u32 %v2802, 7
        %v2804 = vsub.s32 0, %v2803
        %v2805 = vrot.slane %v2639, %v2804
        %v2807 = vadd.f32 %v2805, %v2723
        %v2808 = vadd.f32 %v2805, %v2728
        %v2809 = vadd.f32 %v2805, %v2733
        %v2810 = vadd.f32 %v2805, %v2738
        %v2811 = vadd.f32 %v2805, %v2743
        %v2812 = vadd.f32 %v2805, %v2748
        %v2813 = vadd.f32 %v2805, %v2753
        %v2814 = vadd.f32 %v2805, %v2758
        %v2815 = vadd.f32 %v2805, %v2763
        %v2816 = vadd.f32 %v2805, %v2768
        %v2817 = vadd.f32 %v2805, %v2773
        %v2818 = vadd.f32 %v2805, %v2778
        %v2819 = vadd.f32 %v2805, %v2783
        %v2820 = vadd.f32 %v2805, %v2788
        %v2821 = vadd.f32 %v2805, %v2793
        %v2822 = vadd.f32 %v2805, %v2798
        %s2823 = scalar_lea.vmem %s6, 128
        %v2824 = vld [vmem:[%s2823] sm:$0xff]
        %v2825 = vld [vmem:[%s2823 + $0x8] sm:$0xff]
        %v2826 = vld [vmem:[%s2823 + $0x10] sm:$0xff]
        %v2827 = vld [vmem:[%s2823 + $0x18] sm:$0xff]
        %v2828 = vld [vmem:[%s2823 + $0x20] sm:$0xff]
        %v2829 = vld [vmem:[%s2823 + $0x28] sm:$0xff]
        %v2830 = vld [vmem:[%s2823 + $0x30] sm:$0xff]
        %v2831 = vld [vmem:[%s2823 + $0x38] sm:$0xff]
        %v2832 = vld [vmem:[%s2823 + $0x40] sm:$0xff]
        %v2833 = vld [vmem:[%s2823 + $0x48] sm:$0xff]
        %v2834 = vld [vmem:[%s2823 + $0x50] sm:$0xff]
        %v2835 = vld [vmem:[%s2823 + $0x58] sm:$0xff]
        %v2836 = vld [vmem:[%s2823 + $0x60] sm:$0xff]
        %v2837 = vld [vmem:[%s2823 + $0x68] sm:$0xff]
        %v2838 = vld [vmem:[%s2823 + $0x70] sm:$0xff]
        %v2839 = vld [vmem:[%s2823 + $0x78] sm:$0xff]
        %2840 = vmatprep.subr.mxu0 0.0
        %2841 = vmatpush1.msra.mxu0 %v2824
        %2842 = vmatprep.subr.mxu0 0.0
        %2843 = vmatpush1.msra.mxu0 %v2825
        %2844 = vmatprep.subr.mxu0 0.0
        %2845 = vmatpush1.msra.mxu0 %v2826
        %2846 = vmatprep.subr.mxu0 0.0
        %2847 = vmatpush1.msra.mxu0 %v2827
        %2848 = vmatprep.subr.mxu0 0.0
        %2849 = vmatpush1.msra.mxu0 %v2828
        %2850 = vmatprep.subr.mxu0 0.0
        %2851 = vmatpush1.msra.mxu0 %v2829
        %2852 = vmatprep.subr.mxu0 0.0
        %2853 = vmatpush1.msra.mxu0 %v2830
        %2854 = vmatprep.subr.mxu0 0.0
        %2855 = vmatpush1.msra.mxu0 %v2831
        %2856 = vmatprep.subr.mxu0 0.0
        %2857 = vmatpush1.msra.mxu0 %v2832
        %2858 = vmatprep.subr.mxu0 0.0
        %2859 = vmatpush1.msra.mxu0 %v2833
        %2860 = vmatprep.subr.mxu0 0.0
        %2861 = vmatpush1.msra.mxu0 %v2834
        %2862 = vmatprep.subr.mxu0 0.0
        %2863 = vmatpush1.msra.mxu0 %v2835
        %2864 = vmatprep.subr.mxu0 0.0
        %2865 = vmatpush1.msra.mxu0 %v2836
        %2866 = vmatprep.subr.mxu0 0.0
        %2867 = vmatpush1.msra.mxu0 %v2837
        %2868 = vmatprep.subr.mxu0 0.0
        %2869 = vmatpush1.msra.mxu0 %v2838
        %2870 = vmatprep.subr.mxu0 0.0
        %2871 = vmatpush1.msra.mxu0 %v2839
        %2872 = vmatprep.subr.mxu0 0.0
        %2873 = vmatpush1.msra.mxu0 0.0
        %2874 = vmatprep.subr.mxu0 0.0
        %2875 = vmatpush1.msra.mxu0 0.0
        %2876 = vmatprep.subr.mxu0 0.0
        %2877 = vmatpush1.msra.mxu0 0.0
        %2878 = vmatprep.subr.mxu0 0.0
        %2879 = vmatpush1.msra.mxu0 0.0
        %2880 = vmatprep.subr.mxu0 0.0
        %2881 = vmatpush1.msra.mxu0 0.0
        %2882 = vmatprep.subr.mxu0 0.0
        %2883 = vmatpush1.msra.mxu0 0.0
        %2884 = vmatprep.subr.mxu0 0.0
        %2885 = vmatpush1.msra.mxu0 0.0
        %2886 = vmatprep.subr.mxu0 0.0
        %2887 = vmatpush1.msra.mxu0 0.0
        %2888 = vmatprep.subr.mxu0 0.0
        %2889 = vmatpush1.msra.mxu0 0.0
        %2890 = vmatprep.subr.mxu0 0.0
        %2891 = vmatpush1.msra.mxu0 0.0
        %2892 = vmatprep.subr.mxu0 0.0
        %2893 = vmatpush1.msra.mxu0 0.0
        %2894 = vmatprep.subr.mxu0 0.0
        %2895 = vmatpush1.msra.mxu0 0.0
        %2896 = vmatprep.subr.mxu0 0.0
        %2897 = vmatpush1.msra.mxu0 0.0
        %2898 = vmatprep.subr.mxu0 0.0
        %2899 = vmatpush1.msra.mxu0 0.0
        %2900 = vmatprep.subr.mxu0 0.0
        %2901 = vmatpush1.msra.mxu0 0.0
        %2902 = vmatprep.subr.mxu0 0.0
        %2903 = vmatpush1.msra.mxu0 0.0
        %2904 = vmatprep.mubr.f32.mxu0 0.0
        %2905 = vmatmul.mubr.f32.gmra.mrb[0].mxu0 %v2401
        %v2906 = vpop.f32.mrb[0].mxu0
        %v2907 = vadd.f32 0.0, %v2906
        %v2908 = vpop.f32.mrb[0].mxu0
        %2909 = vmatprep.mubr.f32.mxu0 0.0
        %2910 = vmatmul.mubr.f32.gmra.mrb[0].mxu0 %v2406
        %v2911 = vpop.f32.mrb[0].mxu0
        %v2912 = vadd.f32 0.0, %v2911
        %v2913 = vpop.f32.mrb[0].mxu0
        %2914 = vmatprep.mubr.f32.mxu0 0.0
        %2915 = vmatmul.mubr.f32.gmra.mrb[0].mxu0 %v2411
        %v2916 = vpop.f32.mrb[0].mxu0
        %v2917 = vadd.f32 0.0, %v2916
        %v2918 = vpop.f32.mrb[0].mxu0
        %2919 = vmatprep.mubr.f32.mxu0 0.0
        %2920 = vmatmul.mubr.f32.gmra.mrb[0].mxu0 %v2416
        %v2921 = vpop.f32.mrb[0].mxu0
        %v2922 = vadd.f32 0.0, %v2921
        %v2923 = vpop.f32.mrb[0].mxu0
        %2924 = vmatprep.mubr.f32.mxu0 0.0
        %2925 = vmatmul.mubr.f32.gmra.mrb[0].mxu0 %v2421
        %v2926 = vpop.f32.mrb[0].mxu0
        %v2927 = vadd.f32 0.0, %v2926
        %v2928 = vpop.f32.mrb[0].mxu0
        %2929 = vmatprep.mubr.f32.mxu0 0.0
        %2930 = vmatmul.mubr.f32.gmra.mrb[0].mxu0 %v2426
        %v2931 = vpop.f32.mrb[0].mxu0
        %v2932 = vadd.f32 0.0, %v2931
        %v2933 = vpop.f32.mrb[0].mxu0
        %2934 = vmatprep.mubr.f32.mxu0 0.0
        %2935 = vmatmul.mubr.f32.gmra.mrb[0].mxu0 %v2431
        %v2936 = vpop.f32.mrb[0].mxu0
        %v2937 = vadd.f32 0.0, %v2936
        %v2938 = vpop.f32.mrb[0].mxu0
        %2939 = vmatprep.mubr.f32.mxu0 0.0
        %2940 = vmatmul.mubr.f32.gmra.mrb[0].mxu0 %v2436
        %v2941 = vpop.f32.mrb[0].mxu0
        %v2942 = vadd.f32 0.0, %v2941
        %v2943 = vpop.f32.mrb[0].mxu0
        %2944 = vmatprep.mubr.f32.mxu0 0.0
        %2945 = vmatmul.mubr.f32.gmra.mrb[0].mxu0 %v2441
        %v2946 = vpop.f32.mrb[0].mxu0
        %v2947 = vadd.f32 0.0, %v2946
        %v2948 = vpop.f32.mrb[0].mxu0
        %2949 = vmatprep.mubr.f32.mxu0 0.0
        %2950 = vmatmul.mubr.f32.gmra.mrb[0].mxu0 %v2446
        %v2951 = vpop.f32.mrb[0].mxu0
        %v2952 = vadd.f32 0.0, %v2951
        %v2953 = vpop.f32.mrb[0].mxu0
        %2954 = vmatprep.mubr.f32.mxu0 0.0
        %2955 = vmatmul.mubr.f32.gmra.mrb[0].mxu0 %v2451
        %v2956 = vpop.f32.mrb[0].mxu0
        %v2957 = vadd.f32 0.0, %v2956
        %v2958 = vpop.f32.mrb[0].mxu0
        %2959 = vmatprep.mubr.f32.mxu0 0.0
        %2960 = vmatmul.mubr.f32.gmra.mrb[0].mxu0 %v2456
        %v2961 = vpop.f32.mrb[0].mxu0
        %v2962 = vadd.f32 0.0, %v2961
        %v2963 = vpop.f32.mrb[0].mxu0
        %2964 = vmatprep.mubr.f32.mxu0 0.0
        %2965 = vmatmul.mubr.f32.gmra.mrb[0].mxu0 %v2461
        %v2966 = vpop.f32.mrb[0].mxu0
        %v2967 = vadd.f32 0.0, %v2966
        %v2968 = vpop.f32.mrb[0].mxu0
        %2969 = vmatprep.mubr.f32.mxu0 0.0
        %2970 = vmatmul.mubr.f32.gmra.mrb[0].mxu0 %v2466
        %v2971 = vpop.f32.mrb[0].mxu0
        %v2972 = vadd.f32 0.0, %v2971
        %v2973 = vpop.f32.mrb[0].mxu0
        %2974 = vmatprep.mubr.f32.mxu0 0.0
        %2975 = vmatmul.mubr.f32.gmra.mrb[0].mxu0 %v2471
        %v2976 = vpop.f32.mrb[0].mxu0
        %v2977 = vadd.f32 0.0, %v2976
        %v2978 = vpop.f32.mrb[0].mxu0
        %2979 = vmatprep.mubr.f32.mxu0 0.0
        %2980 = vmatmul.mubr.f32.gmra.mrb[0].mxu0 %v2476
        %v2981 = vpop.f32.mrb[0].mxu0
        %v2982 = vadd.f32 0.0, %v2981
        %v2983 = vpop.f32.mrb[0].mxu0
        %2984 = vdwg.mxu0
        %v2985 = vadd.f32 %v2807, %v2907
        %v2986 = vadd.f32 %v2808, %v2912
        %v2987 = vadd.f32 %v2809, %v2917
        %v2988 = vadd.f32 %v2810, %v2922
        %v2989 = vadd.f32 %v2811, %v2927
        %v2990 = vadd.f32 %v2812, %v2932
        %v2991 = vadd.f32 %v2813, %v2937
        %v2992 = vadd.f32 %v2814, %v2942
        %v2993 = vadd.f32 %v2815, %v2947
        %v2994 = vadd.f32 %v2816, %v2952
        %v2995 = vadd.f32 %v2817, %v2957
        %v2996 = vadd.f32 %v2818, %v2962
        %v2997 = vadd.f32 %v2819, %v2967
        %v2998 = vadd.f32 %v2820, %v2972
        %v2999 = vadd.f32 %v2821, %v2977
        %v3000 = vadd.f32 %v2822, %v2982
        %s3001 = scalar_lea.vmem %s6, 256
        %v3002 = vld [vmem:[%s3001] sm:$0xff]
        %v3003 = vld [vmem:[%s3001 + $0x8] sm:$0xff]
        %v3004 = vld [vmem:[%s3001 + $0x10] sm:$0xff]
        %v3005 = vld [vmem:[%s3001 + $0x18] sm:$0xff]
        %v3006 = vld [vmem:[%s3001 + $0x20] sm:$0xff]
        %v3007 = vld [vmem:[%s3001 + $0x28] sm:$0xff]
        %v3008 = vld [vmem:[%s3001 + $0x30] sm:$0xff]
        %v3009 = vld [vmem:[%s3001 + $0x38] sm:$0xff]
        %v3010 = vld [vmem:[%s3001 + $0x40] sm:$0xff]
        %v3011 = vld [vmem:[%s3001 + $0x48] sm:$0xff]
        %v3012 = vld [vmem:[%s3001 + $0x50] sm:$0xff]
        %v3013 = vld [vmem:[%s3001 + $0x58] sm:$0xff]
        %v3014 = vld [vmem:[%s3001 + $0x60] sm:$0xff]
        %v3015 = vld [vmem:[%s3001 + $0x68] sm:$0xff]
        %v3016 = vld [vmem:[%s3001 + $0x70] sm:$0xff]
        %v3017 = vld [vmem:[%s3001 + $0x78] sm:$0xff]
        %3018 = vmatprep.subr.mxu0 0.0
        %3019 = vmatpush1.msra.mxu0 %v3002
        %3020 = vmatprep.subr.mxu0 0.0
        %3021 = vmatpush1.msra.mxu0 %v3003
        %3022 = vmatprep.subr.mxu0 0.0
        %3023 = vmatpush1.msra.mxu0 %v3004
        %3024 = vmatprep.subr.mxu0 0.0
        %3025 = vmatpush1.msra.mxu0 %v3005
        %3026 = vmatprep.subr.mxu0 0.0
        %3027 = vmatpush1.msra.mxu0 %v3006
        %3028 = vmatprep.subr.mxu0 0.0
        %3029 = vmatpush1.msra.mxu0 %v3007
        %3030 = vmatprep.subr.mxu0 0.0
        %3031 = vmatpush1.msra.mxu0 %v3008
        %3032 = vmatprep.subr.mxu0 0.0
        %3033 = vmatpush1.msra.mxu0 %v3009
        %3034 = vmatprep.subr.mxu0 0.0
        %3035 = vmatpush1.msra.mxu0 %v3010
        %3036 = vmatprep.subr.mxu0 0.0
        %3037 = vmatpush1.msra.mxu0 %v3011
        %3038 = vmatprep.subr.mxu0 0.0
        %3039 = vmatpush1.msra.mxu0 %v3012
        %3040 = vmatprep.subr.mxu0 0.0
        %3041 = vmatpush1.msra.mxu0 %v3013
        %3042 = vmatprep.subr.mxu0 0.0
        %3043 = vmatpush1.msra.mxu0 %v3014
        %3044 = vmatprep.subr.mxu0 0.0
        %3045 = vmatpush1.msra.mxu0 %v3015
        %3046 = vmatprep.subr.mxu0 0.0
        %3047 = vmatpush1.msra.mxu0 %v3016
        %3048 = vmatprep.subr.mxu0 0.0
        %3049 = vmatpush1.msra.mxu0 %v3017
        %3050 = vmatprep.subr.mxu0 0.0
        %3051 = vmatpush1.msra.mxu0 0.0
        %3052 = vmatprep.subr.mxu0 0.0
        %3053 = vmatpush1.msra.mxu0 0.0
        %3054 = vmatprep.subr.mxu0 0.0
        %3055 = vmatpush1.msra.mxu0 0.0
        %3056 = vmatprep.subr.mxu0 0.0
        %3057 = vmatpush1.msra.mxu0 0.0
        %3058 = vmatprep.subr.mxu0 0.0
        %3059 = vmatpush1.msra.mxu0 0.0
        %3060 = vmatprep.subr.mxu0 0.0
        %3061 = vmatpush1.msra.mxu0 0.0
        %3062 = vmatprep.subr.mxu0 0.0
        %3063 = vmatpush1.msra.mxu0 0.0
        %3064 = vmatprep.subr.mxu0 0.0
        %3065 = vmatpush1.msra.mxu0 0.0
        %3066 = vmatprep.subr.mxu0 0.0
        %3067 = vmatpush1.msra.mxu0 0.0
        %3068 = vmatprep.subr.mxu0 0.0
        %3069 = vmatpush1.msra.mxu0 0.0
        %3070 = vmatprep.subr.mxu0 0.0
        %3071 = vmatpush1.msra.mxu0 0.0
        %3072 = vmatprep.subr.mxu0 0.0
        %3073 = vmatpush1.msra.mxu0 0.0
        %3074 = vmatprep.subr.mxu0 0.0
        %3075 = vmatpush1.msra.mxu0 0.0
        %3076 = vmatprep.subr.mxu0 0.0
        %3077 = vmatpush1.msra.mxu0 0.0
        %3078 = vmatprep.subr.mxu0 0.0
        %3079 = vmatpush1.msra.mxu0 0.0
        %3080 = vmatprep.subr.mxu0 0.0
        %3081 = vmatpush1.msra.mxu0 0.0
        %3082 = vmatprep.mubr.f32.mxu0 0.0
        %3083 = vmatmul.mubr.f32.gmra.mrb[0].mxu0 %v2481
        %v3084 = vpop.f32.mrb[0].mxu0
        %v3085 = vadd.f32 0.0, %v3084
        %v3086 = vpop.f32.mrb[0].mxu0
        %3087 = vmatprep.mubr.f32.mxu0 0.0
        %3088 = vmatmul.mubr.f32.gmra.mrb[0].mxu0 %v2486
        %v3089 = vpop.f32.mrb[0].mxu0
        %v3090 = vadd.f32 0.0, %v3089
        %v3091 = vpop.f32.mrb[0].mxu0
        %3092 = vmatprep.mubr.f32.mxu0 0.0
        %3093 = vmatmul.mubr.f32.gmra.mrb[0].mxu0 %v2491
        %v3094 = vpop.f32.mrb[0].mxu0
        %v3095 = vadd.f32 0.0, %v3094
        %v3096 = vpop.f32.mrb[0].mxu0
        %3097 = vmatprep.mubr.f32.mxu0 0.0
        %3098 = vmatmul.mubr.f32.gmra.mrb[0].mxu0 %v2496
        %v3099 = vpop.f32.mrb[0].mxu0
        %v3100 = vadd.f32 0.0, %v3099
        %v3101 = vpop.f32.mrb[0].mxu0
        %3102 = vmatprep.mubr.f32.mxu0 0.0
        %3103 = vmatmul.mubr.f32.gmra.mrb[0].mxu0 %v2501
        %v3104 = vpop.f32.mrb[0].mxu0
        %v3105 = vadd.f32 0.0, %v3104
        %v3106 = vpop.f32.mrb[0].mxu0
        %3107 = vmatprep.mubr.f32.mxu0 0.0
        %3108 = vmatmul.mubr.f32.gmra.mrb[0].mxu0 %v2506
        %v3109 = vpop.f32.mrb[0].mxu0
        %v3110 = vadd.f32 0.0, %v3109
        %v3111 = vpop.f32.mrb[0].mxu0
        %3112 = vmatprep.mubr.f32.mxu0 0.0
        %3113 = vmatmul.mubr.f32.gmra.mrb[0].mxu0 %v2511
        %v3114 = vpop.f32.mrb[0].mxu0
        %v3115 = vadd.f32 0.0, %v3114
        %v3116 = vpop.f32.mrb[0].mxu0
        %3117 = vmatprep.mubr.f32.mxu0 0.0
        %3118 = vmatmul.mubr.f32.gmra.mrb[0].mxu0 %v2516
        %v3119 = vpop.f32.mrb[0].mxu0
        %v3120 = vadd.f32 0.0, %v3119
        %v3121 = vpop.f32.mrb[0].mxu0
        %3122 = vmatprep.mubr.f32.mxu0 0.0
        %3123 = vmatmul.mubr.f32.gmra.mrb[0].mxu0 %v2521
        %v3124 = vpop.f32.mrb[0].mxu0
        %v3125 = vadd.f32 0.0, %v3124
        %v3126 = vpop.f32.mrb[0].mxu0
        %3127 = vmatprep.mubr.f32.mxu0 0.0
        %3128 = vmatmul.mubr.f32.gmra.mrb[0].mxu0 %v2526
        %v3129 = vpop.f32.mrb[0].mxu0
        %v3130 = vadd.f32 0.0, %v3129
        %v3131 = vpop.f32.mrb[0].mxu0
        %3132 = vmatprep.mubr.f32.mxu0 0.0
        %3133 = vmatmul.mubr.f32.gmra.mrb[0].mxu0 %v2531
        %v3134 = vpop.f32.mrb[0].mxu0
        %v3135 = vadd.f32 0.0, %v3134
        %v3136 = vpop.f32.mrb[0].mxu0
        %3137 = vmatprep.mubr.f32.mxu0 0.0
        %3138 = vmatmul.mubr.f32.gmra.mrb[0].mxu0 %v2536
        %v3139 = vpop.f32.mrb[0].mxu0
        %v3140 = vadd.f32 0.0, %v3139
        %v3141 = vpop.f32.mrb[0].mxu0
        %3142 = vmatprep.mubr.f32.mxu0 0.0
        %3143 = vmatmul.mubr.f32.gmra.mrb[0].mxu0 %v2541
        %v3144 = vpop.f32.mrb[0].mxu0
        %v3145 = vadd.f32 0.0, %v3144
        %v3146 = vpop.f32.mrb[0].mxu0
        %3147 = vmatprep.mubr.f32.mxu0 0.0
        %3148 = vmatmul.mubr.f32.gmra.mrb[0].mxu0 %v2546
        %v3149 = vpop.f32.mrb[0].mxu0
        %v3150 = vadd.f32 0.0, %v3149
        %v3151 = vpop.f32.mrb[0].mxu0
        %3152 = vmatprep.mubr.f32.mxu0 0.0
        %3153 = vmatmul.mubr.f32.gmra.mrb[0].mxu0 %v2551
        %v3154 = vpop.f32.mrb[0].mxu0
        %v3155 = vadd.f32 0.0, %v3154
        %v3156 = vpop.f32.mrb[0].mxu0
        %3157 = vmatprep.mubr.f32.mxu0 0.0
        %3158 = vmatmul.mubr.f32.gmra.mrb[0].mxu0 %v2556
        %v3159 = vpop.f32.mrb[0].mxu0
        %v3160 = vadd.f32 0.0, %v3159
        %v3161 = vpop.f32.mrb[0].mxu0
        %3162 = vdwg.mxu0
        %v3163 = vadd.f32 %v2985, %v3085
        %v3164 = vadd.f32 %v2986, %v3090
        %v3165 = vadd.f32 %v2987, %v3095
        %v3166 = vadd.f32 %v2988, %v3100
        %v3167 = vadd.f32 %v2989, %v3105
        %v3168 = vadd.f32 %v2990, %v3110
        %v3169 = vadd.f32 %v2991, %v3115
        %v3170 = vadd.f32 %v2992, %v3120
        %v3171 = vadd.f32 %v2993, %v3125
        %v3172 = vadd.f32 %v2994, %v3130
        %v3173 = vadd.f32 %v2995, %v3135
        %v3174 = vadd.f32 %v2996, %v3140
        %v3175 = vadd.f32 %v2997, %v3145
        %v3176 = vadd.f32 %v2998, %v3150
        %v3177 = vadd.f32 %v2999, %v3155
        %v3178 = vadd.f32 %v3000, %v3160
        %s3179 = scalar_lea.vmem %s6, 384
        %v3180 = vld [vmem:[%s3179] sm:$0xff]
        %v3181 = vld [vmem:[%s3179 + $0x8] sm:$0xff]
        %v3182 = vld [vmem:[%s3179 + $0x10] sm:$0xff]
        %v3183 = vld [vmem:[%s3179 + $0x18] sm:$0xff]
        %v3184 = vld [vmem:[%s3179 + $0x20] sm:$0xff]
        %v3185 = vld [vmem:[%s3179 + $0x28] sm:$0xff]
        %v3186 = vld [vmem:[%s3179 + $0x30] sm:$0xff]
        %v3187 = vld [vmem:[%s3179 + $0x38] sm:$0xff]
        %v3188 = vld [vmem:[%s3179 + $0x40] sm:$0xff]
        %v3189 = vld [vmem:[%s3179 + $0x48] sm:$0xff]
        %v3190 = vld [vmem:[%s3179 + $0x50] sm:$0xff]
        %v3191 = vld [vmem:[%s3179 + $0x58] sm:$0xff]
        %v3192 = vld [vmem:[%s3179 + $0x60] sm:$0xff]
        %v3193 = vld [vmem:[%s3179 + $0x68] sm:$0xff]
        %v3194 = vld [vmem:[%s3179 + $0x70] sm:$0xff]
        %v3195 = vld [vmem:[%s3179 + $0x78] sm:$0xff]
        %3196 = vmatprep.subr.mxu0 0.0
        %3197 = vmatpush1.msra.mxu0 %v3180
        %3198 = vmatprep.subr.mxu0 0.0
        %3199 = vmatpush1.msra.mxu0 %v3181
        %3200 = vmatprep.subr.mxu0 0.0
        %3201 = vmatpush1.msra.mxu0 %v3182
        %3202 = vmatprep.subr.mxu0 0.0
        %3203 = vmatpush1.msra.mxu0 %v3183
        %3204 = vmatprep.subr.mxu0 0.0
        %3205 = vmatpush1.msra.mxu0 %v3184
        %3206 = vmatprep.subr.mxu0 0.0
        %3207 = vmatpush1.msra.mxu0 %v3185
        %3208 = vmatprep.subr.mxu0 0.0
        %3209 = vmatpush1.msra.mxu0 %v3186
        %3210 = vmatprep.subr.mxu0 0.0
        %3211 = vmatpush1.msra.mxu0 %v3187
        %3212 = vmatprep.subr.mxu0 0.0
        %3213 = vmatpush1.msra.mxu0 %v3188
        %3214 = vmatprep.subr.mxu0 0.0
        %3215 = vmatpush1.msra.mxu0 %v3189
        %3216 = vmatprep.subr.mxu0 0.0
        %3217 = vmatpush1.msra.mxu0 %v3190
        %3218 = vmatprep.subr.mxu0 0.0
        %3219 = vmatpush1.msra.mxu0 %v3191
        %3220 = vmatprep.subr.mxu0 0.0
        %3221 = vmatpush1.msra.mxu0 %v3192
        %3222 = vmatprep.subr.mxu0 0.0
        %3223 = vmatpush1.msra.mxu0 %v3193
        %3224 = vmatprep.subr.mxu0 0.0
        %3225 = vmatpush1.msra.mxu0 %v3194
        %3226 = vmatprep.subr.mxu0 0.0
        %3227 = vmatpush1.msra.mxu0 %v3195
        %3228 = vmatprep.subr.mxu0 0.0
        %3229 = vmatpush1.msra.mxu0 0.0
        %3230 = vmatprep.subr.mxu0 0.0
        %3231 = vmatpush1.msra.mxu0 0.0
        %3232 = vmatprep.subr.mxu0 0.0
        %3233 = vmatpush1.msra.mxu0 0.0
        %3234 = vmatprep.subr.mxu0 0.0
        %3235 = vmatpush1.msra.mxu0 0.0
        %3236 = vmatprep.subr.mxu0 0.0
        %3237 = vmatpush1.msra.mxu0 0.0
        %3238 = vmatprep.subr.mxu0 0.0
        %3239 = vmatpush1.msra.mxu0 0.0
        %3240 = vmatprep.subr.mxu0 0.0
        %3241 = vmatpush1.msra.mxu0 0.0
        %3242 = vmatprep.subr.mxu0 0.0
        %3243 = vmatpush1.msra.mxu0 0.0
        %3244 = vmatprep.subr.mxu0 0.0
        %3245 = vmatpush1.msra.mxu0 0.0
        %3246 = vmatprep.subr.mxu0 0.0
        %3247 = vmatpush1.msra.mxu0 0.0
        %3248 = vmatprep.subr.mxu0 0.0
        %3249 = vmatpush1.msra.mxu0 0.0
        %3250 = vmatprep.subr.mxu0 0.0
        %3251 = vmatpush1.msra.mxu0 0.0
        %3252 = vmatprep.subr.mxu0 0.0
        %3253 = vmatpush1.msra.mxu0 0.0
        %3254 = vmatprep.subr.mxu0 0.0
        %3255 = vmatpush1.msra.mxu0 0.0
        %3256 = vmatprep.subr.mxu0 0.0
        %3257 = vmatpush1.msra.mxu0 0.0
        %3258 = vmatprep.subr.mxu0 0.0
        %3259 = vmatpush1.msra.mxu0 0.0
        %3260 = vmatprep.mubr.f32.mxu0 0.0
        %3261 = vmatmul.mubr.f32.gmra.mrb[0].mxu0 %v2561
        %v3262 = vpop.f32.mrb[0].mxu0
        %v3263 = vadd.f32 0.0, %v3262
        %v3264 = vpop.f32.mrb[0].mxu0
        %3265 = vmatprep.mubr.f32.mxu0 0.0
        %3266 = vmatmul.mubr.f32.gmra.mrb[0].mxu0 %v2566
        %v3267 = vpop.f32.mrb[0].mxu0
        %v3268 = vadd.f32 0.0, %v3267
        %v3269 = vpop.f32.mrb[0].mxu0
        %3270 = vmatprep.mubr.f32.mxu0 0.0
        %3271 = vmatmul.mubr.f32.gmra.mrb[0].mxu0 %v2571
        %v3272 = vpop.f32.mrb[0].mxu0
        %v3273 = vadd.f32 0.0, %v3272
        %v3274 = vpop.f32.mrb[0].mxu0
        %3275 = vmatprep.mubr.f32.mxu0 0.0
        %3276 = vmatmul.mubr.f32.gmra.mrb[0].mxu0 %v2576
        %v3277 = vpop.f32.mrb[0].mxu0
        %v3278 = vadd.f32 0.0, %v3277
        %v3279 = vpop.f32.mrb[0].mxu0
        %3280 = vmatprep.mubr.f32.mxu0 0.0
        %3281 = vmatmul.mubr.f32.gmra.mrb[0].mxu0 %v2581
        %v3282 = vpop.f32.mrb[0].mxu0
        %v3283 = vadd.f32 0.0, %v3282
        %v3284 = vpop.f32.mrb[0].mxu0
        %3285 = vmatprep.mubr.f32.mxu0 0.0
        %3286 = vmatmul.mubr.f32.gmra.mrb[0].mxu0 %v2586
        %v3287 = vpop.f32.mrb[0].mxu0
        %v3288 = vadd.f32 0.0, %v3287
        %v3289 = vpop.f32.mrb[0].mxu0
        %3290 = vmatprep.mubr.f32.mxu0 0.0
        %3291 = vmatmul.mubr.f32.gmra.mrb[0].mxu0 %v2591
        %v3292 = vpop.f32.mrb[0].mxu0
        %v3293 = vadd.f32 0.0, %v3292
        %v3294 = vpop.f32.mrb[0].mxu0
        %3295 = vmatprep.mubr.f32.mxu0 0.0
        %3296 = vmatmul.mubr.f32.gmra.mrb[0].mxu0 %v2596
        %v3297 = vpop.f32.mrb[0].mxu0
        %v3298 = vadd.f32 0.0, %v3297
        %v3299 = vpop.f32.mrb[0].mxu0
        %3300 = vmatprep.mubr.f32.mxu0 0.0
        %3301 = vmatmul.mubr.f32.gmra.mrb[0].mxu0 %v2601
        %v3302 = vpop.f32.mrb[0].mxu0
        %v3303 = vadd.f32 0.0, %v3302
        %v3304 = vpop.f32.mrb[0].mxu0
        %3305 = vmatprep.mubr.f32.mxu0 0.0
        %3306 = vmatmul.mubr.f32.gmra.mrb[0].mxu0 %v2606
        %v3307 = vpop.f32.mrb[0].mxu0
        %v3308 = vadd.f32 0.0, %v3307
        %v3309 = vpop.f32.mrb[0].mxu0
        %3310 = vmatprep.mubr.f32.mxu0 0.0
        %3311 = vmatmul.mubr.f32.gmra.mrb[0].mxu0 %v2611
        %v3312 = vpop.f32.mrb[0].mxu0
        %v3313 = vadd.f32 0.0, %v3312
        %v3314 = vpop.f32.mrb[0].mxu0
        %3315 = vmatprep.mubr.f32.mxu0 0.0
        %3316 = vmatmul.mubr.f32.gmra.mrb[0].mxu0 %v2616
        %v3317 = vpop.f32.mrb[0].mxu0
        %v3318 = vadd.f32 0.0, %v3317
        %v3319 = vpop.f32.mrb[0].mxu0
        %3320 = vmatprep.mubr.f32.mxu0 0.0
        %3321 = vmatmul.mubr.f32.gmra.mrb[0].mxu0 %v2621
        %v3322 = vpop.f32.mrb[0].mxu0
        %v3323 = vadd.f32 0.0, %v3322
        %v3324 = vpop.f32.mrb[0].mxu0
        %3325 = vmatprep.mubr.f32.mxu0 0.0
        %3326 = vmatmul.mubr.f32.gmra.mrb[0].mxu0 %v2626
        %v3327 = vpop.f32.mrb[0].mxu0
        %v3328 = vadd.f32 0.0, %v3327
        %v3329 = vpop.f32.mrb[0].mxu0
        %3330 = vmatprep.mubr.f32.mxu0 0.0
        %3331 = vmatmul.mubr.f32.gmra.mrb[0].mxu0 %v2631
        %v3332 = vpop.f32.mrb[0].mxu0
        %v3333 = vadd.f32 0.0, %v3332
        %v3334 = vpop.f32.mrb[0].mxu0
        %3335 = vmatprep.mubr.f32.mxu0 0.0
        %3336 = vmatmul.mubr.f32.gmra.mrb[0].mxu0 %v2636
        %v3337 = vpop.f32.mrb[0].mxu0
        %v3338 = vadd.f32 0.0, %v3337
        %v3339 = vpop.f32.mrb[0].mxu0
        %3340 = vdwg.mxu0
        %v3341 = vadd.f32 %v3163, %v3263
        %v3342 = vadd.f32 %v3164, %v3268
        %v3343 = vadd.f32 %v3165, %v3273
        %v3344 = vadd.f32 %v3166, %v3278
        %v3345 = vadd.f32 %v3167, %v3283
        %v3346 = vadd.f32 %v3168, %v3288
        %v3347 = vadd.f32 %v3169, %v3293
        %v3348 = vadd.f32 %v3170, %v3298
        %v3349 = vadd.f32 %v3171, %v3303
        %v3350 = vadd.f32 %v3172, %v3308
        %v3351 = vadd.f32 %v3173, %v3313
        %v3352 = vadd.f32 %v3174, %v3318
        %v3353 = vadd.f32 %v3175, %v3323
        %v3354 = vadd.f32 %v3176, %v3328
        %v3355 = vadd.f32 %v3177, %v3333
        %v3356 = vadd.f32 %v3178, %v3338
        %v3357 = vmul.f32 %v3341, 0.2
        %v3358 = vmul.f32 %v3342, 0.2
        %v3359 = vmul.f32 %v3343, 0.2
        %v3360 = vmul.f32 %v3344, 0.2
        %v3361 = vmul.f32 %v3345, 0.2
        %v3362 = vmul.f32 %v3346, 0.2
        %v3363 = vmul.f32 %v3347, 0.2
        %v3364 = vmul.f32 %v3348, 0.2
        %v3365 = vmul.f32 %v3349, 0.2
        %v3366 = vmul.f32 %v3350, 0.2
        %v3367 = vmul.f32 %v3351, 0.2
        %v3368 = vmul.f32 %v3352, 0.2
        %v3369 = vmul.f32 %v3353, 0.2
        %v3370 = vmul.f32 %v3354, 0.2
        %v3371 = vmul.f32 %v3355, 0.2
        %v3372 = vmul.f32 %v3356, 0.2
        %v3373 = vmax.f32 %v3341, %v3357
        %v3374 = vmax.f32 %v3342, %v3358
        %v3375 = vmax.f32 %v3343, %v3359
        %v3376 = vmax.f32 %v3344, %v3360
        %v3377 = vmax.f32 %v3345, %v3361
        %v3378 = vmax.f32 %v3346, %v3362
        %v3379 = vmax.f32 %v3347, %v3363
        %v3380 = vmax.f32 %v3348, %v3364
        %v3381 = vmax.f32 %v3349, %v3365
        %v3382 = vmax.f32 %v3350, %v3366
        %v3383 = vmax.f32 %v3351, %v3367
        %v3384 = vmax.f32 %v3352, %v3368
        %v3385 = vmax.f32 %v3353, %v3369
        %v3386 = vmax.f32 %v3354, %v3370
        %v3387 = vmax.f32 %v3355, %v3371
        %v3388 = vmax.f32 %v3356, %v3372
        %v3389 = vld [vmem:[#allocation2] sm:$0xff]
        %v3390 = vld [vmem:[#allocation2 + $0x8] sm:$0xff]
        %v3391 = vld [vmem:[#allocation2 + $0x10] sm:$0xff]
        %v3392 = vld [vmem:[#allocation2 + $0x18] sm:$0xff]
        %v3393 = vld [vmem:[#allocation2 + $0x20] sm:$0xff]
        %v3394 = vld [vmem:[#allocation2 + $0x28] sm:$0xff]
        %v3395 = vld [vmem:[#allocation2 + $0x30] sm:$0xff]
        %v3396 = vld [vmem:[#allocation2 + $0x38] sm:$0xff]
        %v3397 = vld [vmem:[#allocation2 + $0x40] sm:$0xff]
        %v3398 = vld [vmem:[#allocation2 + $0x48] sm:$0xff]
        %v3399 = vld [vmem:[#allocation2 + $0x50] sm:$0xff]
        %v3400 = vld [vmem:[#allocation2 + $0x58] sm:$0xff]
        %v3401 = vld [vmem:[#allocation2 + $0x60] sm:$0xff]
        %v3402 = vld [vmem:[#allocation2 + $0x68] sm:$0xff]
        %v3403 = vld [vmem:[#allocation2 + $0x70] sm:$0xff]
        %v3404 = vld [vmem:[#allocation2 + $0x78] sm:$0xff]
        %v3405 = vld [vmem:[#allocation2 + $0x80] sm:$0xff]
        %v3406 = vld [vmem:[#allocation2 + $0x88] sm:$0xff]
        %v3407 = vld [vmem:[#allocation2 + $0x90] sm:$0xff]
        %v3408 = vld [vmem:[#allocation2 + $0x98] sm:$0xff]
        %v3409 = vld [vmem:[#allocation2 + $0xa0] sm:$0xff]
        %v3410 = vld [vmem:[#allocation2 + $0xa8] sm:$0xff]
        %v3411 = vld [vmem:[#allocation2 + $0xb0] sm:$0xff]
        %v3412 = vld [vmem:[#allocation2 + $0xb8] sm:$0xff]
        %v3413 = vld [vmem:[#allocation2 + $0xc0] sm:$0xff]
        %v3414 = vld [vmem:[#allocation2 + $0xc8] sm:$0xff]
        %v3415 = vld [vmem:[#allocation2 + $0xd0] sm:$0xff]
        %v3416 = vld [vmem:[#allocation2 + $0xd8] sm:$0xff]
        %v3417 = vld [vmem:[#allocation2 + $0xe0] sm:$0xff]
        %v3418 = vld [vmem:[#allocation2 + $0xe8] sm:$0xff]
        %v3419 = vld [vmem:[#allocation2 + $0xf0] sm:$0xff]
        %v3420 = vld [vmem:[#allocation2 + $0xf8] sm:$0xff]
        %3421 = vmatprep.subr.mxu0 0.0
        %3422 = vmatpush1.msra.mxu0 %v3373
        %3423 = vmatprep.subr.mxu0 0.0
        %3424 = vmatpush1.msra.mxu0 %v3374
        %3425 = vmatprep.subr.mxu0 0.0
        %3426 = vmatpush1.msra.mxu0 %v3375
        %3427 = vmatprep.subr.mxu0 0.0
        %3428 = vmatpush1.msra.mxu0 %v3376
        %3429 = vmatprep.subr.mxu0 0.0
        %3430 = vmatpush1.msra.mxu0 %v3377
        %3431 = vmatprep.subr.mxu0 0.0
        %3432 = vmatpush1.msra.mxu0 %v3378
        %3433 = vmatprep.subr.mxu0 0.0
        %3434 = vmatpush1.msra.mxu0 %v3379
        %3435 = vmatprep.subr.mxu0 0.0
        %3436 = vmatpush1.msra.mxu0 %v3380
        %3437 = vmatprep.subr.mxu0 0.0
        %3438 = vmatpush1.msra.mxu0 %v3381
        %3439 = vmatprep.subr.mxu0 0.0
        %3440 = vmatpush1.msra.mxu0 %v3382
        %3441 = vmatprep.subr.mxu0 0.0
        %3442 = vmatpush1.msra.mxu0 %v3383
        %3443 = vmatprep.subr.mxu0 0.0
        %3444 = vmatpush1.msra.mxu0 %v3384
        %3445 = vmatprep.subr.mxu0 0.0
        %3446 = vmatpush1.msra.mxu0 %v3385
        %3447 = vmatprep.subr.mxu0 0.0
        %3448 = vmatpush1.msra.mxu0 %v3386
        %3449 = vmatprep.subr.mxu0 0.0
        %3450 = vmatpush1.msra.mxu0 %v3387
        %3451 = vmatprep.subr.mxu0 0.0
        %3452 = vmatpush1.msra.mxu0 %v3388
        %3453 = vmatprep.subr.mxu0 0.0
        %3454 = vmatpush1.msra.mxu0 0.0
        %3455 = vmatprep.subr.mxu0 0.0
        %3456 = vmatpush1.msra.mxu0 0.0
        %3457 = vmatprep.subr.mxu0 0.0
        %3458 = vmatpush1.msra.mxu0 0.0
        %3459 = vmatprep.subr.mxu0 0.0
        %3460 = vmatpush1.msra.mxu0 0.0
        %3461 = vmatprep.subr.mxu0 0.0
        %3462 = vmatpush1.msra.mxu0 0.0
        %3463 = vmatprep.subr.mxu0 0.0
        %3464 = vmatpush1.msra.mxu0 0.0
        %3465 = vmatprep.subr.mxu0 0.0
        %3466 = vmatpush1.msra.mxu0 0.0
        %3467 = vmatprep.subr.mxu0 0.0
        %3468 = vmatpush1.msra.mxu0 0.0
        %3469 = vmatprep.subr.mxu0 0.0
        %3470 = vmatpush1.msra.mxu0 0.0
        %3471 = vmatprep.subr.mxu0 0.0
        %3472 = vmatpush1.msra.mxu0 0.0
        %3473 = vmatprep.subr.mxu0 0.0
        %3474 = vmatpush1.msra.mxu0 0.0
        %3475 = vmatprep.subr.mxu0 0.0
        %3476 = vmatpush1.msra.mxu0 0.0
        %3477 = vmatprep.subr.mxu0 0.0
        %3478 = vmatpush1.msra.mxu0 0.0
        %3479 = vmatprep.subr.mxu0 0.0
        %3480 = vmatpush1.msra.mxu0 0.0
        %3481 = vmatprep.subr.mxu0 0.0
        %3482 = vmatpush1.msra.mxu0 0.0
        %3483 = vmatprep.subr.mxu0 0.0
        %3484 = vmatpush1.msra.mxu0 0.0
        %3485 = vmatprep.mubr.f32.mxu0 0.0
        %3486 = vmatmul.mubr.f32.gmra.mrb[0].mxu0 %v3389
        %v3487 = vpop.f32.mrb[0].mxu0
        %v3488 = vadd.f32 0.0, %v3487
        %v3489 = vpop.f32.mrb[0].mxu0
        %3490 = vmatprep.mubr.f32.mxu0 0.0
        %3491 = vmatmul.mubr.f32.gmra.mrb[0].mxu0 %v3390
        %v3492 = vpop.f32.mrb[0].mxu0
        %v3493 = vadd.f32 0.0, %v3492
        %v3494 = vpop.f32.mrb[0].mxu0
        %3495 = vmatprep.mubr.f32.mxu0 0.0
        %3496 = vmatmul.mubr.f32.gmra.mrb[0].mxu0 %v3391
        %v3497 = vpop.f32.mrb[0].mxu0
        %v3498 = vadd.f32 0.0, %v3497
        %v3499 = vpop.f32.mrb[0].mxu0
        %3500 = vmatprep.mubr.f32.mxu0 0.0
        %3501 = vmatmul.mubr.f32.gmra.mrb[0].mxu0 %v3392
        %v3502 = vpop.f32.mrb[0].mxu0
        %v3503 = vadd.f32 0.0, %v3502
        %v3504 = vpop.f32.mrb[0].mxu0
        %3505 = vmatprep.mubr.f32.mxu0 0.0
        %3506 = vmatmul.mubr.f32.gmra.mrb[0].mxu0 %v3393
        %v3507 = vpop.f32.mrb[0].mxu0
        %v3508 = vadd.f32 0.0, %v3507
        %v3509 = vpop.f32.mrb[0].mxu0
        %3510 = vmatprep.mubr.f32.mxu0 0.0
        %3511 = vmatmul.mubr.f32.gmra.mrb[0].mxu0 %v3394
        %v3512 = vpop.f32.mrb[0].mxu0
        %v3513 = vadd.f32 0.0, %v3512
        %v3514 = vpop.f32.mrb[0].mxu0
        %3515 = vmatprep.mubr.f32.mxu0 0.0
        %3516 = vmatmul.mubr.f32.gmra.mrb[0].mxu0 %v3395
        %v3517 = vpop.f32.mrb[0].mxu0
        %v3518 = vadd.f32 0.0, %v3517
        %v3519 = vpop.f32.mrb[0].mxu0
        %3520 = vmatprep.mubr.f32.mxu0 0.0
        %3521 = vmatmul.mubr.f32.gmra.mrb[0].mxu0 %v3396
        %v3522 = vpop.f32.mrb[0].mxu0
        %v3523 = vadd.f32 0.0, %v3522
        %v3524 = vpop.f32.mrb[0].mxu0
        %3525 = vmatprep.mubr.f32.mxu0 0.0
        %3526 = vmatmul.mubr.f32.gmra.mrb[0].mxu0 %v3397
        %v3527 = vpop.f32.mrb[0].mxu0
        %v3528 = vadd.f32 0.0, %v3527
        %v3529 = vpop.f32.mrb[0].mxu0
        %3530 = vmatprep.mubr.f32.mxu0 0.0
        %3531 = vmatmul.mubr.f32.gmra.mrb[0].mxu0 %v3398
        %v3532 = vpop.f32.mrb[0].mxu0
        %v3533 = vadd.f32 0.0, %v3532
        %v3534 = vpop.f32.mrb[0].mxu0
        %3535 = vmatprep.mubr.f32.mxu0 0.0
        %3536 = vmatmul.mubr.f32.gmra.mrb[0].mxu0 %v3399
        %v3537 = vpop.f32.mrb[0].mxu0
        %v3538 = vadd.f32 0.0, %v3537
        %v3539 = vpop.f32.mrb[0].mxu0
        %3540 = vmatprep.mubr.f32.mxu0 0.0
        %3541 = vmatmul.mubr.f32.gmra.mrb[0].mxu0 %v3400
        %v3542 = vpop.f32.mrb[0].mxu0
        %v3543 = vadd.f32 0.0, %v3542
        %v3544 = vpop.f32.mrb[0].mxu0
        %3545 = vmatprep.mubr.f32.mxu0 0.0
        %3546 = vmatmul.mubr.f32.gmra.mrb[0].mxu0 %v3401
        %v3547 = vpop.f32.mrb[0].mxu0
        %v3548 = vadd.f32 0.0, %v3547
        %v3549 = vpop.f32.mrb[0].mxu0
        %3550 = vmatprep.mubr.f32.mxu0 0.0
        %3551 = vmatmul.mubr.f32.gmra.mrb[0].mxu0 %v3402
        %v3552 = vpop.f32.mrb[0].mxu0
        %v3553 = vadd.f32 0.0, %v3552
        %v3554 = vpop.f32.mrb[0].mxu0
        %3555 = vmatprep.mubr.f32.mxu0 0.0
        %3556 = vmatmul.mubr.f32.gmra.mrb[0].mxu0 %v3403
        %v3557 = vpop.f32.mrb[0].mxu0
        %v3558 = vadd.f32 0.0, %v3557
        %v3559 = vpop.f32.mrb[0].mxu0
        %3560 = vmatprep.mubr.f32.mxu0 0.0
        %3561 = vmatmul.mubr.f32.gmra.mrb[0].mxu0 %v3404
        %v3562 = vpop.f32.mrb[0].mxu0
        %v3563 = vadd.f32 0.0, %v3562
        %v3564 = vpop.f32.mrb[0].mxu0
        %3565 = vmatprep.mubr.f32.mxu0 0.0
        %3566 = vmatmul.mubr.f32.gmra.mrb[0].mxu0 %v3405
        %v3567 = vpop.f32.mrb[0].mxu0
        %v3568 = vadd.f32 0.0, %v3567
        %v3569 = vpop.f32.mrb[0].mxu0
        %3570 = vmatprep.mubr.f32.mxu0 0.0
        %3571 = vmatmul.mubr.f32.gmra.mrb[0].mxu0 %v3406
        %v3572 = vpop.f32.mrb[0].mxu0
        %v3573 = vadd.f32 0.0, %v3572
        %v3574 = vpop.f32.mrb[0].mxu0
        %3575 = vmatprep.mubr.f32.mxu0 0.0
        %3576 = vmatmul.mubr.f32.gmra.mrb[0].mxu0 %v3407
        %v3577 = vpop.f32.mrb[0].mxu0
        %v3578 = vadd.f32 0.0, %v3577
        %v3579 = vpop.f32.mrb[0].mxu0
        %3580 = vmatprep.mubr.f32.mxu0 0.0
        %3581 = vmatmul.mubr.f32.gmra.mrb[0].mxu0 %v3408
        %v3582 = vpop.f32.mrb[0].mxu0
        %v3583 = vadd.f32 0.0, %v3582
        %v3584 = vpop.f32.mrb[0].mxu0
        %3585 = vmatprep.mubr.f32.mxu0 0.0
        %3586 = vmatmul.mubr.f32.gmra.mrb[0].mxu0 %v3409
        %v3587 = vpop.f32.mrb[0].mxu0
        %v3588 = vadd.f32 0.0, %v3587
        %v3589 = vpop.f32.mrb[0].mxu0
        %3590 = vmatprep.mubr.f32.mxu0 0.0
        %3591 = vmatmul.mubr.f32.gmra.mrb[0].mxu0 %v3410
        %v3592 = vpop.f32.mrb[0].mxu0
        %v3593 = vadd.f32 0.0, %v3592
        %v3594 = vpop.f32.mrb[0].mxu0
        %3595 = vmatprep.mubr.f32.mxu0 0.0
        %3596 = vmatmul.mubr.f32.gmra.mrb[0].mxu0 %v3411
        %v3597 = vpop.f32.mrb[0].mxu0
        %v3598 = vadd.f32 0.0, %v3597
        %v3599 = vpop.f32.mrb[0].mxu0
        %3600 = vmatprep.mubr.f32.mxu0 0.0
        %3601 = vmatmul.mubr.f32.gmra.mrb[0].mxu0 %v3412
        %v3602 = vpop.f32.mrb[0].mxu0
        %v3603 = vadd.f32 0.0, %v3602
        %v3604 = vpop.f32.mrb[0].mxu0
        %3605 = vmatprep.mubr.f32.mxu0 0.0
        %3606 = vmatmul.mubr.f32.gmra.mrb[0].mxu0 %v3413
        %v3607 = vpop.f32.mrb[0].mxu0
        %v3608 = vadd.f32 0.0, %v3607
        %v3609 = vpop.f32.mrb[0].mxu0
        %3610 = vmatprep.mubr.f32.mxu0 0.0
        %3611 = vmatmul.mubr.f32.gmra.mrb[0].mxu0 %v3414
        %v3612 = vpop.f32.mrb[0].mxu0
        %v3613 = vadd.f32 0.0, %v3612
        %v3614 = vpop.f32.mrb[0].mxu0
        %3615 = vmatprep.mubr.f32.mxu0 0.0
        %3616 = vmatmul.mubr.f32.gmra.mrb[0].mxu0 %v3415
        %v3617 = vpop.f32.mrb[0].mxu0
        %v3618 = vadd.f32 0.0, %v3617
        %v3619 = vpop.f32.mrb[0].mxu0
        %3620 = vmatprep.mubr.f32.mxu0 0.0
        %3621 = vmatmul.mubr.f32.gmra.mrb[0].mxu0 %v3416
        %v3622 = vpop.f32.mrb[0].mxu0
        %v3623 = vadd.f32 0.0, %v3622
        %v3624 = vpop.f32.mrb[0].mxu0
        %3625 = vmatprep.mubr.f32.mxu0 0.0
        %3626 = vmatmul.mubr.f32.gmra.mrb[0].mxu0 %v3417
        %v3627 = vpop.f32.mrb[0].mxu0
        %v3628 = vadd.f32 0.0, %v3627
        %v3629 = vpop.f32.mrb[0].mxu0
        %3630 = vmatprep.mubr.f32.mxu0 0.0
        %3631 = vmatmul.mubr.f32.gmra.mrb[0].mxu0 %v3418
        %v3632 = vpop.f32.mrb[0].mxu0
        %v3633 = vadd.f32 0.0, %v3632
        %v3634 = vpop.f32.mrb[0].mxu0
        %3635 = vmatprep.mubr.f32.mxu0 0.0
        %3636 = vmatmul.mubr.f32.gmra.mrb[0].mxu0 %v3419
        %v3637 = vpop.f32.mrb[0].mxu0
        %v3638 = vadd.f32 0.0, %v3637
        %v3639 = vpop.f32.mrb[0].mxu0
        %3640 = vmatprep.mubr.f32.mxu0 0.0
        %3641 = vmatmul.mubr.f32.gmra.mrb[0].mxu0 %v3420
        %v3642 = vpop.f32.mrb[0].mxu0
        %v3643 = vadd.f32 0.0, %v3642
        %v3644 = vpop.f32.mrb[0].mxu0
        %3645 = vdwg.mxu0
        %v3646 = vld [vmem:[%s10] sm:$0x1]
        %v3647 = vld [vmem:[%s9] sm:$0xff]
        %v3648 = vld [vmem:[%s9 + $0x8] sm:$0xff]
        %v3649 = vld [vmem:[%s9 + $0x10] sm:$0xff]
        %v3650 = vld [vmem:[%s9 + $0x18] sm:$0xff]
        %v3651 = vld [vmem:[%s9 + $0x20] sm:$0xff]
        %v3652 = vld [vmem:[%s9 + $0x28] sm:$0xff]
        %v3653 = vld [vmem:[%s9 + $0x30] sm:$0xff]
        %v3654 = vld [vmem:[%s9 + $0x38] sm:$0xff]
        %v3655 = vld [vmem:[%s9 + $0x40] sm:$0xff]
        %v3656 = vld [vmem:[%s9 + $0x48] sm:$0xff]
        %v3657 = vld [vmem:[%s9 + $0x50] sm:$0xff]
        %v3658 = vld [vmem:[%s9 + $0x58] sm:$0xff]
        %v3659 = vld [vmem:[%s9 + $0x60] sm:$0xff]
        %v3660 = vld [vmem:[%s9 + $0x68] sm:$0xff]
        %v3661 = vld [vmem:[%s9 + $0x70] sm:$0xff]
        %v3662 = vld [vmem:[%s9 + $0x78] sm:$0xff]
        %3663 = vmatprep.subr.mxu0 0.0
        %3664 = vmatpush1.msra.mxu0 %v3647
        %3665 = vmatprep.subr.mxu0 0.0
        %3666 = vmatpush1.msra.mxu0 %v3648
        %3667 = vmatprep.subr.mxu0 0.0
        %3668 = vmatpush1.msra.mxu0 %v3649
        %3669 = vmatprep.subr.mxu0 0.0
        %3670 = vmatpush1.msra.mxu0 %v3650
        %3671 = vmatprep.subr.mxu0 0.0
        %3672 = vmatpush1.msra.mxu0 %v3651
        %3673 = vmatprep.subr.mxu0 0.0
        %3674 = vmatpush1.msra.mxu0 %v3652
        %3675 = vmatprep.subr.mxu0 0.0
        %3676 = vmatpush1.msra.mxu0 %v3653
        %3677 = vmatprep.subr.mxu0 0.0
        %3678 = vmatpush1.msra.mxu0 %v3654
        %3679 = vmatprep.subr.mxu0 0.0
        %3680 = vmatpush1.msra.mxu0 %v3655
        %3681 = vmatprep.subr.mxu0 0.0
        %3682 = vmatpush1.msra.mxu0 %v3656
        %3683 = vmatprep.subr.mxu0 0.0
        %3684 = vmatpush1.msra.mxu0 %v3657
        %3685 = vmatprep.subr.mxu0 0.0
        %3686 = vmatpush1.msra.mxu0 %v3658
        %3687 = vmatprep.subr.mxu0 0.0
        %3688 = vmatpush1.msra.mxu0 %v3659
        %3689 = vmatprep.subr.mxu0 0.0
        %3690 = vmatpush1.msra.mxu0 %v3660
        %3691 = vmatprep.subr.mxu0 0.0
        %3692 = vmatpush1.msra.mxu0 %v3661
        %3693 = vmatprep.subr.mxu0 0.0
        %3694 = vmatpush1.msra.mxu0 %v3662
        %3695 = vmatprep.subr.mxu0 0.0
        %3696 = vmatpush1.msra.mxu0 0.0
        %3697 = vmatprep.subr.mxu0 0.0
        %3698 = vmatpush1.msra.mxu0 0.0
        %3699 = vmatprep.subr.mxu0 0.0
        %3700 = vmatpush1.msra.mxu0 0.0
        %3701 = vmatprep.subr.mxu0 0.0
        %3702 = vmatpush1.msra.mxu0 0.0
        %3703 = vmatprep.subr.mxu0 0.0
        %3704 = vmatpush1.msra.mxu0 0.0
        %3705 = vmatprep.subr.mxu0 0.0
        %3706 = vmatpush1.msra.mxu0 0.0
        %3707 = vmatprep.subr.mxu0 0.0
        %3708 = vmatpush1.msra.mxu0 0.0
        %3709 = vmatprep.subr.mxu0 0.0
        %3710 = vmatpush1.msra.mxu0 0.0
        %3711 = vmatprep.subr.mxu0 0.0
        %3712 = vmatpush1.msra.mxu0 0.0
        %3713 = vmatprep.subr.mxu0 0.0
        %3714 = vmatpush1.msra.mxu0 0.0
        %3715 = vmatprep.subr.mxu0 0.0
        %3716 = vmatpush1.msra.mxu0 0.0
        %3717 = vmatprep.subr.mxu0 0.0
        %3718 = vmatpush1.msra.mxu0 0.0
        %3719 = vmatprep.subr.mxu0 0.0
        %3720 = vmatpush1.msra.mxu0 0.0
        %3721 = vmatprep.subr.mxu0 0.0
        %3722 = vmatpush1.msra.mxu0 0.0
        %3723 = vmatprep.subr.mxu0 0.0
        %3724 = vmatpush1.msra.mxu0 0.0
        %3725 = vmatprep.subr.mxu0 0.0
        %3726 = vmatpush1.msra.mxu0 0.0
        %3727 = vmatprep.mubr.f32.mxu0 0.0
        %3728 = vmatmul.mubr.f32.gmra.mrb[0].mxu0 %v3488
        %v3729 = vpop.f32.mrb[0].mxu0
        %v3730 = vadd.f32 0.0, %v3729
        %v3731 = vpop.f32.mrb[0].mxu0
        %3732 = vmatprep.mubr.f32.mxu0 0.0
        %3733 = vmatmul.mubr.f32.gmra.mrb[0].mxu0 %v3493
        %v3734 = vpop.f32.mrb[0].mxu0
        %v3735 = vadd.f32 0.0, %v3734
        %v3736 = vpop.f32.mrb[0].mxu0
        %3737 = vdwg.mxu0
        %v3739 = vlaneseq
        %v3740 = vshrl.u32 %v3739, 7
        %v3741 = vsub.s32 0, %v3740
        %v3742 = vrot.slane %v3646, %v3741
        %v3744 = vadd.f32 %v3742, %v3730
        %v3745 = vadd.f32 %v3742, %v3735
        %s3746 = scalar_lea.vmem %s9, 128
        %v3747 = vld [vmem:[%s3746] sm:$0xff]
        %v3748 = vld [vmem:[%s3746 + $0x8] sm:$0xff]
        %v3749 = vld [vmem:[%s3746 + $0x10] sm:$0xff]
        %v3750 = vld [vmem:[%s3746 + $0x18] sm:$0xff]
        %v3751 = vld [vmem:[%s3746 + $0x20] sm:$0xff]
        %v3752 = vld [vmem:[%s3746 + $0x28] sm:$0xff]
        %v3753 = vld [vmem:[%s3746 + $0x30] sm:$0xff]
        %v3754 = vld [vmem:[%s3746 + $0x38] sm:$0xff]
        %v3755 = vld [vmem:[%s3746 + $0x40] sm:$0xff]
        %v3756 = vld [vmem:[%s3746 + $0x48] sm:$0xff]
        %v3757 = vld [vmem:[%s3746 + $0x50] sm:$0xff]
        %v3758 = vld [vmem:[%s3746 + $0x58] sm:$0xff]
        %v3759 = vld [vmem:[%s3746 + $0x60] sm:$0xff]
        %v3760 = vld [vmem:[%s3746 + $0x68] sm:$0xff]
        %v3761 = vld [vmem:[%s3746 + $0x70] sm:$0xff]
        %v3762 = vld [vmem:[%s3746 + $0x78] sm:$0xff]
        %3763 = vmatprep.subr.mxu0 0.0
        %3764 = vmatpush1.msra.mxu0 %v3747
        %3765 = vmatprep.subr.mxu0 0.0
        %3766 = vmatpush1.msra.mxu0 %v3748
        %3767 = vmatprep.subr.mxu0 0.0
        %3768 = vmatpush1.msra.mxu0 %v3749
        %3769 = vmatprep.subr.mxu0 0.0
        %3770 = vmatpush1.msra.mxu0 %v3750
        %3771 = vmatprep.subr.mxu0 0.0
        %3772 = vmatpush1.msra.mxu0 %v3751
        %3773 = vmatprep.subr.mxu0 0.0
        %3774 = vmatpush1.msra.mxu0 %v3752
        %3775 = vmatprep.subr.mxu0 0.0
        %3776 = vmatpush1.msra.mxu0 %v3753
        %3777 = vmatprep.subr.mxu0 0.0
        %3778 = vmatpush1.msra.mxu0 %v3754
        %3779 = vmatprep.subr.mxu0 0.0
        %3780 = vmatpush1.msra.mxu0 %v3755
        %3781 = vmatprep.subr.mxu0 0.0
        %3782 = vmatpush1.msra.mxu0 %v3756
        %3783 = vmatprep.subr.mxu0 0.0
        %3784 = vmatpush1.msra.mxu0 %v3757
        %3785 = vmatprep.subr.mxu0 0.0
        %3786 = vmatpush1.msra.mxu0 %v3758
        %3787 = vmatprep.subr.mxu0 0.0
        %3788 = vmatpush1.msra.mxu0 %v3759
        %3789 = vmatprep.subr.mxu0 0.0
        %3790 = vmatpush1.msra.mxu0 %v3760
        %3791 = vmatprep.subr.mxu0 0.0
        %3792 = vmatpush1.msra.mxu0 %v3761
        %3793 = vmatprep.subr.mxu0 0.0
        %3794 = vmatpush1.msra.mxu0 %v3762
        %3795 = vmatprep.subr.mxu0 0.0
        %3796 = vmatpush1.msra.mxu0 0.0
        %3797 = vmatprep.subr.mxu0 0.0
        %3798 = vmatpush1.msra.mxu0 0.0
        %3799 = vmatprep.subr.mxu0 0.0
        %3800 = vmatpush1.msra.mxu0 0.0
        %3801 = vmatprep.subr.mxu0 0.0
        %3802 = vmatpush1.msra.mxu0 0.0
        %3803 = vmatprep.subr.mxu0 0.0
        %3804 = vmatpush1.msra.mxu0 0.0
        %3805 = vmatprep.subr.mxu0 0.0
        %3806 = vmatpush1.msra.mxu0 0.0
        %3807 = vmatprep.subr.mxu0 0.0
        %3808 = vmatpush1.msra.mxu0 0.0
        %3809 = vmatprep.subr.mxu0 0.0
        %3810 = vmatpush1.msra.mxu0 0.0
        %3811 = vmatprep.subr.mxu0 0.0
        %3812 = vmatpush1.msra.mxu0 0.0
        %3813 = vmatprep.subr.mxu0 0.0
        %3814 = vmatpush1.msra.mxu0 0.0
        %3815 = vmatprep.subr.mxu0 0.0
        %3816 = vmatpush1.msra.mxu0 0.0
        %3817 = vmatprep.subr.mxu0 0.0
        %3818 = vmatpush1.msra.mxu0 0.0
        %3819 = vmatprep.subr.mxu0 0.0
        %3820 = vmatpush1.msra.mxu0 0.0
        %3821 = vmatprep.subr.mxu0 0.0
        %3822 = vmatpush1.msra.mxu0 0.0
        %3823 = vmatprep.subr.mxu0 0.0
        %3824 = vmatpush1.msra.mxu0 0.0
        %3825 = vmatprep.subr.mxu0 0.0
        %3826 = vmatpush1.msra.mxu0 0.0
        %3827 = vmatprep.mubr.f32.mxu0 0.0
        %3828 = vmatmul.mubr.f32.gmra.mrb[0].mxu0 %v3498
        %v3829 = vpop.f32.mrb[0].mxu0
        %v3830 = vadd.f32 0.0, %v3829
        %v3831 = vpop.f32.mrb[0].mxu0
        %3832 = vmatprep.mubr.f32.mxu0 0.0
        %3833 = vmatmul.mubr.f32.gmra.mrb[0].mxu0 %v3503
        %v3834 = vpop.f32.mrb[0].mxu0
        %v3835 = vadd.f32 0.0, %v3834
        %v3836 = vpop.f32.mrb[0].mxu0
        %3837 = vdwg.mxu0
        %v3838 = vadd.f32 %v3744, %v3830
        %v3839 = vadd.f32 %v3745, %v3835
        %s3840 = scalar_lea.vmem %s9, 256
        %v3841 = vld [vmem:[%s3840] sm:$0xff]
        %v3842 = vld [vmem:[%s3840 + $0x8] sm:$0xff]
        %v3843 = vld [vmem:[%s3840 + $0x10] sm:$0xff]
        %v3844 = vld [vmem:[%s3840 + $0x18] sm:$0xff]
        %v3845 = vld [vmem:[%s3840 + $0x20] sm:$0xff]
        %v3846 = vld [vmem:[%s3840 + $0x28] sm:$0xff]
        %v3847 = vld [vmem:[%s3840 + $0x30] sm:$0xff]
        %v3848 = vld [vmem:[%s3840 + $0x38] sm:$0xff]
        %v3849 = vld [vmem:[%s3840 + $0x40] sm:$0xff]
        %v3850 = vld [vmem:[%s3840 + $0x48] sm:$0xff]
        %v3851 = vld [vmem:[%s3840 + $0x50] sm:$0xff]
        %v3852 = vld [vmem:[%s3840 + $0x58] sm:$0xff]
        %v3853 = vld [vmem:[%s3840 + $0x60] sm:$0xff]
        %v3854 = vld [vmem:[%s3840 + $0x68] sm:$0xff]
        %v3855 = vld [vmem:[%s3840 + $0x70] sm:$0xff]
        %v3856 = vld [vmem:[%s3840 + $0x78] sm:$0xff]
        %3857 = vmatprep.subr.mxu0 0.0
        %3858 = vmatpush1.msra.mxu0 %v3841
        %3859 = vmatprep.subr.mxu0 0.0
        %3860 = vmatpush1.msra.mxu0 %v3842
        %3861 = vmatprep.subr.mxu0 0.0
        %3862 = vmatpush1.msra.mxu0 %v3843
        %3863 = vmatprep.subr.mxu0 0.0
        %3864 = vmatpush1.msra.mxu0 %v3844
        %3865 = vmatprep.subr.mxu0 0.0
        %3866 = vmatpush1.msra.mxu0 %v3845
        %3867 = vmatprep.subr.mxu0 0.0
        %3868 = vmatpush1.msra.mxu0 %v3846
        %3869 = vmatprep.subr.mxu0 0.0
        %3870 = vmatpush1.msra.mxu0 %v3847
        %3871 = vmatprep.subr.mxu0 0.0
        %3872 = vmatpush1.msra.mxu0 %v3848
        %3873 = vmatprep.subr.mxu0 0.0
        %3874 = vmatpush1.msra.mxu0 %v3849
        %3875 = vmatprep.subr.mxu0 0.0
        %3876 = vmatpush1.msra.mxu0 %v3850
        %3877 = vmatprep.subr.mxu0 0.0
        %3878 = vmatpush1.msra.mxu0 %v3851
        %3879 = vmatprep.subr.mxu0 0.0
        %3880 = vmatpush1.msra.mxu0 %v3852
        %3881 = vmatprep.subr.mxu0 0.0
        %3882 = vmatpush1.msra.mxu0 %v3853
        %3883 = vmatprep.subr.mxu0 0.0
        %3884 = vmatpush1.msra.mxu0 %v3854
        %3885 = vmatprep.subr.mxu0 0.0
        %3886 = vmatpush1.msra.mxu0 %v3855
        %3887 = vmatprep.subr.mxu0 0.0
        %3888 = vmatpush1.msra.mxu0 %v3856
        %3889 = vmatprep.subr.mxu0 0.0
        %3890 = vmatpush1.msra.mxu0 0.0
        %3891 = vmatprep.subr.mxu0 0.0
        %3892 = vmatpush1.msra.mxu0 0.0
        %3893 = vmatprep.subr.mxu0 0.0
        %3894 = vmatpush1.msra.mxu0 0.0
        %3895 = vmatprep.subr.mxu0 0.0
        %3896 = vmatpush1.msra.mxu0 0.0
        %3897 = vmatprep.subr.mxu0 0.0
        %3898 = vmatpush1.msra.mxu0 0.0
        %3899 = vmatprep.subr.mxu0 0.0
        %3900 = vmatpush1.msra.mxu0 0.0
        %3901 = vmatprep.subr.mxu0 0.0
        %3902 = vmatpush1.msra.mxu0 0.0
        %3903 = vmatprep.subr.mxu0 0.0
        %3904 = vmatpush1.msra.mxu0 0.0
        %3905 = vmatprep.subr.mxu0 0.0
        %3906 = vmatpush1.msra.mxu0 0.0
        %3907 = vmatprep.subr.mxu0 0.0
        %3908 = vmatpush1.msra.mxu0 0.0
        %3909 = vmatprep.subr.mxu0 0.0
        %3910 = vmatpush1.msra.mxu0 0.0
        %3911 = vmatprep.subr.mxu0 0.0
        %3912 = vmatpush1.msra.mxu0 0.0
        %3913 = vmatprep.subr.mxu0 0.0
        %3914 = vmatpush1.msra.mxu0 0.0
        %3915 = vmatprep.subr.mxu0 0.0
        %3916 = vmatpush1.msra.mxu0 0.0
        %3917 = vmatprep.subr.mxu0 0.0
        %3918 = vmatpush1.msra.mxu0 0.0
        %3919 = vmatprep.subr.mxu0 0.0
        %3920 = vmatpush1.msra.mxu0 0.0
        %3921 = vmatprep.mubr.f32.mxu0 0.0
        %3922 = vmatmul.mubr.f32.gmra.mrb[0].mxu0 %v3508
        %v3923 = vpop.f32.mrb[0].mxu0
        %v3924 = vadd.f32 0.0, %v3923
        %v3925 = vpop.f32.mrb[0].mxu0
        %3926 = vmatprep.mubr.f32.mxu0 0.0
        %3927 = vmatmul.mubr.f32.gmra.mrb[0].mxu0 %v3513
        %v3928 = vpop.f32.mrb[0].mxu0
        %v3929 = vadd.f32 0.0, %v3928
        %v3930 = vpop.f32.mrb[0].mxu0
        %3931 = vdwg.mxu0
        %v3932 = vadd.f32 %v3838, %v3924
        %v3933 = vadd.f32 %v3839, %v3929
        %s3934 = scalar_lea.vmem %s9, 384
        %v3935 = vld [vmem:[%s3934] sm:$0xff]
        %v3936 = vld [vmem:[%s3934 + $0x8] sm:$0xff]
        %v3937 = vld [vmem:[%s3934 + $0x10] sm:$0xff]
        %v3938 = vld [vmem:[%s3934 + $0x18] sm:$0xff]
        %v3939 = vld [vmem:[%s3934 + $0x20] sm:$0xff]
        %v3940 = vld [vmem:[%s3934 + $0x28] sm:$0xff]
        %v3941 = vld [vmem:[%s3934 + $0x30] sm:$0xff]
        %v3942 = vld [vmem:[%s3934 + $0x38] sm:$0xff]
        %v3943 = vld [vmem:[%s3934 + $0x40] sm:$0xff]
        %v3944 = vld [vmem:[%s3934 + $0x48] sm:$0xff]
        %v3945 = vld [vmem:[%s3934 + $0x50] sm:$0xff]
        %v3946 = vld [vmem:[%s3934 + $0x58] sm:$0xff]
        %v3947 = vld [vmem:[%s3934 + $0x60] sm:$0xff]
        %v3948 = vld [vmem:[%s3934 + $0x68] sm:$0xff]
        %v3949 = vld [vmem:[%s3934 + $0x70] sm:$0xff]
        %v3950 = vld [vmem:[%s3934 + $0x78] sm:$0xff]
        %3951 = vmatprep.subr.mxu0 0.0
        %3952 = vmatpush1.msra.mxu0 %v3935
        %3953 = vmatprep.subr.mxu0 0.0
        %3954 = vmatpush1.msra.mxu0 %v3936
        %3955 = vmatprep.subr.mxu0 0.0
        %3956 = vmatpush1.msra.mxu0 %v3937
        %3957 = vmatprep.subr.mxu0 0.0
        %3958 = vmatpush1.msra.mxu0 %v3938
        %3959 = vmatprep.subr.mxu0 0.0
        %3960 = vmatpush1.msra.mxu0 %v3939
        %3961 = vmatprep.subr.mxu0 0.0
        %3962 = vmatpush1.msra.mxu0 %v3940
        %3963 = vmatprep.subr.mxu0 0.0
        %3964 = vmatpush1.msra.mxu0 %v3941
        %3965 = vmatprep.subr.mxu0 0.0
        %3966 = vmatpush1.msra.mxu0 %v3942
        %3967 = vmatprep.subr.mxu0 0.0
        %3968 = vmatpush1.msra.mxu0 %v3943
        %3969 = vmatprep.subr.mxu0 0.0
        %3970 = vmatpush1.msra.mxu0 %v3944
        %3971 = vmatprep.subr.mxu0 0.0
        %3972 = vmatpush1.msra.mxu0 %v3945
        %3973 = vmatprep.subr.mxu0 0.0
        %3974 = vmatpush1.msra.mxu0 %v3946
        %3975 = vmatprep.subr.mxu0 0.0
        %3976 = vmatpush1.msra.mxu0 %v3947
        %3977 = vmatprep.subr.mxu0 0.0
        %3978 = vmatpush1.msra.mxu0 %v3948
        %3979 = vmatprep.subr.mxu0 0.0
        %3980 = vmatpush1.msra.mxu0 %v3949
        %3981 = vmatprep.subr.mxu0 0.0
        %3982 = vmatpush1.msra.mxu0 %v3950
        %3983 = vmatprep.subr.mxu0 0.0
        %3984 = vmatpush1.msra.mxu0 0.0
        %3985 = vmatprep.subr.mxu0 0.0
        %3986 = vmatpush1.msra.mxu0 0.0
        %3987 = vmatprep.subr.mxu0 0.0
        %3988 = vmatpush1.msra.mxu0 0.0
        %3989 = vmatprep.subr.mxu0 0.0
        %3990 = vmatpush1.msra.mxu0 0.0
        %3991 = vmatprep.subr.mxu0 0.0
        %3992 = vmatpush1.msra.mxu0 0.0
        %3993 = vmatprep.subr.mxu0 0.0
        %3994 = vmatpush1.msra.mxu0 0.0
        %3995 = vmatprep.subr.mxu0 0.0
        %3996 = vmatpush1.msra.mxu0 0.0
        %3997 = vmatprep.subr.mxu0 0.0
        %3998 = vmatpush1.msra.mxu0 0.0
        %3999 = vmatprep.subr.mxu0 0.0
        %4000 = vmatpush1.msra.mxu0 0.0
        %4001 = vmatprep.subr.mxu0 0.0
        %4002 = vmatpush1.msra.mxu0 0.0
        %4003 = vmatprep.subr.mxu0 0.0
        %4004 = vmatpush1.msra.mxu0 0.0
        %4005 = vmatprep.subr.mxu0 0.0
        %4006 = vmatpush1.msra.mxu0 0.0
        %4007 = vmatprep.subr.mxu0 0.0
        %4008 = vmatpush1.msra.mxu0 0.0
        %4009 = vmatprep.subr.mxu0 0.0
        %4010 = vmatpush1.msra.mxu0 0.0
        %4011 = vmatprep.subr.mxu0 0.0
        %4012 = vmatpush1.msra.mxu0 0.0
        %4013 = vmatprep.subr.mxu0 0.0
        %4014 = vmatpush1.msra.mxu0 0.0
        %4015 = vmatprep.mubr.f32.mxu0 0.0
        %4016 = vmatmul.mubr.f32.gmra.mrb[0].mxu0 %v3518
        %v4017 = vpop.f32.mrb[0].mxu0
        %v4018 = vadd.f32 0.0, %v4017
        %v4019 = vpop.f32.mrb[0].mxu0
        %4020 = vmatprep.mubr.f32.mxu0 0.0
        %4021 = vmatmul.mubr.f32.gmra.mrb[0].mxu0 %v3523
        %v4022 = vpop.f32.mrb[0].mxu0
        %v4023 = vadd.f32 0.0, %v4022
        %v4024 = vpop.f32.mrb[0].mxu0
        %4025 = vdwg.mxu0
        %v4026 = vadd.f32 %v3932, %v4018
        %v4027 = vadd.f32 %v3933, %v4023
        %s4028 = scalar_lea.vmem %s9, 512
        %v4029 = vld [vmem:[%s4028] sm:$0xff]
        %v4030 = vld [vmem:[%s4028 + $0x8] sm:$0xff]
        %v4031 = vld [vmem:[%s4028 + $0x10] sm:$0xff]
        %v4032 = vld [vmem:[%s4028 + $0x18] sm:$0xff]
        %v4033 = vld [vmem:[%s4028 + $0x20] sm:$0xff]
        %v4034 = vld [vmem:[%s4028 + $0x28] sm:$0xff]
        %v4035 = vld [vmem:[%s4028 + $0x30] sm:$0xff]
        %v4036 = vld [vmem:[%s4028 + $0x38] sm:$0xff]
        %v4037 = vld [vmem:[%s4028 + $0x40] sm:$0xff]
        %v4038 = vld [vmem:[%s4028 + $0x48] sm:$0xff]
        %v4039 = vld [vmem:[%s4028 + $0x50] sm:$0xff]
        %v4040 = vld [vmem:[%s4028 + $0x58] sm:$0xff]
        %v4041 = vld [vmem:[%s4028 + $0x60] sm:$0xff]
        %v4042 = vld [vmem:[%s4028 + $0x68] sm:$0xff]
        %v4043 = vld [vmem:[%s4028 + $0x70] sm:$0xff]
        %v4044 = vld [vmem:[%s4028 + $0x78] sm:$0xff]
        %4045 = vmatprep.subr.mxu0 0.0
        %4046 = vmatpush1.msra.mxu0 %v4029
        %4047 = vmatprep.subr.mxu0 0.0
        %4048 = vmatpush1.msra.mxu0 %v4030
        %4049 = vmatprep.subr.mxu0 0.0
        %4050 = vmatpush1.msra.mxu0 %v4031
        %4051 = vmatprep.subr.mxu0 0.0
        %4052 = vmatpush1.msra.mxu0 %v4032
        %4053 = vmatprep.subr.mxu0 0.0
        %4054 = vmatpush1.msra.mxu0 %v4033
        %4055 = vmatprep.subr.mxu0 0.0
        %4056 = vmatpush1.msra.mxu0 %v4034
        %4057 = vmatprep.subr.mxu0 0.0
        %4058 = vmatpush1.msra.mxu0 %v4035
        %4059 = vmatprep.subr.mxu0 0.0
        %4060 = vmatpush1.msra.mxu0 %v4036
        %4061 = vmatprep.subr.mxu0 0.0
        %4062 = vmatpush1.msra.mxu0 %v4037
        %4063 = vmatprep.subr.mxu0 0.0
        %4064 = vmatpush1.msra.mxu0 %v4038
        %4065 = vmatprep.subr.mxu0 0.0
        %4066 = vmatpush1.msra.mxu0 %v4039
        %4067 = vmatprep.subr.mxu0 0.0
        %4068 = vmatpush1.msra.mxu0 %v4040
        %4069 = vmatprep.subr.mxu0 0.0
        %4070 = vmatpush1.msra.mxu0 %v4041
        %4071 = vmatprep.subr.mxu0 0.0
        %4072 = vmatpush1.msra.mxu0 %v4042
        %4073 = vmatprep.subr.mxu0 0.0
        %4074 = vmatpush1.msra.mxu0 %v4043
        %4075 = vmatprep.subr.mxu0 0.0
        %4076 = vmatpush1.msra.mxu0 %v4044
        %4077 = vmatprep.subr.mxu0 0.0
        %4078 = vmatpush1.msra.mxu0 0.0
        %4079 = vmatprep.subr.mxu0 0.0
        %4080 = vmatpush1.msra.mxu0 0.0
        %4081 = vmatprep.subr.mxu0 0.0
        %4082 = vmatpush1.msra.mxu0 0.0
        %4083 = vmatprep.subr.mxu0 0.0
        %4084 = vmatpush1.msra.mxu0 0.0
        %4085 = vmatprep.subr.mxu0 0.0
        %4086 = vmatpush1.msra.mxu0 0.0
        %4087 = vmatprep.subr.mxu0 0.0
        %4088 = vmatpush1.msra.mxu0 0.0
        %4089 = vmatprep.subr.mxu0 0.0
        %4090 = vmatpush1.msra.mxu0 0.0
        %4091 = vmatprep.subr.mxu0 0.0
        %4092 = vmatpush1.msra.mxu0 0.0
        %4093 = vmatprep.subr.mxu0 0.0
        %4094 = vmatpush1.msra.mxu0 0.0
        %4095 = vmatprep.subr.mxu0 0.0
        %4096 = vmatpush1.msra.mxu0 0.0
        %4097 = vmatprep.subr.mxu0 0.0
        %4098 = vmatpush1.msra.mxu0 0.0
        %4099 = vmatprep.subr.mxu0 0.0
        %4100 = vmatpush1.msra.mxu0 0.0
        %4101 = vmatprep.subr.mxu0 0.0
        %4102 = vmatpush1.msra.mxu0 0.0
        %4103 = vmatprep.subr.mxu0 0.0
        %4104 = vmatpush1.msra.mxu0 0.0
        %4105 = vmatprep.subr.mxu0 0.0
        %4106 = vmatpush1.msra.mxu0 0.0
        %4107 = vmatprep.subr.mxu0 0.0
        %4108 = vmatpush1.msra.mxu0 0.0
        %4109 = vmatprep.mubr.f32.mxu0 0.0
        %4110 = vmatmul.mubr.f32.gmra.mrb[0].mxu0 %v3528
        %v4111 = vpop.f32.mrb[0].mxu0
        %v4112 = vadd.f32 0.0, %v4111
        %v4113 = vpop.f32.mrb[0].mxu0
        %4114 = vmatprep.mubr.f32.mxu0 0.0
        %4115 = vmatmul.mubr.f32.gmra.mrb[0].mxu0 %v3533
        %v4116 = vpop.f32.mrb[0].mxu0
        %v4117 = vadd.f32 0.0, %v4116
        %v4118 = vpop.f32.mrb[0].mxu0
        %4119 = vdwg.mxu0
        %v4120 = vadd.f32 %v4026, %v4112
        %v4121 = vadd.f32 %v4027, %v4117
        %s4122 = scalar_lea.vmem %s9, 640
        %v4123 = vld [vmem:[%s4122] sm:$0xff]
        %v4124 = vld [vmem:[%s4122 + $0x8] sm:$0xff]
        %v4125 = vld [vmem:[%s4122 + $0x10] sm:$0xff]
        %v4126 = vld [vmem:[%s4122 + $0x18] sm:$0xff]
        %v4127 = vld [vmem:[%s4122 + $0x20] sm:$0xff]
        %v4128 = vld [vmem:[%s4122 + $0x28] sm:$0xff]
        %v4129 = vld [vmem:[%s4122 + $0x30] sm:$0xff]
        %v4130 = vld [vmem:[%s4122 + $0x38] sm:$0xff]
        %v4131 = vld [vmem:[%s4122 + $0x40] sm:$0xff]
        %v4132 = vld [vmem:[%s4122 + $0x48] sm:$0xff]
        %v4133 = vld [vmem:[%s4122 + $0x50] sm:$0xff]
        %v4134 = vld [vmem:[%s4122 + $0x58] sm:$0xff]
        %v4135 = vld [vmem:[%s4122 + $0x60] sm:$0xff]
        %v4136 = vld [vmem:[%s4122 + $0x68] sm:$0xff]
        %v4137 = vld [vmem:[%s4122 + $0x70] sm:$0xff]
        %v4138 = vld [vmem:[%s4122 + $0x78] sm:$0xff]
        %4139 = vmatprep.subr.mxu0 0.0
        %4140 = vmatpush1.msra.mxu0 %v4123
        %4141 = vmatprep.subr.mxu0 0.0
        %4142 = vmatpush1.msra.mxu0 %v4124
        %4143 = vmatprep.subr.mxu0 0.0
        %4144 = vmatpush1.msra.mxu0 %v4125
        %4145 = vmatprep.subr.mxu0 0.0
        %4146 = vmatpush1.msra.mxu0 %v4126
        %4147 = vmatprep.subr.mxu0 0.0
        %4148 = vmatpush1.msra.mxu0 %v4127
        %4149 = vmatprep.subr.mxu0 0.0
        %4150 = vmatpush1.msra.mxu0 %v4128
        %4151 = vmatprep.subr.mxu0 0.0
        %4152 = vmatpush1.msra.mxu0 %v4129
        %4153 = vmatprep.subr.mxu0 0.0
        %4154 = vmatpush1.msra.mxu0 %v4130
        %4155 = vmatprep.subr.mxu0 0.0
        %4156 = vmatpush1.msra.mxu0 %v4131
        %4157 = vmatprep.subr.mxu0 0.0
        %4158 = vmatpush1.msra.mxu0 %v4132
        %4159 = vmatprep.subr.mxu0 0.0
        %4160 = vmatpush1.msra.mxu0 %v4133
        %4161 = vmatprep.subr.mxu0 0.0
        %4162 = vmatpush1.msra.mxu0 %v4134
        %4163 = vmatprep.subr.mxu0 0.0
        %4164 = vmatpush1.msra.mxu0 %v4135
        %4165 = vmatprep.subr.mxu0 0.0
        %4166 = vmatpush1.msra.mxu0 %v4136
        %4167 = vmatprep.subr.mxu0 0.0
        %4168 = vmatpush1.msra.mxu0 %v4137
        %4169 = vmatprep.subr.mxu0 0.0
        %4170 = vmatpush1.msra.mxu0 %v4138
        %4171 = vmatprep.subr.mxu0 0.0
        %4172 = vmatpush1.msra.mxu0 0.0
        %4173 = vmatprep.subr.mxu0 0.0
        %4174 = vmatpush1.msra.mxu0 0.0
        %4175 = vmatprep.subr.mxu0 0.0
        %4176 = vmatpush1.msra.mxu0 0.0
        %4177 = vmatprep.subr.mxu0 0.0
        %4178 = vmatpush1.msra.mxu0 0.0
        %4179 = vmatprep.subr.mxu0 0.0
        %4180 = vmatpush1.msra.mxu0 0.0
        %4181 = vmatprep.subr.mxu0 0.0
        %4182 = vmatpush1.msra.mxu0 0.0
        %4183 = vmatprep.subr.mxu0 0.0
        %4184 = vmatpush1.msra.mxu0 0.0
        %4185 = vmatprep.subr.mxu0 0.0
        %4186 = vmatpush1.msra.mxu0 0.0
        %4187 = vmatprep.subr.mxu0 0.0
        %4188 = vmatpush1.msra.mxu0 0.0
        %4189 = vmatprep.subr.mxu0 0.0
        %4190 = vmatpush1.msra.mxu0 0.0
        %4191 = vmatprep.subr.mxu0 0.0
        %4192 = vmatpush1.msra.mxu0 0.0
        %4193 = vmatprep.subr.mxu0 0.0
        %4194 = vmatpush1.msra.mxu0 0.0
        %4195 = vmatprep.subr.mxu0 0.0
        %4196 = vmatpush1.msra.mxu0 0.0
        %4197 = vmatprep.subr.mxu0 0.0
        %4198 = vmatpush1.msra.mxu0 0.0
        %4199 = vmatprep.subr.mxu0 0.0
        %4200 = vmatpush1.msra.mxu0 0.0
        %4201 = vmatprep.subr.mxu0 0.0
        %4202 = vmatpush1.msra.mxu0 0.0
        %4203 = vmatprep.mubr.f32.mxu0 0.0
        %4204 = vmatmul.mubr.f32.gmra.mrb[0].mxu0 %v3538
        %v4205 = vpop.f32.mrb[0].mxu0
        %v4206 = vadd.f32 0.0, %v4205
        %v4207 = vpop.f32.mrb[0].mxu0
        %4208 = vmatprep.mubr.f32.mxu0 0.0
        %4209 = vmatmul.mubr.f32.gmra.mrb[0].mxu0 %v3543
        %v4210 = vpop.f32.mrb[0].mxu0
        %v4211 = vadd.f32 0.0, %v4210
        %v4212 = vpop.f32.mrb[0].mxu0
        %4213 = vdwg.mxu0
        %v4214 = vadd.f32 %v4120, %v4206
        %v4215 = vadd.f32 %v4121, %v4211
        %s4216 = scalar_lea.vmem %s9, 768
        %v4217 = vld [vmem:[%s4216] sm:$0xff]
        %v4218 = vld [vmem:[%s4216 + $0x8] sm:$0xff]
        %v4219 = vld [vmem:[%s4216 + $0x10] sm:$0xff]
        %v4220 = vld [vmem:[%s4216 + $0x18] sm:$0xff]
        %v4221 = vld [vmem:[%s4216 + $0x20] sm:$0xff]
        %v4222 = vld [vmem:[%s4216 + $0x28] sm:$0xff]
        %v4223 = vld [vmem:[%s4216 + $0x30] sm:$0xff]
        %v4224 = vld [vmem:[%s4216 + $0x38] sm:$0xff]
        %v4225 = vld [vmem:[%s4216 + $0x40] sm:$0xff]
        %v4226 = vld [vmem:[%s4216 + $0x48] sm:$0xff]
        %v4227 = vld [vmem:[%s4216 + $0x50] sm:$0xff]
        %v4228 = vld [vmem:[%s4216 + $0x58] sm:$0xff]
        %v4229 = vld [vmem:[%s4216 + $0x60] sm:$0xff]
        %v4230 = vld [vmem:[%s4216 + $0x68] sm:$0xff]
        %v4231 = vld [vmem:[%s4216 + $0x70] sm:$0xff]
        %v4232 = vld [vmem:[%s4216 + $0x78] sm:$0xff]
        %4233 = vmatprep.subr.mxu0 0.0
        %4234 = vmatpush1.msra.mxu0 %v4217
        %4235 = vmatprep.subr.mxu0 0.0
        %4236 = vmatpush1.msra.mxu0 %v4218
        %4237 = vmatprep.subr.mxu0 0.0
        %4238 = vmatpush1.msra.mxu0 %v4219
        %4239 = vmatprep.subr.mxu0 0.0
        %4240 = vmatpush1.msra.mxu0 %v4220
        %4241 = vmatprep.subr.mxu0 0.0
        %4242 = vmatpush1.msra.mxu0 %v4221
        %4243 = vmatprep.subr.mxu0 0.0
        %4244 = vmatpush1.msra.mxu0 %v4222
        %4245 = vmatprep.subr.mxu0 0.0
        %4246 = vmatpush1.msra.mxu0 %v4223
        %4247 = vmatprep.subr.mxu0 0.0
        %4248 = vmatpush1.msra.mxu0 %v4224
        %4249 = vmatprep.subr.mxu0 0.0
        %4250 = vmatpush1.msra.mxu0 %v4225
        %4251 = vmatprep.subr.mxu0 0.0
        %4252 = vmatpush1.msra.mxu0 %v4226
        %4253 = vmatprep.subr.mxu0 0.0
        %4254 = vmatpush1.msra.mxu0 %v4227
        %4255 = vmatprep.subr.mxu0 0.0
        %4256 = vmatpush1.msra.mxu0 %v4228
        %4257 = vmatprep.subr.mxu0 0.0
        %4258 = vmatpush1.msra.mxu0 %v4229
        %4259 = vmatprep.subr.mxu0 0.0
        %4260 = vmatpush1.msra.mxu0 %v4230
        %4261 = vmatprep.subr.mxu0 0.0
        %4262 = vmatpush1.msra.mxu0 %v4231
        %4263 = vmatprep.subr.mxu0 0.0
        %4264 = vmatpush1.msra.mxu0 %v4232
        %4265 = vmatprep.subr.mxu0 0.0
        %4266 = vmatpush1.msra.mxu0 0.0
        %4267 = vmatprep.subr.mxu0 0.0
        %4268 = vmatpush1.msra.mxu0 0.0
        %4269 = vmatprep.subr.mxu0 0.0
        %4270 = vmatpush1.msra.mxu0 0.0
        %4271 = vmatprep.subr.mxu0 0.0
        %4272 = vmatpush1.msra.mxu0 0.0
        %4273 = vmatprep.subr.mxu0 0.0
        %4274 = vmatpush1.msra.mxu0 0.0
        %4275 = vmatprep.subr.mxu0 0.0
        %4276 = vmatpush1.msra.mxu0 0.0
        %4277 = vmatprep.subr.mxu0 0.0
        %4278 = vmatpush1.msra.mxu0 0.0
        %4279 = vmatprep.subr.mxu0 0.0
        %4280 = vmatpush1.msra.mxu0 0.0
        %4281 = vmatprep.subr.mxu0 0.0
        %4282 = vmatpush1.msra.mxu0 0.0
        %4283 = vmatprep.subr.mxu0 0.0
        %4284 = vmatpush1.msra.mxu0 0.0
        %4285 = vmatprep.subr.mxu0 0.0
        %4286 = vmatpush1.msra.mxu0 0.0
        %4287 = vmatprep.subr.mxu0 0.0
        %4288 = vmatpush1.msra.mxu0 0.0
        %4289 = vmatprep.subr.mxu0 0.0
        %4290 = vmatpush1.msra.mxu0 0.0
        %4291 = vmatprep.subr.mxu0 0.0
        %4292 = vmatpush1.msra.mxu0 0.0
        %4293 = vmatprep.subr.mxu0 0.0
        %4294 = vmatpush1.msra.mxu0 0.0
        %4295 = vmatprep.subr.mxu0 0.0
        %4296 = vmatpush1.msra.mxu0 0.0
        %4297 = vmatprep.mubr.f32.mxu0 0.0
        %4298 = vmatmul.mubr.f32.gmra.mrb[0].mxu0 %v3548
        %v4299 = vpop.f32.mrb[0].mxu0
        %v4300 = vadd.f32 0.0, %v4299
        %v4301 = vpop.f32.mrb[0].mxu0
        %4302 = vmatprep.mubr.f32.mxu0 0.0
        %4303 = vmatmul.mubr.f32.gmra.mrb[0].mxu0 %v3553
        %v4304 = vpop.f32.mrb[0].mxu0
        %v4305 = vadd.f32 0.0, %v4304
        %v4306 = vpop.f32.mrb[0].mxu0
        %4307 = vdwg.mxu0
        %v4308 = vadd.f32 %v4214, %v4300
        %v4309 = vadd.f32 %v4215, %v4305
        %s4310 = scalar_lea.vmem %s9, 896
        %v4311 = vld [vmem:[%s4310] sm:$0xff]
        %v4312 = vld [vmem:[%s4310 + $0x8] sm:$0xff]
        %v4313 = vld [vmem:[%s4310 + $0x10] sm:$0xff]
        %v4314 = vld [vmem:[%s4310 + $0x18] sm:$0xff]
        %v4315 = vld [vmem:[%s4310 + $0x20] sm:$0xff]
        %v4316 = vld [vmem:[%s4310 + $0x28] sm:$0xff]
        %v4317 = vld [vmem:[%s4310 + $0x30] sm:$0xff]
        %v4318 = vld [vmem:[%s4310 + $0x38] sm:$0xff]
        %v4319 = vld [vmem:[%s4310 + $0x40] sm:$0xff]
        %v4320 = vld [vmem:[%s4310 + $0x48] sm:$0xff]
        %v4321 = vld [vmem:[%s4310 + $0x50] sm:$0xff]
        %v4322 = vld [vmem:[%s4310 + $0x58] sm:$0xff]
        %v4323 = vld [vmem:[%s4310 + $0x60] sm:$0xff]
        %v4324 = vld [vmem:[%s4310 + $0x68] sm:$0xff]
        %v4325 = vld [vmem:[%s4310 + $0x70] sm:$0xff]
        %v4326 = vld [vmem:[%s4310 + $0x78] sm:$0xff]
        %4327 = vmatprep.subr.mxu0 0.0
        %4328 = vmatpush1.msra.mxu0 %v4311
        %4329 = vmatprep.subr.mxu0 0.0
        %4330 = vmatpush1.msra.mxu0 %v4312
        %4331 = vmatprep.subr.mxu0 0.0
        %4332 = vmatpush1.msra.mxu0 %v4313
        %4333 = vmatprep.subr.mxu0 0.0
        %4334 = vmatpush1.msra.mxu0 %v4314
        %4335 = vmatprep.subr.mxu0 0.0
        %4336 = vmatpush1.msra.mxu0 %v4315
        %4337 = vmatprep.subr.mxu0 0.0
        %4338 = vmatpush1.msra.mxu0 %v4316
        %4339 = vmatprep.subr.mxu0 0.0
        %4340 = vmatpush1.msra.mxu0 %v4317
        %4341 = vmatprep.subr.mxu0 0.0
        %4342 = vmatpush1.msra.mxu0 %v4318
        %4343 = vmatprep.subr.mxu0 0.0
        %4344 = vmatpush1.msra.mxu0 %v4319
        %4345 = vmatprep.subr.mxu0 0.0
        %4346 = vmatpush1.msra.mxu0 %v4320
        %4347 = vmatprep.subr.mxu0 0.0
        %4348 = vmatpush1.msra.mxu0 %v4321
        %4349 = vmatprep.subr.mxu0 0.0
        %4350 = vmatpush1.msra.mxu0 %v4322
        %4351 = vmatprep.subr.mxu0 0.0
        %4352 = vmatpush1.msra.mxu0 %v4323
        %4353 = vmatprep.subr.mxu0 0.0
        %4354 = vmatpush1.msra.mxu0 %v4324
        %4355 = vmatprep.subr.mxu0 0.0
        %4356 = vmatpush1.msra.mxu0 %v4325
        %4357 = vmatprep.subr.mxu0 0.0
        %4358 = vmatpush1.msra.mxu0 %v4326
        %4359 = vmatprep.subr.mxu0 0.0
        %4360 = vmatpush1.msra.mxu0 0.0
        %4361 = vmatprep.subr.mxu0 0.0
        %4362 = vmatpush1.msra.mxu0 0.0
        %4363 = vmatprep.subr.mxu0 0.0
        %4364 = vmatpush1.msra.mxu0 0.0
        %4365 = vmatprep.subr.mxu0 0.0
        %4366 = vmatpush1.msra.mxu0 0.0
        %4367 = vmatprep.subr.mxu0 0.0
        %4368 = vmatpush1.msra.mxu0 0.0
        %4369 = vmatprep.subr.mxu0 0.0
        %4370 = vmatpush1.msra.mxu0 0.0
        %4371 = vmatprep.subr.mxu0 0.0
        %4372 = vmatpush1.msra.mxu0 0.0
        %4373 = vmatprep.subr.mxu0 0.0
        %4374 = vmatpush1.msra.mxu0 0.0
        %4375 = vmatprep.subr.mxu0 0.0
        %4376 = vmatpush1.msra.mxu0 0.0
        %4377 = vmatprep.subr.mxu0 0.0
        %4378 = vmatpush1.msra.mxu0 0.0
        %4379 = vmatprep.subr.mxu0 0.0
        %4380 = vmatpush1.msra.mxu0 0.0
        %4381 = vmatprep.subr.mxu0 0.0
        %4382 = vmatpush1.msra.mxu0 0.0
        %4383 = vmatprep.subr.mxu0 0.0
        %4384 = vmatpush1.msra.mxu0 0.0
        %4385 = vmatprep.subr.mxu0 0.0
        %4386 = vmatpush1.msra.mxu0 0.0
        %4387 = vmatprep.subr.mxu0 0.0
        %4388 = vmatpush1.msra.mxu0 0.0
        %4389 = vmatprep.subr.mxu0 0.0
        %4390 = vmatpush1.msra.mxu0 0.0
        %4391 = vmatprep.mubr.f32.mxu0 0.0
        %4392 = vmatmul.mubr.f32.gmra.mrb[0].mxu0 %v3558
        %v4393 = vpop.f32.mrb[0].mxu0
        %v4394 = vadd.f32 0.0, %v4393
        %v4395 = vpop.f32.mrb[0].mxu0
        %4396 = vmatprep.mubr.f32.mxu0 0.0
        %4397 = vmatmul.mubr.f32.gmra.mrb[0].mxu0 %v3563
        %v4398 = vpop.f32.mrb[0].mxu0
        %v4399 = vadd.f32 0.0, %v4398
        %v4400 = vpop.f32.mrb[0].mxu0
        %4401 = vdwg.mxu0
        %v4402 = vadd.f32 %v4308, %v4394
        %v4403 = vadd.f32 %v4309, %v4399
        %s4404 = scalar_lea.vmem %s9, 1024
        %v4405 = vld [vmem:[%s4404] sm:$0xff]
        %v4406 = vld [vmem:[%s4404 + $0x8] sm:$0xff]
        %v4407 = vld [vmem:[%s4404 + $0x10] sm:$0xff]
        %v4408 = vld [vmem:[%s4404 + $0x18] sm:$0xff]
        %v4409 = vld [vmem:[%s4404 + $0x20] sm:$0xff]
        %v4410 = vld [vmem:[%s4404 + $0x28] sm:$0xff]
        %v4411 = vld [vmem:[%s4404 + $0x30] sm:$0xff]
        %v4412 = vld [vmem:[%s4404 + $0x38] sm:$0xff]
        %v4413 = vld [vmem:[%s4404 + $0x40] sm:$0xff]
        %v4414 = vld [vmem:[%s4404 + $0x48] sm:$0xff]
        %v4415 = vld [vmem:[%s4404 + $0x50] sm:$0xff]
        %v4416 = vld [vmem:[%s4404 + $0x58] sm:$0xff]
        %v4417 = vld [vmem:[%s4404 + $0x60] sm:$0xff]
        %v4418 = vld [vmem:[%s4404 + $0x68] sm:$0xff]
        %v4419 = vld [vmem:[%s4404 + $0x70] sm:$0xff]
        %v4420 = vld [vmem:[%s4404 + $0x78] sm:$0xff]
        %4421 = vmatprep.subr.mxu0 0.0
        %4422 = vmatpush1.msra.mxu0 %v4405
        %4423 = vmatprep.subr.mxu0 0.0
        %4424 = vmatpush1.msra.mxu0 %v4406
        %4425 = vmatprep.subr.mxu0 0.0
        %4426 = vmatpush1.msra.mxu0 %v4407
        %4427 = vmatprep.subr.mxu0 0.0
        %4428 = vmatpush1.msra.mxu0 %v4408
        %4429 = vmatprep.subr.mxu0 0.0
        %4430 = vmatpush1.msra.mxu0 %v4409
        %4431 = vmatprep.subr.mxu0 0.0
        %4432 = vmatpush1.msra.mxu0 %v4410
        %4433 = vmatprep.subr.mxu0 0.0
        %4434 = vmatpush1.msra.mxu0 %v4411
        %4435 = vmatprep.subr.mxu0 0.0
        %4436 = vmatpush1.msra.mxu0 %v4412
        %4437 = vmatprep.subr.mxu0 0.0
        %4438 = vmatpush1.msra.mxu0 %v4413
        %4439 = vmatprep.subr.mxu0 0.0
        %4440 = vmatpush1.msra.mxu0 %v4414
        %4441 = vmatprep.subr.mxu0 0.0
        %4442 = vmatpush1.msra.mxu0 %v4415
        %4443 = vmatprep.subr.mxu0 0.0
        %4444 = vmatpush1.msra.mxu0 %v4416
        %4445 = vmatprep.subr.mxu0 0.0
        %4446 = vmatpush1.msra.mxu0 %v4417
        %4447 = vmatprep.subr.mxu0 0.0
        %4448 = vmatpush1.msra.mxu0 %v4418
        %4449 = vmatprep.subr.mxu0 0.0
        %4450 = vmatpush1.msra.mxu0 %v4419
        %4451 = vmatprep.subr.mxu0 0.0
        %4452 = vmatpush1.msra.mxu0 %v4420
        %4453 = vmatprep.subr.mxu0 0.0
        %4454 = vmatpush1.msra.mxu0 0.0
        %4455 = vmatprep.subr.mxu0 0.0
        %4456 = vmatpush1.msra.mxu0 0.0
        %4457 = vmatprep.subr.mxu0 0.0
        %4458 = vmatpush1.msra.mxu0 0.0
        %4459 = vmatprep.subr.mxu0 0.0
        %4460 = vmatpush1.msra.mxu0 0.0
        %4461 = vmatprep.subr.mxu0 0.0
        %4462 = vmatpush1.msra.mxu0 0.0
        %4463 = vmatprep.subr.mxu0 0.0
        %4464 = vmatpush1.msra.mxu0 0.0
        %4465 = vmatprep.subr.mxu0 0.0
        %4466 = vmatpush1.msra.mxu0 0.0
        %4467 = vmatprep.subr.mxu0 0.0
        %4468 = vmatpush1.msra.mxu0 0.0
        %4469 = vmatprep.subr.mxu0 0.0
        %4470 = vmatpush1.msra.mxu0 0.0
        %4471 = vmatprep.subr.mxu0 0.0
        %4472 = vmatpush1.msra.mxu0 0.0
        %4473 = vmatprep.subr.mxu0 0.0
        %4474 = vmatpush1.msra.mxu0 0.0
        %4475 = vmatprep.subr.mxu0 0.0
        %4476 = vmatpush1.msra.mxu0 0.0
        %4477 = vmatprep.subr.mxu0 0.0
        %4478 = vmatpush1.msra.mxu0 0.0
        %4479 = vmatprep.subr.mxu0 0.0
        %4480 = vmatpush1.msra.mxu0 0.0
        %4481 = vmatprep.subr.mxu0 0.0
        %4482 = vmatpush1.msra.mxu0 0.0
        %4483 = vmatprep.subr.mxu0 0.0
        %4484 = vmatpush1.msra.mxu0 0.0
        %4485 = vmatprep.mubr.f32.mxu0 0.0
        %4486 = vmatmul.mubr.f32.gmra.mrb[0].mxu0 %v3568
        %v4487 = vpop.f32.mrb[0].mxu0
        %v4488 = vadd.f32 0.0, %v4487
        %v4489 = vpop.f32.mrb[0].mxu0
        %4490 = vmatprep.mubr.f32.mxu0 0.0
        %4491 = vmatmul.mubr.f32.gmra.mrb[0].mxu0 %v3573
        %v4492 = vpop.f32.mrb[0].mxu0
        %v4493 = vadd.f32 0.0, %v4492
        %v4494 = vpop.f32.mrb[0].mxu0
        %4495 = vdwg.mxu0
        %v4496 = vadd.f32 %v4402, %v4488
        %v4497 = vadd.f32 %v4403, %v4493
        %s4498 = scalar_lea.vmem %s9, 1152
        %v4499 = vld [vmem:[%s4498] sm:$0xff]
        %v4500 = vld [vmem:[%s4498 + $0x8] sm:$0xff]
        %v4501 = vld [vmem:[%s4498 + $0x10] sm:$0xff]
        %v4502 = vld [vmem:[%s4498 + $0x18] sm:$0xff]
        %v4503 = vld [vmem:[%s4498 + $0x20] sm:$0xff]
        %v4504 = vld [vmem:[%s4498 + $0x28] sm:$0xff]
        %v4505 = vld [vmem:[%s4498 + $0x30] sm:$0xff]
        %v4506 = vld [vmem:[%s4498 + $0x38] sm:$0xff]
        %v4507 = vld [vmem:[%s4498 + $0x40] sm:$0xff]
        %v4508 = vld [vmem:[%s4498 + $0x48] sm:$0xff]
        %v4509 = vld [vmem:[%s4498 + $0x50] sm:$0xff]
        %v4510 = vld [vmem:[%s4498 + $0x58] sm:$0xff]
        %v4511 = vld [vmem:[%s4498 + $0x60] sm:$0xff]
        %v4512 = vld [vmem:[%s4498 + $0x68] sm:$0xff]
        %v4513 = vld [vmem:[%s4498 + $0x70] sm:$0xff]
        %v4514 = vld [vmem:[%s4498 + $0x78] sm:$0xff]
        %4515 = vmatprep.subr.mxu0 0.0
        %4516 = vmatpush1.msra.mxu0 %v4499
        %4517 = vmatprep.subr.mxu0 0.0
        %4518 = vmatpush1.msra.mxu0 %v4500
        %4519 = vmatprep.subr.mxu0 0.0
        %4520 = vmatpush1.msra.mxu0 %v4501
        %4521 = vmatprep.subr.mxu0 0.0
        %4522 = vmatpush1.msra.mxu0 %v4502
        %4523 = vmatprep.subr.mxu0 0.0
        %4524 = vmatpush1.msra.mxu0 %v4503
        %4525 = vmatprep.subr.mxu0 0.0
        %4526 = vmatpush1.msra.mxu0 %v4504
        %4527 = vmatprep.subr.mxu0 0.0
        %4528 = vmatpush1.msra.mxu0 %v4505
        %4529 = vmatprep.subr.mxu0 0.0
        %4530 = vmatpush1.msra.mxu0 %v4506
        %4531 = vmatprep.subr.mxu0 0.0
        %4532 = vmatpush1.msra.mxu0 %v4507
        %4533 = vmatprep.subr.mxu0 0.0
        %4534 = vmatpush1.msra.mxu0 %v4508
        %4535 = vmatprep.subr.mxu0 0.0
        %4536 = vmatpush1.msra.mxu0 %v4509
        %4537 = vmatprep.subr.mxu0 0.0
        %4538 = vmatpush1.msra.mxu0 %v4510
        %4539 = vmatprep.subr.mxu0 0.0
        %4540 = vmatpush1.msra.mxu0 %v4511
        %4541 = vmatprep.subr.mxu0 0.0
        %4542 = vmatpush1.msra.mxu0 %v4512
        %4543 = vmatprep.subr.mxu0 0.0
        %4544 = vmatpush1.msra.mxu0 %v4513
        %4545 = vmatprep.subr.mxu0 0.0
        %4546 = vmatpush1.msra.mxu0 %v4514
        %4547 = vmatprep.subr.mxu0 0.0
        %4548 = vmatpush1.msra.mxu0 0.0
        %4549 = vmatprep.subr.mxu0 0.0
        %4550 = vmatpush1.msra.mxu0 0.0
        %4551 = vmatprep.subr.mxu0 0.0
        %4552 = vmatpush1.msra.mxu0 0.0
        %4553 = vmatprep.subr.mxu0 0.0
        %4554 = vmatpush1.msra.mxu0 0.0
        %4555 = vmatprep.subr.mxu0 0.0
        %4556 = vmatpush1.msra.mxu0 0.0
        %4557 = vmatprep.subr.mxu0 0.0
        %4558 = vmatpush1.msra.mxu0 0.0
        %4559 = vmatprep.subr.mxu0 0.0
        %4560 = vmatpush1.msra.mxu0 0.0
        %4561 = vmatprep.subr.mxu0 0.0
        %4562 = vmatpush1.msra.mxu0 0.0
        %4563 = vmatprep.subr.mxu0 0.0
        %4564 = vmatpush1.msra.mxu0 0.0
        %4565 = vmatprep.subr.mxu0 0.0
        %4566 = vmatpush1.msra.mxu0 0.0
        %4567 = vmatprep.subr.mxu0 0.0
        %4568 = vmatpush1.msra.mxu0 0.0
        %4569 = vmatprep.subr.mxu0 0.0
        %4570 = vmatpush1.msra.mxu0 0.0
        %4571 = vmatprep.subr.mxu0 0.0
        %4572 = vmatpush1.msra.mxu0 0.0
        %4573 = vmatprep.subr.mxu0 0.0
        %4574 = vmatpush1.msra.mxu0 0.0
        %4575 = vmatprep.subr.mxu0 0.0
        %4576 = vmatpush1.msra.mxu0 0.0
        %4577 = vmatprep.subr.mxu0 0.0
        %4578 = vmatpush1.msra.mxu0 0.0
        %4579 = vmatprep.mubr.f32.mxu0 0.0
        %4580 = vmatmul.mubr.f32.gmra.mrb[0].mxu0 %v3578
        %v4581 = vpop.f32.mrb[0].mxu0
        %v4582 = vadd.f32 0.0, %v4581
        %v4583 = vpop.f32.mrb[0].mxu0
        %4584 = vmatprep.mubr.f32.mxu0 0.0
        %4585 = vmatmul.mubr.f32.gmra.mrb[0].mxu0 %v3583
        %v4586 = vpop.f32.mrb[0].mxu0
        %v4587 = vadd.f32 0.0, %v4586
        %v4588 = vpop.f32.mrb[0].mxu0
        %4589 = vdwg.mxu0
        %v4590 = vadd.f32 %v4496, %v4582
        %v4591 = vadd.f32 %v4497, %v4587
        %s4592 = scalar_lea.vmem %s9, 1280
        %v4593 = vld [vmem:[%s4592] sm:$0xff]
        %v4594 = vld [vmem:[%s4592 + $0x8] sm:$0xff]
        %v4595 = vld [vmem:[%s4592 + $0x10] sm:$0xff]
        %v4596 = vld [vmem:[%s4592 + $0x18] sm:$0xff]
        %v4597 = vld [vmem:[%s4592 + $0x20] sm:$0xff]
        %v4598 = vld [vmem:[%s4592 + $0x28] sm:$0xff]
        %v4599 = vld [vmem:[%s4592 + $0x30] sm:$0xff]
        %v4600 = vld [vmem:[%s4592 + $0x38] sm:$0xff]
        %v4601 = vld [vmem:[%s4592 + $0x40] sm:$0xff]
        %v4602 = vld [vmem:[%s4592 + $0x48] sm:$0xff]
        %v4603 = vld [vmem:[%s4592 + $0x50] sm:$0xff]
        %v4604 = vld [vmem:[%s4592 + $0x58] sm:$0xff]
        %v4605 = vld [vmem:[%s4592 + $0x60] sm:$0xff]
        %v4606 = vld [vmem:[%s4592 + $0x68] sm:$0xff]
        %v4607 = vld [vmem:[%s4592 + $0x70] sm:$0xff]
        %v4608 = vld [vmem:[%s4592 + $0x78] sm:$0xff]
        %4609 = vmatprep.subr.mxu0 0.0
        %4610 = vmatpush1.msra.mxu0 %v4593
        %4611 = vmatprep.subr.mxu0 0.0
        %4612 = vmatpush1.msra.mxu0 %v4594
        %4613 = vmatprep.subr.mxu0 0.0
        %4614 = vmatpush1.msra.mxu0 %v4595
        %4615 = vmatprep.subr.mxu0 0.0
        %4616 = vmatpush1.msra.mxu0 %v4596
        %4617 = vmatprep.subr.mxu0 0.0
        %4618 = vmatpush1.msra.mxu0 %v4597
        %4619 = vmatprep.subr.mxu0 0.0
        %4620 = vmatpush1.msra.mxu0 %v4598
        %4621 = vmatprep.subr.mxu0 0.0
        %4622 = vmatpush1.msra.mxu0 %v4599
        %4623 = vmatprep.subr.mxu0 0.0
        %4624 = vmatpush1.msra.mxu0 %v4600
        %4625 = vmatprep.subr.mxu0 0.0
        %4626 = vmatpush1.msra.mxu0 %v4601
        %4627 = vmatprep.subr.mxu0 0.0
        %4628 = vmatpush1.msra.mxu0 %v4602
        %4629 = vmatprep.subr.mxu0 0.0
        %4630 = vmatpush1.msra.mxu0 %v4603
        %4631 = vmatprep.subr.mxu0 0.0
        %4632 = vmatpush1.msra.mxu0 %v4604
        %4633 = vmatprep.subr.mxu0 0.0
        %4634 = vmatpush1.msra.mxu0 %v4605
        %4635 = vmatprep.subr.mxu0 0.0
        %4636 = vmatpush1.msra.mxu0 %v4606
        %4637 = vmatprep.subr.mxu0 0.0
        %4638 = vmatpush1.msra.mxu0 %v4607
        %4639 = vmatprep.subr.mxu0 0.0
        %4640 = vmatpush1.msra.mxu0 %v4608
        %4641 = vmatprep.subr.mxu0 0.0
        %4642 = vmatpush1.msra.mxu0 0.0
        %4643 = vmatprep.subr.mxu0 0.0
        %4644 = vmatpush1.msra.mxu0 0.0
        %4645 = vmatprep.subr.mxu0 0.0
        %4646 = vmatpush1.msra.mxu0 0.0
        %4647 = vmatprep.subr.mxu0 0.0
        %4648 = vmatpush1.msra.mxu0 0.0
        %4649 = vmatprep.subr.mxu0 0.0
        %4650 = vmatpush1.msra.mxu0 0.0
        %4651 = vmatprep.subr.mxu0 0.0
        %4652 = vmatpush1.msra.mxu0 0.0
        %4653 = vmatprep.subr.mxu0 0.0
        %4654 = vmatpush1.msra.mxu0 0.0
        %4655 = vmatprep.subr.mxu0 0.0
        %4656 = vmatpush1.msra.mxu0 0.0
        %4657 = vmatprep.subr.mxu0 0.0
        %4658 = vmatpush1.msra.mxu0 0.0
        %4659 = vmatprep.subr.mxu0 0.0
        %4660 = vmatpush1.msra.mxu0 0.0
        %4661 = vmatprep.subr.mxu0 0.0
        %4662 = vmatpush1.msra.mxu0 0.0
        %4663 = vmatprep.subr.mxu0 0.0
        %4664 = vmatpush1.msra.mxu0 0.0
        %4665 = vmatprep.subr.mxu0 0.0
        %4666 = vmatpush1.msra.mxu0 0.0
        %4667 = vmatprep.subr.mxu0 0.0
        %4668 = vmatpush1.msra.mxu0 0.0
        %4669 = vmatprep.subr.mxu0 0.0
        %4670 = vmatpush1.msra.mxu0 0.0
        %4671 = vmatprep.subr.mxu0 0.0
        %4672 = vmatpush1.msra.mxu0 0.0
        %4673 = vmatprep.mubr.f32.mxu0 0.0
        %4674 = vmatmul.mubr.f32.gmra.mrb[0].mxu0 %v3588
        %v4675 = vpop.f32.mrb[0].mxu0
        %v4676 = vadd.f32 0.0, %v4675
        %v4677 = vpop.f32.mrb[0].mxu0
        %4678 = vmatprep.mubr.f32.mxu0 0.0
        %4679 = vmatmul.mubr.f32.gmra.mrb[0].mxu0 %v3593
        %v4680 = vpop.f32.mrb[0].mxu0
        %v4681 = vadd.f32 0.0, %v4680
        %v4682 = vpop.f32.mrb[0].mxu0
        %4683 = vdwg.mxu0
        %v4684 = vadd.f32 %v4590, %v4676
        %v4685 = vadd.f32 %v4591, %v4681
        %s4686 = scalar_lea.vmem %s9, 1408
        %v4687 = vld [vmem:[%s4686] sm:$0xff]
        %v4688 = vld [vmem:[%s4686 + $0x8] sm:$0xff]
        %v4689 = vld [vmem:[%s4686 + $0x10] sm:$0xff]
        %v4690 = vld [vmem:[%s4686 + $0x18] sm:$0xff]
        %v4691 = vld [vmem:[%s4686 + $0x20] sm:$0xff]
        %v4692 = vld [vmem:[%s4686 + $0x28] sm:$0xff]
        %v4693 = vld [vmem:[%s4686 + $0x30] sm:$0xff]
        %v4694 = vld [vmem:[%s4686 + $0x38] sm:$0xff]
        %v4695 = vld [vmem:[%s4686 + $0x40] sm:$0xff]
        %v4696 = vld [vmem:[%s4686 + $0x48] sm:$0xff]
        %v4697 = vld [vmem:[%s4686 + $0x50] sm:$0xff]
        %v4698 = vld [vmem:[%s4686 + $0x58] sm:$0xff]
        %v4699 = vld [vmem:[%s4686 + $0x60] sm:$0xff]
        %v4700 = vld [vmem:[%s4686 + $0x68] sm:$0xff]
        %v4701 = vld [vmem:[%s4686 + $0x70] sm:$0xff]
        %v4702 = vld [vmem:[%s4686 + $0x78] sm:$0xff]
        %4703 = vmatprep.subr.mxu0 0.0
        %4704 = vmatpush1.msra.mxu0 %v4687
        %4705 = vmatprep.subr.mxu0 0.0
        %4706 = vmatpush1.msra.mxu0 %v4688
        %4707 = vmatprep.subr.mxu0 0.0
        %4708 = vmatpush1.msra.mxu0 %v4689
        %4709 = vmatprep.subr.mxu0 0.0
        %4710 = vmatpush1.msra.mxu0 %v4690
        %4711 = vmatprep.subr.mxu0 0.0
        %4712 = vmatpush1.msra.mxu0 %v4691
        %4713 = vmatprep.subr.mxu0 0.0
        %4714 = vmatpush1.msra.mxu0 %v4692
        %4715 = vmatprep.subr.mxu0 0.0
        %4716 = vmatpush1.msra.mxu0 %v4693
        %4717 = vmatprep.subr.mxu0 0.0
        %4718 = vmatpush1.msra.mxu0 %v4694
        %4719 = vmatprep.subr.mxu0 0.0
        %4720 = vmatpush1.msra.mxu0 %v4695
        %4721 = vmatprep.subr.mxu0 0.0
        %4722 = vmatpush1.msra.mxu0 %v4696
        %4723 = vmatprep.subr.mxu0 0.0
        %4724 = vmatpush1.msra.mxu0 %v4697
        %4725 = vmatprep.subr.mxu0 0.0
        %4726 = vmatpush1.msra.mxu0 %v4698
        %4727 = vmatprep.subr.mxu0 0.0
        %4728 = vmatpush1.msra.mxu0 %v4699
        %4729 = vmatprep.subr.mxu0 0.0
        %4730 = vmatpush1.msra.mxu0 %v4700
        %4731 = vmatprep.subr.mxu0 0.0
        %4732 = vmatpush1.msra.mxu0 %v4701
        %4733 = vmatprep.subr.mxu0 0.0
        %4734 = vmatpush1.msra.mxu0 %v4702
        %4735 = vmatprep.subr.mxu0 0.0
        %4736 = vmatpush1.msra.mxu0 0.0
        %4737 = vmatprep.subr.mxu0 0.0
        %4738 = vmatpush1.msra.mxu0 0.0
        %4739 = vmatprep.subr.mxu0 0.0
        %4740 = vmatpush1.msra.mxu0 0.0
        %4741 = vmatprep.subr.mxu0 0.0
        %4742 = vmatpush1.msra.mxu0 0.0
        %4743 = vmatprep.subr.mxu0 0.0
        %4744 = vmatpush1.msra.mxu0 0.0
        %4745 = vmatprep.subr.mxu0 0.0
        %4746 = vmatpush1.msra.mxu0 0.0
        %4747 = vmatprep.subr.mxu0 0.0
        %4748 = vmatpush1.msra.mxu0 0.0
        %4749 = vmatprep.subr.mxu0 0.0
        %4750 = vmatpush1.msra.mxu0 0.0
        %4751 = vmatprep.subr.mxu0 0.0
        %4752 = vmatpush1.msra.mxu0 0.0
        %4753 = vmatprep.subr.mxu0 0.0
        %4754 = vmatpush1.msra.mxu0 0.0
        %4755 = vmatprep.subr.mxu0 0.0
        %4756 = vmatpush1.msra.mxu0 0.0
        %4757 = vmatprep.subr.mxu0 0.0
        %4758 = vmatpush1.msra.mxu0 0.0
        %4759 = vmatprep.subr.mxu0 0.0
        %4760 = vmatpush1.msra.mxu0 0.0
        %4761 = vmatprep.subr.mxu0 0.0
        %4762 = vmatpush1.msra.mxu0 0.0
        %4763 = vmatprep.subr.mxu0 0.0
        %4764 = vmatpush1.msra.mxu0 0.0
        %4765 = vmatprep.subr.mxu0 0.0
        %4766 = vmatpush1.msra.mxu0 0.0
        %4767 = vmatprep.mubr.f32.mxu0 0.0
        %4768 = vmatmul.mubr.f32.gmra.mrb[0].mxu0 %v3598
        %v4769 = vpop.f32.mrb[0].mxu0
        %v4770 = vadd.f32 0.0, %v4769
        %v4771 = vpop.f32.mrb[0].mxu0
        %4772 = vmatprep.mubr.f32.mxu0 0.0
        %4773 = vmatmul.mubr.f32.gmra.mrb[0].mxu0 %v3603
        %v4774 = vpop.f32.mrb[0].mxu0
        %v4775 = vadd.f32 0.0, %v4774
        %v4776 = vpop.f32.mrb[0].mxu0
        %4777 = vdwg.mxu0
        %v4778 = vadd.f32 %v4684, %v4770
        %v4779 = vadd.f32 %v4685, %v4775
        %s4780 = scalar_lea.vmem %s9, 1536
        %v4781 = vld [vmem:[%s4780] sm:$0xff]
        %v4782 = vld [vmem:[%s4780 + $0x8] sm:$0xff]
        %v4783 = vld [vmem:[%s4780 + $0x10] sm:$0xff]
        %v4784 = vld [vmem:[%s4780 + $0x18] sm:$0xff]
        %v4785 = vld [vmem:[%s4780 + $0x20] sm:$0xff]
        %v4786 = vld [vmem:[%s4780 + $0x28] sm:$0xff]
        %v4787 = vld [vmem:[%s4780 + $0x30] sm:$0xff]
        %v4788 = vld [vmem:[%s4780 + $0x38] sm:$0xff]
        %v4789 = vld [vmem:[%s4780 + $0x40] sm:$0xff]
        %v4790 = vld [vmem:[%s4780 + $0x48] sm:$0xff]
        %v4791 = vld [vmem:[%s4780 + $0x50] sm:$0xff]
        %v4792 = vld [vmem:[%s4780 + $0x58] sm:$0xff]
        %v4793 = vld [vmem:[%s4780 + $0x60] sm:$0xff]
        %v4794 = vld [vmem:[%s4780 + $0x68] sm:$0xff]
        %v4795 = vld [vmem:[%s4780 + $0x70] sm:$0xff]
        %v4796 = vld [vmem:[%s4780 + $0x78] sm:$0xff]
        %4797 = vmatprep.subr.mxu0 0.0
        %4798 = vmatpush1.msra.mxu0 %v4781
        %4799 = vmatprep.subr.mxu0 0.0
        %4800 = vmatpush1.msra.mxu0 %v4782
        %4801 = vmatprep.subr.mxu0 0.0
        %4802 = vmatpush1.msra.mxu0 %v4783
        %4803 = vmatprep.subr.mxu0 0.0
        %4804 = vmatpush1.msra.mxu0 %v4784
        %4805 = vmatprep.subr.mxu0 0.0
        %4806 = vmatpush1.msra.mxu0 %v4785
        %4807 = vmatprep.subr.mxu0 0.0
        %4808 = vmatpush1.msra.mxu0 %v4786
        %4809 = vmatprep.subr.mxu0 0.0
        %4810 = vmatpush1.msra.mxu0 %v4787
        %4811 = vmatprep.subr.mxu0 0.0
        %4812 = vmatpush1.msra.mxu0 %v4788
        %4813 = vmatprep.subr.mxu0 0.0
        %4814 = vmatpush1.msra.mxu0 %v4789
        %4815 = vmatprep.subr.mxu0 0.0
        %4816 = vmatpush1.msra.mxu0 %v4790
        %4817 = vmatprep.subr.mxu0 0.0
        %4818 = vmatpush1.msra.mxu0 %v4791
        %4819 = vmatprep.subr.mxu0 0.0
        %4820 = vmatpush1.msra.mxu0 %v4792
        %4821 = vmatprep.subr.mxu0 0.0
        %4822 = vmatpush1.msra.mxu0 %v4793
        %4823 = vmatprep.subr.mxu0 0.0
        %4824 = vmatpush1.msra.mxu0 %v4794
        %4825 = vmatprep.subr.mxu0 0.0
        %4826 = vmatpush1.msra.mxu0 %v4795
        %4827 = vmatprep.subr.mxu0 0.0
        %4828 = vmatpush1.msra.mxu0 %v4796
        %4829 = vmatprep.subr.mxu0 0.0
        %4830 = vmatpush1.msra.mxu0 0.0
        %4831 = vmatprep.subr.mxu0 0.0
        %4832 = vmatpush1.msra.mxu0 0.0
        %4833 = vmatprep.subr.mxu0 0.0
        %4834 = vmatpush1.msra.mxu0 0.0
        %4835 = vmatprep.subr.mxu0 0.0
        %4836 = vmatpush1.msra.mxu0 0.0
        %4837 = vmatprep.subr.mxu0 0.0
        %4838 = vmatpush1.msra.mxu0 0.0
        %4839 = vmatprep.subr.mxu0 0.0
        %4840 = vmatpush1.msra.mxu0 0.0
        %4841 = vmatprep.subr.mxu0 0.0
        %4842 = vmatpush1.msra.mxu0 0.0
        %4843 = vmatprep.subr.mxu0 0.0
        %4844 = vmatpush1.msra.mxu0 0.0
        %4845 = vmatprep.subr.mxu0 0.0
        %4846 = vmatpush1.msra.mxu0 0.0
        %4847 = vmatprep.subr.mxu0 0.0
        %4848 = vmatpush1.msra.mxu0 0.0
        %4849 = vmatprep.subr.mxu0 0.0
        %4850 = vmatpush1.msra.mxu0 0.0
        %4851 = vmatprep.subr.mxu0 0.0
        %4852 = vmatpush1.msra.mxu0 0.0
        %4853 = vmatprep.subr.mxu0 0.0
        %4854 = vmatpush1.msra.mxu0 0.0
        %4855 = vmatprep.subr.mxu0 0.0
        %4856 = vmatpush1.msra.mxu0 0.0
        %4857 = vmatprep.subr.mxu0 0.0
        %4858 = vmatpush1.msra.mxu0 0.0
        %4859 = vmatprep.subr.mxu0 0.0
        %4860 = vmatpush1.msra.mxu0 0.0
        %4861 = vmatprep.mubr.f32.mxu0 0.0
        %4862 = vmatmul.mubr.f32.gmra.mrb[0].mxu0 %v3608
        %v4863 = vpop.f32.mrb[0].mxu0
        %v4864 = vadd.f32 0.0, %v4863
        %v4865 = vpop.f32.mrb[0].mxu0
        %4866 = vmatprep.mubr.f32.mxu0 0.0
        %4867 = vmatmul.mubr.f32.gmra.mrb[0].mxu0 %v3613
        %v4868 = vpop.f32.mrb[0].mxu0
        %v4869 = vadd.f32 0.0, %v4868
        %v4870 = vpop.f32.mrb[0].mxu0
        %4871 = vdwg.mxu0
        %v4872 = vadd.f32 %v4778, %v4864
        %v4873 = vadd.f32 %v4779, %v4869
        %s4874 = scalar_lea.vmem %s9, 1664
        %v4875 = vld [vmem:[%s4874] sm:$0xff]
        %v4876 = vld [vmem:[%s4874 + $0x8] sm:$0xff]
        %v4877 = vld [vmem:[%s4874 + $0x10] sm:$0xff]
        %v4878 = vld [vmem:[%s4874 + $0x18] sm:$0xff]
        %v4879 = vld [vmem:[%s4874 + $0x20] sm:$0xff]
        %v4880 = vld [vmem:[%s4874 + $0x28] sm:$0xff]
        %v4881 = vld [vmem:[%s4874 + $0x30] sm:$0xff]
        %v4882 = vld [vmem:[%s4874 + $0x38] sm:$0xff]
        %v4883 = vld [vmem:[%s4874 + $0x40] sm:$0xff]
        %v4884 = vld [vmem:[%s4874 + $0x48] sm:$0xff]
        %v4885 = vld [vmem:[%s4874 + $0x50] sm:$0xff]
        %v4886 = vld [vmem:[%s4874 + $0x58] sm:$0xff]
        %v4887 = vld [vmem:[%s4874 + $0x60] sm:$0xff]
        %v4888 = vld [vmem:[%s4874 + $0x68] sm:$0xff]
        %v4889 = vld [vmem:[%s4874 + $0x70] sm:$0xff]
        %v4890 = vld [vmem:[%s4874 + $0x78] sm:$0xff]
        %4891 = vmatprep.subr.mxu0 0.0
        %4892 = vmatpush1.msra.mxu0 %v4875
        %4893 = vmatprep.subr.mxu0 0.0
        %4894 = vmatpush1.msra.mxu0 %v4876
        %4895 = vmatprep.subr.mxu0 0.0
        %4896 = vmatpush1.msra.mxu0 %v4877
        %4897 = vmatprep.subr.mxu0 0.0
        %4898 = vmatpush1.msra.mxu0 %v4878
        %4899 = vmatprep.subr.mxu0 0.0
        %4900 = vmatpush1.msra.mxu0 %v4879
        %4901 = vmatprep.subr.mxu0 0.0
        %4902 = vmatpush1.msra.mxu0 %v4880
        %4903 = vmatprep.subr.mxu0 0.0
        %4904 = vmatpush1.msra.mxu0 %v4881
        %4905 = vmatprep.subr.mxu0 0.0
        %4906 = vmatpush1.msra.mxu0 %v4882
        %4907 = vmatprep.subr.mxu0 0.0
        %4908 = vmatpush1.msra.mxu0 %v4883
        %4909 = vmatprep.subr.mxu0 0.0
        %4910 = vmatpush1.msra.mxu0 %v4884
        %4911 = vmatprep.subr.mxu0 0.0
        %4912 = vmatpush1.msra.mxu0 %v4885
        %4913 = vmatprep.subr.mxu0 0.0
        %4914 = vmatpush1.msra.mxu0 %v4886
        %4915 = vmatprep.subr.mxu0 0.0
        %4916 = vmatpush1.msra.mxu0 %v4887
        %4917 = vmatprep.subr.mxu0 0.0
        %4918 = vmatpush1.msra.mxu0 %v4888
        %4919 = vmatprep.subr.mxu0 0.0
        %4920 = vmatpush1.msra.mxu0 %v4889
        %4921 = vmatprep.subr.mxu0 0.0
        %4922 = vmatpush1.msra.mxu0 %v4890
        %4923 = vmatprep.subr.mxu0 0.0
        %4924 = vmatpush1.msra.mxu0 0.0
        %4925 = vmatprep.subr.mxu0 0.0
        %4926 = vmatpush1.msra.mxu0 0.0
        %4927 = vmatprep.subr.mxu0 0.0
        %4928 = vmatpush1.msra.mxu0 0.0
        %4929 = vmatprep.subr.mxu0 0.0
        %4930 = vmatpush1.msra.mxu0 0.0
        %4931 = vmatprep.subr.mxu0 0.0
        %4932 = vmatpush1.msra.mxu0 0.0
        %4933 = vmatprep.subr.mxu0 0.0
        %4934 = vmatpush1.msra.mxu0 0.0
        %4935 = vmatprep.subr.mxu0 0.0
        %4936 = vmatpush1.msra.mxu0 0.0
        %4937 = vmatprep.subr.mxu0 0.0
        %4938 = vmatpush1.msra.mxu0 0.0
        %4939 = vmatprep.subr.mxu0 0.0
        %4940 = vmatpush1.msra.mxu0 0.0
        %4941 = vmatprep.subr.mxu0 0.0
        %4942 = vmatpush1.msra.mxu0 0.0
        %4943 = vmatprep.subr.mxu0 0.0
        %4944 = vmatpush1.msra.mxu0 0.0
        %4945 = vmatprep.subr.mxu0 0.0
        %4946 = vmatpush1.msra.mxu0 0.0
        %4947 = vmatprep.subr.mxu0 0.0
        %4948 = vmatpush1.msra.mxu0 0.0
        %4949 = vmatprep.subr.mxu0 0.0
        %4950 = vmatpush1.msra.mxu0 0.0
        %4951 = vmatprep.subr.mxu0 0.0
        %4952 = vmatpush1.msra.mxu0 0.0
        %4953 = vmatprep.subr.mxu0 0.0
        %4954 = vmatpush1.msra.mxu0 0.0
        %4955 = vmatprep.mubr.f32.mxu0 0.0
        %4956 = vmatmul.mubr.f32.gmra.mrb[0].mxu0 %v3618
        %v4957 = vpop.f32.mrb[0].mxu0
        %v4958 = vadd.f32 0.0, %v4957
        %v4959 = vpop.f32.mrb[0].mxu0
        %4960 = vmatprep.mubr.f32.mxu0 0.0
        %4961 = vmatmul.mubr.f32.gmra.mrb[0].mxu0 %v3623
        %v4962 = vpop.f32.mrb[0].mxu0
        %v4963 = vadd.f32 0.0, %v4962
        %v4964 = vpop.f32.mrb[0].mxu0
        %4965 = vdwg.mxu0
        %v4966 = vadd.f32 %v4872, %v4958
        %v4967 = vadd.f32 %v4873, %v4963
        %s4968 = scalar_lea.vmem %s9, 1792
        %v4969 = vld [vmem:[%s4968] sm:$0xff]
        %v4970 = vld [vmem:[%s4968 + $0x8] sm:$0xff]
        %v4971 = vld [vmem:[%s4968 + $0x10] sm:$0xff]
        %v4972 = vld [vmem:[%s4968 + $0x18] sm:$0xff]
        %v4973 = vld [vmem:[%s4968 + $0x20] sm:$0xff]
        %v4974 = vld [vmem:[%s4968 + $0x28] sm:$0xff]
        %v4975 = vld [vmem:[%s4968 + $0x30] sm:$0xff]
        %v4976 = vld [vmem:[%s4968 + $0x38] sm:$0xff]
        %v4977 = vld [vmem:[%s4968 + $0x40] sm:$0xff]
        %v4978 = vld [vmem:[%s4968 + $0x48] sm:$0xff]
        %v4979 = vld [vmem:[%s4968 + $0x50] sm:$0xff]
        %v4980 = vld [vmem:[%s4968 + $0x58] sm:$0xff]
        %v4981 = vld [vmem:[%s4968 + $0x60] sm:$0xff]
        %v4982 = vld [vmem:[%s4968 + $0x68] sm:$0xff]
        %v4983 = vld [vmem:[%s4968 + $0x70] sm:$0xff]
        %v4984 = vld [vmem:[%s4968 + $0x78] sm:$0xff]
        %4985 = vmatprep.subr.mxu0 0.0
        %4986 = vmatpush1.msra.mxu0 %v4969
        %4987 = vmatprep.subr.mxu0 0.0
        %4988 = vmatpush1.msra.mxu0 %v4970
        %4989 = vmatprep.subr.mxu0 0.0
        %4990 = vmatpush1.msra.mxu0 %v4971
        %4991 = vmatprep.subr.mxu0 0.0
        %4992 = vmatpush1.msra.mxu0 %v4972
        %4993 = vmatprep.subr.mxu0 0.0
        %4994 = vmatpush1.msra.mxu0 %v4973
        %4995 = vmatprep.subr.mxu0 0.0
        %4996 = vmatpush1.msra.mxu0 %v4974
        %4997 = vmatprep.subr.mxu0 0.0
        %4998 = vmatpush1.msra.mxu0 %v4975
        %4999 = vmatprep.subr.mxu0 0.0
        %5000 = vmatpush1.msra.mxu0 %v4976
        %5001 = vmatprep.subr.mxu0 0.0
        %5002 = vmatpush1.msra.mxu0 %v4977
        %5003 = vmatprep.subr.mxu0 0.0
        %5004 = vmatpush1.msra.mxu0 %v4978
        %5005 = vmatprep.subr.mxu0 0.0
        %5006 = vmatpush1.msra.mxu0 %v4979
        %5007 = vmatprep.subr.mxu0 0.0
        %5008 = vmatpush1.msra.mxu0 %v4980
        %5009 = vmatprep.subr.mxu0 0.0
        %5010 = vmatpush1.msra.mxu0 %v4981
        %5011 = vmatprep.subr.mxu0 0.0
        %5012 = vmatpush1.msra.mxu0 %v4982
        %5013 = vmatprep.subr.mxu0 0.0
        %5014 = vmatpush1.msra.mxu0 %v4983
        %5015 = vmatprep.subr.mxu0 0.0
        %5016 = vmatpush1.msra.mxu0 %v4984
        %5017 = vmatprep.subr.mxu0 0.0
        %5018 = vmatpush1.msra.mxu0 0.0
        %5019 = vmatprep.subr.mxu0 0.0
        %5020 = vmatpush1.msra.mxu0 0.0
        %5021 = vmatprep.subr.mxu0 0.0
        %5022 = vmatpush1.msra.mxu0 0.0
        %5023 = vmatprep.subr.mxu0 0.0
        %5024 = vmatpush1.msra.mxu0 0.0
        %5025 = vmatprep.subr.mxu0 0.0
        %5026 = vmatpush1.msra.mxu0 0.0
        %5027 = vmatprep.subr.mxu0 0.0
        %5028 = vmatpush1.msra.mxu0 0.0
        %5029 = vmatprep.subr.mxu0 0.0
        %5030 = vmatpush1.msra.mxu0 0.0
        %5031 = vmatprep.subr.mxu0 0.0
        %5032 = vmatpush1.msra.mxu0 0.0
        %5033 = vmatprep.subr.mxu0 0.0
        %5034 = vmatpush1.msra.mxu0 0.0
        %5035 = vmatprep.subr.mxu0 0.0
        %5036 = vmatpush1.msra.mxu0 0.0
        %5037 = vmatprep.subr.mxu0 0.0
        %5038 = vmatpush1.msra.mxu0 0.0
        %5039 = vmatprep.subr.mxu0 0.0
        %5040 = vmatpush1.msra.mxu0 0.0
        %5041 = vmatprep.subr.mxu0 0.0
        %5042 = vmatpush1.msra.mxu0 0.0
        %5043 = vmatprep.subr.mxu0 0.0
        %5044 = vmatpush1.msra.mxu0 0.0
        %5045 = vmatprep.subr.mxu0 0.0
        %5046 = vmatpush1.msra.mxu0 0.0
        %5047 = vmatprep.subr.mxu0 0.0
        %5048 = vmatpush1.msra.mxu0 0.0
        %5049 = vmatprep.mubr.f32.mxu0 0.0
        %5050 = vmatmul.mubr.f32.gmra.mrb[0].mxu0 %v3628
        %v5051 = vpop.f32.mrb[0].mxu0
        %v5052 = vadd.f32 0.0, %v5051
        %v5053 = vpop.f32.mrb[0].mxu0
        %5054 = vmatprep.mubr.f32.mxu0 0.0
        %5055 = vmatmul.mubr.f32.gmra.mrb[0].mxu0 %v3633
        %v5056 = vpop.f32.mrb[0].mxu0
        %v5057 = vadd.f32 0.0, %v5056
        %v5058 = vpop.f32.mrb[0].mxu0
        %5059 = vdwg.mxu0
        %v5060 = vadd.f32 %v4966, %v5052
        %v5061 = vadd.f32 %v4967, %v5057
        %s5062 = scalar_lea.vmem %s9, 1920
        %v5063 = vld [vmem:[%s5062] sm:$0xff]
        %v5064 = vld [vmem:[%s5062 + $0x8] sm:$0xff]
        %v5065 = vld [vmem:[%s5062 + $0x10] sm:$0xff]
        %v5066 = vld [vmem:[%s5062 + $0x18] sm:$0xff]
        %v5067 = vld [vmem:[%s5062 + $0x20] sm:$0xff]
        %v5068 = vld [vmem:[%s5062 + $0x28] sm:$0xff]
        %v5069 = vld [vmem:[%s5062 + $0x30] sm:$0xff]
        %v5070 = vld [vmem:[%s5062 + $0x38] sm:$0xff]
        %v5071 = vld [vmem:[%s5062 + $0x40] sm:$0xff]
        %v5072 = vld [vmem:[%s5062 + $0x48] sm:$0xff]
        %v5073 = vld [vmem:[%s5062 + $0x50] sm:$0xff]
        %v5074 = vld [vmem:[%s5062 + $0x58] sm:$0xff]
        %v5075 = vld [vmem:[%s5062 + $0x60] sm:$0xff]
        %v5076 = vld [vmem:[%s5062 + $0x68] sm:$0xff]
        %v5077 = vld [vmem:[%s5062 + $0x70] sm:$0xff]
        %v5078 = vld [vmem:[%s5062 + $0x78] sm:$0xff]
        %5079 = vmatprep.subr.mxu0 0.0
        %5080 = vmatpush1.msra.mxu0 %v5063
        %5081 = vmatprep.subr.mxu0 0.0
        %5082 = vmatpush1.msra.mxu0 %v5064
        %5083 = vmatprep.subr.mxu0 0.0
        %5084 = vmatpush1.msra.mxu0 %v5065
        %5085 = vmatprep.subr.mxu0 0.0
        %5086 = vmatpush1.msra.mxu0 %v5066
        %5087 = vmatprep.subr.mxu0 0.0
        %5088 = vmatpush1.msra.mxu0 %v5067
        %5089 = vmatprep.subr.mxu0 0.0
        %5090 = vmatpush1.msra.mxu0 %v5068
        %5091 = vmatprep.subr.mxu0 0.0
        %5092 = vmatpush1.msra.mxu0 %v5069
        %5093 = vmatprep.subr.mxu0 0.0
        %5094 = vmatpush1.msra.mxu0 %v5070
        %5095 = vmatprep.subr.mxu0 0.0
        %5096 = vmatpush1.msra.mxu0 %v5071
        %5097 = vmatprep.subr.mxu0 0.0
        %5098 = vmatpush1.msra.mxu0 %v5072
        %5099 = vmatprep.subr.mxu0 0.0
        %5100 = vmatpush1.msra.mxu0 %v5073
        %5101 = vmatprep.subr.mxu0 0.0
        %5102 = vmatpush1.msra.mxu0 %v5074
        %5103 = vmatprep.subr.mxu0 0.0
        %5104 = vmatpush1.msra.mxu0 %v5075
        %5105 = vmatprep.subr.mxu0 0.0
        %5106 = vmatpush1.msra.mxu0 %v5076
        %5107 = vmatprep.subr.mxu0 0.0
        %5108 = vmatpush1.msra.mxu0 %v5077
        %5109 = vmatprep.subr.mxu0 0.0
        %5110 = vmatpush1.msra.mxu0 %v5078
        %5111 = vmatprep.subr.mxu0 0.0
        %5112 = vmatpush1.msra.mxu0 0.0
        %5113 = vmatprep.subr.mxu0 0.0
        %5114 = vmatpush1.msra.mxu0 0.0
        %5115 = vmatprep.subr.mxu0 0.0
        %5116 = vmatpush1.msra.mxu0 0.0
        %5117 = vmatprep.subr.mxu0 0.0
        %5118 = vmatpush1.msra.mxu0 0.0
        %5119 = vmatprep.subr.mxu0 0.0
        %5120 = vmatpush1.msra.mxu0 0.0
        %5121 = vmatprep.subr.mxu0 0.0
        %5122 = vmatpush1.msra.mxu0 0.0
        %5123 = vmatprep.subr.mxu0 0.0
        %5124 = vmatpush1.msra.mxu0 0.0
        %5125 = vmatprep.subr.mxu0 0.0
        %5126 = vmatpush1.msra.mxu0 0.0
        %5127 = vmatprep.subr.mxu0 0.0
        %5128 = vmatpush1.msra.mxu0 0.0
        %5129 = vmatprep.subr.mxu0 0.0
        %5130 = vmatpush1.msra.mxu0 0.0
        %5131 = vmatprep.subr.mxu0 0.0
        %5132 = vmatpush1.msra.mxu0 0.0
        %5133 = vmatprep.subr.mxu0 0.0
        %5134 = vmatpush1.msra.mxu0 0.0
        %5135 = vmatprep.subr.mxu0 0.0
        %5136 = vmatpush1.msra.mxu0 0.0
        %5137 = vmatprep.subr.mxu0 0.0
        %5138 = vmatpush1.msra.mxu0 0.0
        %5139 = vmatprep.subr.mxu0 0.0
        %5140 = vmatpush1.msra.mxu0 0.0
        %5141 = vmatprep.subr.mxu0 0.0
        %5142 = vmatpush1.msra.mxu0 0.0
        %5143 = vmatprep.mubr.f32.mxu0 0.0
        %5144 = vmatmul.mubr.f32.gmra.mrb[0].mxu0 %v3638
        %v5145 = vpop.f32.mrb[0].mxu0
        %v5146 = vadd.f32 0.0, %v5145
        %v5147 = vpop.f32.mrb[0].mxu0
        %5148 = vmatprep.mubr.f32.mxu0 0.0
        %5149 = vmatmul.mubr.f32.gmra.mrb[0].mxu0 %v3643
        %v5150 = vpop.f32.mrb[0].mxu0
        %v5151 = vadd.f32 0.0, %v5150
        %v5152 = vpop.f32.mrb[0].mxu0
        %5153 = vdwg.mxu0
        %v5154 = vadd.f32 %v5060, %v5146
        %v5155 = vadd.f32 %v5061, %v5151
        %v5156 = vmul.f32 %v5154, 0.2
        %v5157 = vmul.f32 %v5155, 0.2
        %v5158 = vmax.f32 %v5154, %v5156
        %v5159 = vmax.f32 %v5155, %v5157
        %v5160 = vld [vmem:[%s11] sm:$0xff]
        %v5161 = vld [vmem:[%s11 + $0x8] sm:$0xff]
        %v5162 = vmul.f32 %v5158, %v5160
        %v5163 = vmul.f32 %v5159, %v5161
        %5164 = vadd.xlane.f32.xlu0 %v5162
        %v5165 = vpop.xlane.xlu0 %5164
        %5166 = vadd.xlane.f32.xlu0 %v5163
        %v5167 = vpop.xlane.xlu0 %5166
        %v5168 = vadd.f32 %v5165, %v5167
        %v5169 = vrot.slane %v5168, 4
        %v5170 = vadd.f32 %v5168, %v5169
        %v5171 = vrot.slane %v5170, 2
        %v5172 = vadd.f32 %v5170, %v5171
        %v5173 = vrot.slane %v5172, 1
        %v5174 = vadd.f32 %v5172, %v5173
        %v5175 = vsub.f32 0.0, %v5174
        %v5176 = vmul.f32 %v5175, 1.442695
        %v5177 = vpow.pop %v5176
        %v5178 = vadd.f32 %v5177, 1.0
        %v5179 = vrcp.pop %v5178
        %v5180 = vmul.f32 1.0, %v5179
        %5181 = vst [vmem:[%s428] sm:$0xff] %v5180
        %p5182 = scmp.lt.s32.totalorder %s24, 1
        %s5183 = scalar_select %p5182, %s24, 1
        %s5184 = smul.addr %s5183, 8
        %s5185 = scalar_lea.vmem %s12, %s5184
        // Predicated region
        $region73: #{discriminator_forward.1} parent=67 // pred_check
          %p5186 = pneg %p299
        $region74: #{discriminator_forward.1} parent=67 // pred_check_branch
          %5188 = sbr.rel (%p5186) target = $region76
        $region75: #{discriminator_forward.1} parent=67 // pred_region
          _
        $region76: #{discriminator_forward.1} parent=67 // pred_fallthru
          _
      $region68: #{discriminator_forward.1} parent=5 // pred_fallthru
        _
      %p5189 = scmp.le.s32.totalorder 2, %s19
      // Predicated region
      $region77: #{discriminator_forward.1} parent=5 // pred_check
        %p5190 = pneg %p5189
      $region78: #{discriminator_forward.1} parent=5 // pred_check_branch
        %5192 = sbr.rel (%p5190) target = $region80
      $region79: #{discriminator_forward.1} parent=5 // pred_region
        %s5193 = ssub.s32 %s19, 2
        // Predicated region
        $region81: #{discriminator_forward.1} parent=79 // pred_check
          %p5194 = pneg %p305
        $region82: #{discriminator_forward.1} parent=79 // pred_check_branch
          %5196 = sbr.rel (%p5194) target = $region84
        $region83: #{discriminator_forward.1} parent=79 // pred_region
          %p5197 = scmp.lt.s32.totalorder %s25, 1
          %s5198 = scalar_select %p5197, %s25, 1
          %s5199 = smul.addr %s5198, 8
          %s5200 = scalar_lea.vmem %s12, %s5199
        $region84: #{discriminator_forward.1} parent=79 // pred_fallthru
          _
      $region80: #{discriminator_forward.1} parent=5 // pred_fallthru
        _
    $region6: #{discriminator_forward.1} parent=1 // loop_footer
      %s23 = sadd.s32 1, %s19
    $region7: #{discriminator_forward.1} parent=1 // loop_footer_branch
      %18 = sbr.rel target = $region3
    $region8: #{discriminator_forward.1} parent=1 // loop_exit
      _
    %5201 = vsyncpa [#allocation3], 1
    %s5202 = scalar_lea.sflag [#allocation3], 1
    %5203 = vsyncpa %s5202, 1

</llo_original>
